<compile_context>
chip_gen: v7x
topology: tpu7x:2x2x1
jax: 0.10.0
libtpu: 0.0.40
codegen_flags: <defaults>
</compile_context>

<pallas_src>
import functools

import numpy as np
import jax
import jax.numpy as jnp
from jax import lax
from jax.experimental import pallas as pl
from jax.experimental.pallas import tpu as pltpu

VMEM = pltpu.MemorySpace.VMEM
SMEM = pltpu.MemorySpace.SMEM
NEG_BIG = -3.0e38          # masked-max sentinel (finite; replaced by 0 for empty segments)


# ------------------------------ fully fused forward kernel ----------------------------
def _fused_forward_kernel(n, hidden_dim, num_graphs, segments, keep_ratio,
                          a_ref, x_ref, sg_ref, sel_ref,
                          w1_ref, b1_ref, wp1_ref,
                          w2_ref, b2_ref, wp2_ref,
                          w3_ref, b3_ref, wp3_ref,
                          wm1_ref, bm1_ref, wm2_ref, bm2_ref, wm3_ref, bm3_ref,
                          bp1_ref, bp2_ref, bp3_ref,
                          out_ref):
    """Whole ModelB forward (3 SAGPool layers + readout + MLP) in one kernel.

    Per layer (fixed-shape equivalent of the torch reference):
        h      = relu(A @ (X @ W) + b)
        attn   = tanh(A @ (h @ w_pool) + b_pool)
        keep   = per-graph top-int(keep_ratio * n_valid) of attn among valid nodes
        X_next = h * attn * keep                       (dropped rows zeroed, not compacted)
        A_next = D^-1/2 (struct(A)*keep*keep^T + diag(keep)) D^-1/2
        gp     = [segment_mean(X_next) ; segment_max(X_next)]  accumulated into readout
    Head:  logits = MLP(relu, relu)(readout)
    """
    f32 = jnp.float32

    # ---- layer-invariant constants (hoisted above the layer loop) ----
    ridx = lax.broadcasted_iota(jnp.int32, (n, n), 0)
    cidx = lax.broadcasted_iota(jnp.int32, (n, n), 1)
    eye = (ridx == cidx).astype(f32)
    off_diag = 1.0 - eye
    g_iota = lax.broadcasted_iota(jnp.int32, (num_graphs, 1), 0)
    M = sg_ref[...]            # (N, N) same-graph indicator (static structure)
    S = sel_ref[...]           # (G, N) one-hot graph selector (segment-sum operator)

    def col_bcast(v):
        # (N,1) -> (N,N) with out[i,j] = v[j]; VPU multiply + XLU sublane reduce,
        # replaces the previous ones-matmul / diag-matmul broadcast tricks (no MXU).
        row = jnp.sum(eye * jnp.broadcast_to(v, (n, n)), axis=0, keepdims=True)   # (1,N)
        return jnp.broadcast_to(row, (n, n))

    A = a_ref[...]             # (N, N) normalized adjacency (f32; exact zeros = no edge)
    X = x_ref[...]             # (N, Din) node features
    valid = jnp.ones((n, 1), f32)
    readout_mean = jnp.zeros((num_graphs, hidden_dim), f32)
    readout_max = jnp.zeros((num_graphs, hidden_dim), f32)

    layer_refs = ((w1_ref, b1_ref, wp1_ref, bp1_ref),
                  (w2_ref, b2_ref, wp2_ref, bp2_ref),
                  (w3_ref, b3_ref, wp3_ref, bp3_ref))

    # TODO(synk): for large N / many graphs add a row-tiled grid over A (BlockSpec +
    # dimension_semantics=("parallel",...) for v7x's two TensorCores), cast the
    # feature-path matmul inputs to bf16 with preferred_element_type=f32 (keep the
    # mask/adjacency path in f32), and budget tiles against v7x's 64 MiB VMEM. At
    # N=32 a single fused whole-graph VMEM-resident invocation is optimal.
    for w_ref, b_ref, wp_ref, bp_ref in layer_refs:
        # ---- GCN + ReLU ----
        support = jnp.dot(X, w_ref[...], preferred_element_type=f32)              # (N, H)
        h = jnp.maximum(jnp.dot(A, support, preferred_element_type=f32) + b_ref[...], 0.0)

        # ---- attention GCN (thin (H,1) weight used directly; bias from SMEM) ----
        s1 = jnp.dot(h, wp_ref[...], preferred_element_type=f32)                  # (N, 1)
        attn = jnp.tanh(jnp.dot(A, s1, preferred_element_type=f32) + bp_ref[0, 0])  # (N, 1)

        # ---- per-graph top-rank among currently-valid nodes (O(N^2), on device) ----
        s_rows = jnp.broadcast_to(attn, (n, n))                                    # s_i
        s_cols = col_bcast(attn)                                                   # s_j
        beats = jnp.where(s_cols > s_rows, 1.0, 0.0) + jnp.where(
            jnp.logical_and(s_cols == s_rows, cidx < ridx), 1.0, 0.0)
        rank = jnp.dot(M * beats, valid, preferred_element_type=f32)               # (N, 1)
        n_valid = jnp.dot(M, valid, preferred_element_type=f32)                    # (N, 1)
        keep_cnt = jnp.floor(keep_ratio * n_valid)       # matches torch int(keep_ratio*n)
        keep = valid * jnp.where(rank < keep_cnt, 1.0, 0.0)                        # (N, 1)

        # ---- pooled node features ----
        pooled = h * attn * keep                                                   # (N, H)

        # ---- adjacency refilter + renormalize via rank-1 elementwise scaling ----
        keep_rows = jnp.broadcast_to(keep, (n, n))
        keep_cols = col_bcast(keep)
        a_struct = jnp.where(A != 0.0, 1.0, 0.0) * off_diag                        # drop self loops
        a_hat = a_struct * keep_rows * keep_cols + eye * keep_rows                 # + diag(keep)
        deg = jnp.sum(a_hat, axis=1, keepdims=True)                                # (N, 1)
        dinv = jnp.where(deg > 0.5, lax.rsqrt(jnp.maximum(deg, 1.0)), 0.0)
        a_next = a_hat * jnp.broadcast_to(dinv, (n, n)) * col_bcast(dinv)

        # ---- global mean / max pooling per (static, contiguous) graph segment ----
        cnt = jnp.dot(S, keep, preferred_element_type=f32)                         # (G, 1)
        seg_sum = jnp.dot(S, pooled, preferred_element_type=f32)                   # (G, H)
        has = cnt > 0.5
        inv = jnp.where(has, pl.reciprocal(jnp.maximum(cnt, 1.0), approx=False), 0.0)
        mean_gp = seg_sum * inv                                                    # (G, H)

        max_gp = jnp.zeros((num_graphs, hidden_dim), f32)
        for g, (start, count) in enumerate(segments):                              # static slices
            hg = pooled[start:start + count, :]                                    # (n_g, H)
            kg = keep[start:start + count, :]                                      # (n_g, 1)
            mx = jnp.max(jnp.where(kg > 0.5, hg, NEG_BIG), axis=0, keepdims=True)  # (1, H)
            onehot = (g_iota == g).astype(f32)                                     # (G, 1)
            max_gp = max_gp + onehot * jnp.broadcast_to(mx, (num_graphs, hidden_dim))
        max_gp = jnp.where(has, max_gp, 0.0)

        readout_mean = readout_mean + mean_gp
        readout_max = readout_max + max_gp

        # ---- carry to next layer (all VMEM/vreg resident) ----
        X, A, valid = pooled, a_next, keep

    # ---- readout (already summed) + MLP head; split wm1 to avoid a lane-dim concat ----
    r1 = (jnp.dot(readout_mean, wm1_ref[0:hidden_dim, :], preferred_element_type=f32)
          + jnp.dot(readout_max, wm1_ref[hidden_dim:2 * hidden_dim, :],
                    preferred_element_type=f32))
    h1 = jnp.maximum(r1 + bm1_ref[...], 0.0)
    h2 = jnp.maximum(jnp.dot(h1, wm2_ref[...], preferred_element_type=f32) + bm2_ref[...], 0.0)
    out_ref[...] = jnp.dot(h2, wm3_ref[...], preferred_element_type=f32) + bm3_ref[...]


def make_forward_call(n, hidden_dim, num_graphs, num_classes, segments, keep_ratio):
    kernel = functools.partial(_fused_forward_kernel, n, hidden_dim, num_graphs,
                               tuple(segments), float(keep_ratio))
    return pl.pallas_call(
        kernel,
        out_shape=jax.ShapeDtypeStruct((num_graphs, num_classes), jnp.float32),
        in_specs=[pl.BlockSpec(memory_space=VMEM)] * 19
                 + [pl.BlockSpec(memory_space=SMEM)] * 3,   # pool biases (1,1) as scalars
        out_specs=pl.BlockSpec(memory_space=VMEM),
    )


# ------------------------------ host-side setup (one-time) ----------------------------
def normalize_adjacency_dense(a_bin):
    """L = D^-0.5 (A + I) D^-0.5 (dense stand-in for the scipy/torch.sparse preprocessing)."""
    a = a_bin.astype(np.float32) + np.eye(a_bin.shape[0], dtype=np.float32)
    deg = a.sum(axis=1)
    d = np.power(deg, -0.5)
    return (d[:, None] * a * d[None, :]).astype(np.float32)


def _kaiming_uniform(key, shape):
    fan = shape[1]  # matches torch fan_in for 2-D weights
    bound = float(np.sqrt(6.0 / fan))
    return jax.random.uniform(key, shape, jnp.float32, -bound, bound)


def init_params(key, input_dim, hidden_dim, num_classes=2):
    ks = jax.random.split(key, 12)

    def gcn_p(k, din, dout):
        return {"w": _kaiming_uniform(k, (din, dout)),
                "b": jnp.zeros((dout,), jnp.float32)}          # init.zeros_(bias)

    def lin_p(kw, kb, din, dout):
        bound = 1.0 / float(np.sqrt(din))
        return {"w": jax.random.uniform(kw, (din, dout), jnp.float32, -bound, bound),
                "b": jax.random.uniform(kb, (dout,), jnp.float32, -bound, bound)}

    return {
        "gcn1": gcn_p(ks[0], input_dim, hidden_dim),
        "pool1": gcn_p(ks[1], hidden_dim, 1),
        "gcn2": gcn_p(ks[2], hidden_dim, hidden_dim),
        "pool2": gcn_p(ks[3], hidden_dim, 1),
        "gcn3": gcn_p(ks[4], hidden_dim, hidden_dim),
        "pool3": gcn_p(ks[5], hidden_dim, 1),
        "mlp1": lin_p(ks[6], ks[7], hidden_dim * 2, hidden_dim),
        "mlp2": lin_p(ks[8], ks[9], hidden_dim, hidden_dim // 2),
        "mlp3": lin_p(ks[10], ks[11], hidden_dim // 2, num_classes),
    }


def build_model_b(input_dim, hidden_dim, num_classes, graph_indicator, keep_ratio=0.5):
    gi = np.asarray(graph_indicator, dtype=np.int64)
    assert np.all(np.diff(gi) >= 0), "nodes must be grouped contiguously per graph"
    n = int(gi.shape[0])
    num_graphs = int(gi.max()) + 1
    segments = []
    for g in range(num_graphs):
        count = int((gi == g).sum())
        assert count > 0, "every graph id in [0, max] must own at least one node"
        segments.append((int(np.searchsorted(gi, g, side="left")), count))
    segments = tuple(segments)
    same_graph = jnp.asarray((gi[:, None] == gi[None, :]).astype(np.float32))      # (N, N)
    seg_sel = jnp.asarray(
        (np.arange(num_graphs)[:, None] == gi[None, :]).astype(np.float32))        # (G, N)

    fused = make_forward_call(n, hidden_dim, num_graphs, num_classes, segments, keep_ratio)

    @jax.jit
    def forward(params, adjacency, features):
        g1, g2, g3 = params["gcn1"], params["gcn2"], params["gcn3"]
        p1, p2, p3 = params["pool1"], params["pool2"], params["pool3"]
        m1, m2, m3 = params["mlp1"], params["mlp2"], params["mlp3"]
        return fused(
            adjacency, features, same_graph, seg_sel,
            g1["w"], g1["b"].reshape(1, -1), p1["w"],
            g2["w"], g2["b"].reshape(1, -1), p2["w"],
            g3["w"], g3["b"].reshape(1, -1), p3["w"],
            m1["w"], m1["b"].reshape(1, -1),
            m2["w"], m2["b"].reshape(1, -1),
            m3["w"], m3["b"].reshape(1, -1),
            p1["b"].reshape(1, 1), p2["b"].reshape(1, 1), p3["b"].reshape(1, 1))

    return forward


# --------------------------------------- main ----------------------------------------
if __name__ == "__main__":
    input_dim, hidden_dim, num_classes = 8, 32, 2
    nodes_per_graph = [16, 16]                                   # 2 graphs, 32 nodes total

    graph_indicator = np.concatenate(
        [np.full(cnt, i, dtype=np.int64) for i, cnt in enumerate(nodes_per_graph)])
    total_nodes = int(graph_indicator.shape[0])

    key = jax.random.PRNGKey(0)
    k_feat, k_params = jax.random.split(key, 2)

    # deterministic block-diagonal random symmetric adjacency (no self loops)
    rng = np.random.default_rng(0)
    a_bin = np.zeros((total_nodes, total_nodes), dtype=np.float32)
    off = 0
    for cnt in nodes_per_graph:
        block = (rng.random((cnt, cnt)) < 0.3).astype(np.float32)
        block = np.triu(block, 1)
        a_bin[off:off + cnt, off:off + cnt] = block + block.T
        off += cnt
    adjacency = jnp.asarray(normalize_adjacency_dense(a_bin))    # (32, 32) f32
    features = jax.random.normal(k_feat, (total_nodes, input_dim), jnp.float32)

    params = init_params(k_params, input_dim, hidden_dim, num_classes)
    forward = build_model_b(input_dim, hidden_dim, num_classes, graph_indicator)
    logits = forward(params, adjacency, features)
    jax.block_until_ready(logits)
    assert logits.shape == (len(nodes_per_graph), num_classes)
    assert bool(jnp.all(jnp.isfinite(logits)))
    print("KERNEL_OK")
</pallas_src>

<mosaic_0001>
module attributes {stable_mosaic.version = 11 : i64} {
  func.func @_fused_forward_kernel(%arg0: memref<32x32xf32, #tpu.memory_space<vmem>>, %arg1: memref<32x8xf32, #tpu.memory_space<vmem>>, %arg2: memref<32x32xf32, #tpu.memory_space<vmem>>, %arg3: memref<2x32xf32, #tpu.memory_space<vmem>>, %arg4: memref<8x32xf32, #tpu.memory_space<vmem>>, %arg5: memref<1x32xf32, #tpu.memory_space<vmem>>, %arg6: memref<32x1xf32, #tpu.memory_space<vmem>>, %arg7: memref<32x32xf32, #tpu.memory_space<vmem>>, %arg8: memref<1x32xf32, #tpu.memory_space<vmem>>, %arg9: memref<32x1xf32, #tpu.memory_space<vmem>>, %arg10: memref<32x32xf32, #tpu.memory_space<vmem>>, %arg11: memref<1x32xf32, #tpu.memory_space<vmem>>, %arg12: memref<32x1xf32, #tpu.memory_space<vmem>>, %arg13: memref<64x32xf32, #tpu.memory_space<vmem>>, %arg14: memref<1x32xf32, #tpu.memory_space<vmem>>, %arg15: memref<32x16xf32, #tpu.memory_space<vmem>>, %arg16: memref<1x16xf32, #tpu.memory_space<vmem>>, %arg17: memref<16x2xf32, #tpu.memory_space<vmem>>, %arg18: memref<1x2xf32, #tpu.memory_space<vmem>>, %arg19: memref<1x1xf32, #tpu.memory_space<smem>>, %arg20: memref<1x1xf32, #tpu.memory_space<smem>>, %arg21: memref<1x1xf32, #tpu.memory_space<smem>>, %arg22: memref<2x2xf32, #tpu.memory_space<vmem>>) attributes {dimension_semantics = [], scalar_prefetch = 0 : i64, scratch_operands = 0 : i64, tpu.core_type = #tpu.core_type<tc>} {
    %0 = tpu.iota {dimensions = array<i32: 0>} : vector<32x32xi32>
    %1 = tpu.iota {dimensions = array<i32: 1>} : vector<32x32xi32>
    %2 = arith.cmpi eq, %0, %1 : vector<32x32xi32>
    %3 = arith.extui %2 : vector<32x32xi1> to vector<32x32xi32>
    %4 = arith.sitofp %3 : vector<32x32xi32> to vector<32x32xf32>
    %cst = arith.constant 1.000000e+00 : f32
    %5 = vector.broadcast %cst : f32 to vector<32x32xf32>
    %6 = arith.subf %5, %4 : vector<32x32xf32>
    %7 = tpu.iota {dimensions = array<i32: 0>} : vector<2x1xi32>
    %c0 = arith.constant 0 : index
    %c0_0 = arith.constant 0 : index
    %8 = vector.load %arg2[%c0, %c0_0] : memref<32x32xf32, #tpu.memory_space<vmem>>, vector<32x32xf32>
    %c0_1 = arith.constant 0 : index
    %c0_2 = arith.constant 0 : index
    %9 = vector.load %arg3[%c0_1, %c0_2] : memref<2x32xf32, #tpu.memory_space<vmem>>, vector<2x32xf32>
    %c0_3 = arith.constant 0 : index
    %c0_4 = arith.constant 0 : index
    %10 = vector.load %arg0[%c0_3, %c0_4] : memref<32x32xf32, #tpu.memory_space<vmem>>, vector<32x32xf32>
    %c0_5 = arith.constant 0 : index
    %c0_6 = arith.constant 0 : index
    %11 = vector.load %arg1[%c0_5, %c0_6] : memref<32x8xf32, #tpu.memory_space<vmem>>, vector<32x8xf32>
    %cst_7 = arith.constant 1.000000e+00 : f32
    %12 = vector.broadcast %cst_7 : f32 to vector<32x1xf32>
    %cst_8 = arith.constant 0.000000e+00 : f32
    %13 = vector.broadcast %cst_8 : f32 to vector<2x32xf32>
    %cst_9 = arith.constant 0.000000e+00 : f32
    %14 = vector.broadcast %cst_9 : f32 to vector<2x32xf32>
    %c0_10 = arith.constant 0 : index
    %c0_11 = arith.constant 0 : index
    %15 = vector.load %arg4[%c0_10, %c0_11] : memref<8x32xf32, #tpu.memory_space<vmem>>, vector<8x32xf32>
    %cst_12 = arith.constant dense<0.000000e+00> : vector<32x32xf32>
    %16 = tpu.matmul %11, %15, %cst_12 {dimension_numbers = #tpu.dot_dimension_numbers<[1], [0], [0], [1], [0, 0, 1, 1], [], []>} : vector<32x8xf32>, vector<8x32xf32>, vector<32x32xf32> -> vector<32x32xf32>
    %cst_13 = arith.constant dense<0.000000e+00> : vector<32x32xf32>
    %17 = tpu.matmul %10, %16, %cst_13 {dimension_numbers = #tpu.dot_dimension_numbers<[1], [0], [0], [1], [0, 0, 1, 1], [], []>} : vector<32x32xf32>, vector<32x32xf32>, vector<32x32xf32> -> vector<32x32xf32>
    %c0_14 = arith.constant 0 : index
    %c0_15 = arith.constant 0 : index
    %18 = vector.load %arg5[%c0_14, %c0_15] : memref<1x32xf32, #tpu.memory_space<vmem>>, vector<1x32xf32>
    %19 = vector.broadcast %18 : vector<1x32xf32> to vector<32x32xf32>
    %20 = arith.addf %17, %19 : vector<32x32xf32>
    %cst_16 = arith.constant 0.000000e+00 : f32
    %21 = vector.broadcast %cst_16 : f32 to vector<32x32xf32>
    %22 = arith.maximumf %20, %21 : vector<32x32xf32>
    %c0_17 = arith.constant 0 : index
    %c0_18 = arith.constant 0 : index
    %23 = vector.load %arg6[%c0_17, %c0_18] : memref<32x1xf32, #tpu.memory_space<vmem>>, vector<32x1xf32>
    %cst_19 = arith.constant dense<0.000000e+00> : vector<32x1xf32>
    %24 = tpu.matmul %22, %23, %cst_19 {dimension_numbers = #tpu.dot_dimension_numbers<[1], [0], [0], [1], [0, 0, 1, 1], [], []>} : vector<32x32xf32>, vector<32x1xf32>, vector<32x1xf32> -> vector<32x1xf32>
    %cst_20 = arith.constant dense<0.000000e+00> : vector<32x1xf32>
    %25 = tpu.matmul %10, %24, %cst_20 {dimension_numbers = #tpu.dot_dimension_numbers<[1], [0], [0], [1], [0, 0, 1, 1], [], []>} : vector<32x32xf32>, vector<32x1xf32>, vector<32x1xf32> -> vector<32x1xf32>
    %c0_21 = arith.constant 0 : index
    %c0_22 = arith.constant 0 : index
    %26 = memref.load %arg19[%c0_21, %c0_22] : memref<1x1xf32, #tpu.memory_space<smem>>
    %27 = vector.broadcast %26 : f32 to vector<32x1xf32>
    %28 = arith.addf %25, %27 : vector<32x1xf32>
    %29 = math.tanh %28 : vector<32x1xf32>
    %30 = vector.shape_cast %29 : vector<32x1xf32> to vector<32x1xf32>
    %31 = vector.broadcast %30 : vector<32x1xf32> to vector<32x32xf32>
    %32 = vector.shape_cast %29 : vector<32x1xf32> to vector<32x1xf32>
    %33 = vector.broadcast %32 : vector<32x1xf32> to vector<32x32xf32>
    %34 = arith.mulf %4, %33 : vector<32x32xf32>
    %cst_23 = arith.constant dense<0.000000e+00> : vector<32xf32>
    %35 = vector.multi_reduction <add>, %34, %cst_23 [0] : vector<32x32xf32> to vector<32xf32>
    %36 = vector.shape_cast %35 : vector<32xf32> to vector<1x32xf32>
    %37 = vector.shape_cast %36 : vector<1x32xf32> to vector<1x32xf32>
    %38 = vector.broadcast %37 : vector<1x32xf32> to vector<32x32xf32>
    %39 = arith.cmpf ogt, %38, %31 : vector<32x32xf32>
    %cst_24 = arith.constant 1.000000e+00 : f32
    %cst_25 = arith.constant 0.000000e+00 : f32
    %40 = vector.broadcast %cst_24 : f32 to vector<32x32xf32>
    %41 = vector.broadcast %cst_25 : f32 to vector<32x32xf32>
    %42 = arith.select %39, %40, %41 : vector<32x32xi1>, vector<32x32xf32>
    %43 = arith.cmpf oeq, %38, %31 : vector<32x32xf32>
    %44 = arith.cmpi slt, %1, %0 : vector<32x32xi32>
    %45 = arith.andi %43, %44 : vector<32x32xi1>
    %cst_26 = arith.constant 1.000000e+00 : f32
    %cst_27 = arith.constant 0.000000e+00 : f32
    %46 = vector.broadcast %cst_26 : f32 to vector<32x32xf32>
    %47 = vector.broadcast %cst_27 : f32 to vector<32x32xf32>
    %48 = arith.select %45, %46, %47 : vector<32x32xi1>, vector<32x32xf32>
    %49 = arith.addf %42, %48 : vector<32x32xf32>
    %50 = arith.mulf %8, %49 : vector<32x32xf32>
    %cst_28 = arith.constant dense<0.000000e+00> : vector<32x1xf32>
    %51 = tpu.matmul %50, %12, %cst_28 {dimension_numbers = #tpu.dot_dimension_numbers<[1], [0], [0], [1], [0, 0, 1, 1], [], []>} : vector<32x32xf32>, vector<32x1xf32>, vector<32x1xf32> -> vector<32x1xf32>
    %cst_29 = arith.constant dense<0.000000e+00> : vector<32x1xf32>
    %52 = tpu.matmul %8, %12, %cst_29 {dimension_numbers = #tpu.dot_dimension_numbers<[1], [0], [0], [1], [0, 0, 1, 1], [], []>} : vector<32x32xf32>, vector<32x1xf32>, vector<32x1xf32> -> vector<32x1xf32>
    %cst_30 = arith.constant 5.000000e-01 : f32
    %53 = vector.broadcast %cst_30 : f32 to vector<32x1xf32>
    %54 = arith.mulf %53, %52 : vector<32x1xf32>
    %55 = math.floor %54 : vector<32x1xf32>
    %56 = arith.cmpf olt, %51, %55 : vector<32x1xf32>
    %cst_31 = arith.constant 1.000000e+00 : f32
    %cst_32 = arith.constant 0.000000e+00 : f32
    %57 = vector.broadcast %cst_31 : f32 to vector<32x1xf32>
    %58 = vector.broadcast %cst_32 : f32 to vector<32x1xf32>
    %59 = arith.select %56, %57, %58 : vector<32x1xi1>, vector<32x1xf32>
    %60 = arith.mulf %12, %59 : vector<32x1xf32>
    %61 = vector.broadcast %29 : vector<32x1xf32> to vector<32x32xf32>
    %62 = arith.mulf %22, %61 : vector<32x32xf32>
    %63 = vector.broadcast %60 : vector<32x1xf32> to vector<32x32xf32>
    %64 = arith.mulf %62, %63 : vector<32x32xf32>
    %65 = vector.shape_cast %60 : vector<32x1xf32> to vector<32x1xf32>
    %66 = vector.broadcast %65 : vector<32x1xf32> to vector<32x32xf32>
    %67 = vector.shape_cast %60 : vector<32x1xf32> to vector<32x1xf32>
    %68 = vector.broadcast %67 : vector<32x1xf32> to vector<32x32xf32>
    %69 = arith.mulf %4, %68 : vector<32x32xf32>
    %cst_33 = arith.constant dense<0.000000e+00> : vector<32xf32>
    %70 = vector.multi_reduction <add>, %69, %cst_33 [0] : vector<32x32xf32> to vector<32xf32>
    %71 = vector.shape_cast %70 : vector<32xf32> to vector<1x32xf32>
    %72 = vector.shape_cast %71 : vector<1x32xf32> to vector<1x32xf32>
    %73 = vector.broadcast %72 : vector<1x32xf32> to vector<32x32xf32>
    %cst_34 = arith.constant 0.000000e+00 : f32
    %74 = vector.broadcast %cst_34 : f32 to vector<32x32xf32>
    %75 = arith.cmpf one, %10, %74 : vector<32x32xf32>
    %cst_35 = arith.constant 1.000000e+00 : f32
    %cst_36 = arith.constant 0.000000e+00 : f32
    %76 = vector.broadcast %cst_35 : f32 to vector<32x32xf32>
    %77 = vector.broadcast %cst_36 : f32 to vector<32x32xf32>
    %78 = arith.select %75, %76, %77 : vector<32x32xi1>, vector<32x32xf32>
    %79 = arith.mulf %78, %6 : vector<32x32xf32>
    %80 = arith.mulf %79, %66 : vector<32x32xf32>
    %81 = arith.mulf %80, %73 : vector<32x32xf32>
    %82 = arith.mulf %4, %66 : vector<32x32xf32>
    %83 = arith.addf %81, %82 : vector<32x32xf32>
    %cst_37 = arith.constant dense<0.000000e+00> : vector<32xf32>
    %84 = vector.multi_reduction <add>, %83, %cst_37 [1] : vector<32x32xf32> to vector<32xf32>
    %85 = vector.shape_cast %84 : vector<32xf32> to vector<32x1xf32>
    %cst_38 = arith.constant 5.000000e-01 : f32
    %86 = vector.broadcast %cst_38 : f32 to vector<32x1xf32>
    %87 = arith.cmpf ogt, %85, %86 : vector<32x1xf32>
    %cst_39 = arith.constant 1.000000e+00 : f32
    %88 = vector.broadcast %cst_39 : f32 to vector<32x1xf32>
    %89 = arith.maximumf %85, %88 : vector<32x1xf32>
    %90 = math.rsqrt %89 : vector<32x1xf32>
    %cst_40 = arith.constant 0.000000e+00 : f32
    %91 = vector.broadcast %cst_40 : f32 to vector<32x1xf32>
    %92 = arith.select %87, %90, %91 : vector<32x1xi1>, vector<32x1xf32>
    %93 = vector.shape_cast %92 : vector<32x1xf32> to vector<32x1xf32>
    %94 = vector.broadcast %93 : vector<32x1xf32> to vector<32x32xf32>
    %95 = arith.mulf %83, %94 : vector<32x32xf32>
    %96 = vector.shape_cast %92 : vector<32x1xf32> to vector<32x1xf32>
    %97 = vector.broadcast %96 : vector<32x1xf32> to vector<32x32xf32>
    %98 = arith.mulf %4, %97 : vector<32x32xf32>
    %cst_41 = arith.constant dense<0.000000e+00> : vector<32xf32>
    %99 = vector.multi_reduction <add>, %98, %cst_41 [0] : vector<32x32xf32> to vector<32xf32>
    %100 = vector.shape_cast %99 : vector<32xf32> to vector<1x32xf32>
    %101 = vector.shape_cast %100 : vector<1x32xf32> to vector<1x32xf32>
    %102 = vector.broadcast %101 : vector<1x32xf32> to vector<32x32xf32>
    %103 = arith.mulf %95, %102 : vector<32x32xf32>
    %cst_42 = arith.constant dense<0.000000e+00> : vector<2x1xf32>
    %104 = tpu.matmul %9, %60, %cst_42 {dimension_numbers = #tpu.dot_dimension_numbers<[1], [0], [0], [1], [0, 0, 1, 1], [], []>} : vector<2x32xf32>, vector<32x1xf32>, vector<2x1xf32> -> vector<2x1xf32>
    %cst_43 = arith.constant dense<0.000000e+00> : vector<2x32xf32>
    %105 = tpu.matmul %9, %64, %cst_43 {dimension_numbers = #tpu.dot_dimension_numbers<[1], [0], [0], [1], [0, 0, 1, 1], [], []>} : vector<2x32xf32>, vector<32x32xf32>, vector<2x32xf32> -> vector<2x32xf32>
    %cst_44 = arith.constant 5.000000e-01 : f32
    %106 = vector.broadcast %cst_44 : f32 to vector<2x1xf32>
    %107 = arith.cmpf ogt, %104, %106 : vector<2x1xf32>
    %cst_45 = arith.constant 1.000000e+00 : f32
    %108 = vector.broadcast %cst_45 : f32 to vector<2x1xf32>
    %109 = arith.maximumf %104, %108 : vector<2x1xf32>
    %110 = tpu.reciprocal %109 : vector<2x1xf32> -> vector<2x1xf32>
    %cst_46 = arith.constant 0.000000e+00 : f32
    %111 = vector.broadcast %cst_46 : f32 to vector<2x1xf32>
    %112 = arith.select %107, %110, %111 : vector<2x1xi1>, vector<2x1xf32>
    %113 = vector.broadcast %112 : vector<2x1xf32> to vector<2x32xf32>
    %114 = arith.mulf %105, %113 : vector<2x32xf32>
    %cst_47 = arith.constant 0.000000e+00 : f32
    %115 = vector.broadcast %cst_47 : f32 to vector<2x32xf32>
    %116 = vector.extract_strided_slice %64 {offsets = [0, 0], sizes = [16, 32], strides = [1, 1]} : vector<32x32xf32> to vector<16x32xf32>
    %117 = vector.extract_strided_slice %60 {offsets = [0, 0], sizes = [16, 1], strides = [1, 1]} : vector<32x1xf32> to vector<16x1xf32>
    %cst_48 = arith.constant 5.000000e-01 : f32
    %118 = vector.broadcast %cst_48 : f32 to vector<16x1xf32>
    %119 = arith.cmpf ogt, %117, %118 : vector<16x1xf32>
    %cst_49 = arith.constant -3.000000e+38 : f32
    %120 = vector.shape_cast %119 : vector<16x1xi1> to vector<16x1xi1>
    %121 = vector.broadcast %120 : vector<16x1xi1> to vector<16x32xi1>
    %122 = vector.broadcast %cst_49 : f32 to vector<16x32xf32>
    %123 = arith.select %121, %116, %122 : vector<16x32xi1>, vector<16x32xf32>
    %cst_50 = arith.constant dense<0xFF800000> : vector<32xf32>
    %124 = vector.multi_reduction <maximumf>, %123, %cst_50 [0] : vector<16x32xf32> to vector<32xf32>
    %125 = vector.shape_cast %124 : vector<32xf32> to vector<1x32xf32>
    %c0_i32 = arith.constant 0 : i32
    %126 = vector.broadcast %c0_i32 : i32 to vector<2x1xi32>
    %127 = arith.cmpi eq, %7, %126 : vector<2x1xi32>
    %128 = arith.extui %127 : vector<2x1xi1> to vector<2x1xi32>
    %129 = arith.sitofp %128 : vector<2x1xi32> to vector<2x1xf32>
    %130 = vector.shape_cast %125 : vector<1x32xf32> to vector<1x32xf32>
    %131 = vector.broadcast %130 : vector<1x32xf32> to vector<2x32xf32>
    %132 = vector.broadcast %129 : vector<2x1xf32> to vector<2x32xf32>
    %133 = arith.mulf %132, %131 : vector<2x32xf32>
    %134 = arith.addf %115, %133 : vector<2x32xf32>
    %135 = vector.extract_strided_slice %64 {offsets = [16, 0], sizes = [16, 32], strides = [1, 1]} : vector<32x32xf32> to vector<16x32xf32>
    %136 = vector.extract_strided_slice %60 {offsets = [16, 0], sizes = [16, 1], strides = [1, 1]} : vector<32x1xf32> to vector<16x1xf32>
    %cst_51 = arith.constant 5.000000e-01 : f32
    %137 = vector.broadcast %cst_51 : f32 to vector<16x1xf32>
    %138 = arith.cmpf ogt, %136, %137 : vector<16x1xf32>
    %cst_52 = arith.constant -3.000000e+38 : f32
    %139 = vector.shape_cast %138 : vector<16x1xi1> to vector<16x1xi1>
    %140 = vector.broadcast %139 : vector<16x1xi1> to vector<16x32xi1>
    %141 = vector.broadcast %cst_52 : f32 to vector<16x32xf32>
    %142 = arith.select %140, %135, %141 : vector<16x32xi1>, vector<16x32xf32>
    %cst_53 = arith.constant dense<0xFF800000> : vector<32xf32>
    %143 = vector.multi_reduction <maximumf>, %142, %cst_53 [0] : vector<16x32xf32> to vector<32xf32>
    %144 = vector.shape_cast %143 : vector<32xf32> to vector<1x32xf32>
    %c1_i32 = arith.constant 1 : i32
    %145 = vector.broadcast %c1_i32 : i32 to vector<2x1xi32>
    %146 = arith.cmpi eq, %7, %145 : vector<2x1xi32>
    %147 = arith.extui %146 : vector<2x1xi1> to vector<2x1xi32>
    %148 = arith.sitofp %147 : vector<2x1xi32> to vector<2x1xf32>
    %149 = vector.shape_cast %144 : vector<1x32xf32> to vector<1x32xf32>
    %150 = vector.broadcast %149 : vector<1x32xf32> to vector<2x32xf32>
    %151 = vector.broadcast %148 : vector<2x1xf32> to vector<2x32xf32>
    %152 = arith.mulf %151, %150 : vector<2x32xf32>
    %153 = arith.addf %134, %152 : vector<2x32xf32>
    %cst_54 = arith.constant 0.000000e+00 : f32
    %154 = vector.shape_cast %107 : vector<2x1xi1> to vector<2x1xi1>
    %155 = vector.broadcast %154 : vector<2x1xi1> to vector<2x32xi1>
    %156 = vector.broadcast %cst_54 : f32 to vector<2x32xf32>
    %157 = arith.select %155, %153, %156 : vector<2x32xi1>, vector<2x32xf32>
    %158 = arith.addf %13, %114 : vector<2x32xf32>
    %159 = arith.addf %14, %157 : vector<2x32xf32>
    %c0_55 = arith.constant 0 : index
    %c0_56 = arith.constant 0 : index
    %160 = vector.load %arg7[%c0_55, %c0_56] : memref<32x32xf32, #tpu.memory_space<vmem>>, vector<32x32xf32>
    %cst_57 = arith.constant dense<0.000000e+00> : vector<32x32xf32>
    %161 = tpu.matmul %64, %160, %cst_57 {dimension_numbers = #tpu.dot_dimension_numbers<[1], [0], [0], [1], [0, 0, 1, 1], [], []>} : vector<32x32xf32>, vector<32x32xf32>, vector<32x32xf32> -> vector<32x32xf32>
    %cst_58 = arith.constant dense<0.000000e+00> : vector<32x32xf32>
    %162 = tpu.matmul %103, %161, %cst_58 {dimension_numbers = #tpu.dot_dimension_numbers<[1], [0], [0], [1], [0, 0, 1, 1], [], []>} : vector<32x32xf32>, vector<32x32xf32>, vector<32x32xf32> -> vector<32x32xf32>
    %c0_59 = arith.constant 0 : index
    %c0_60 = arith.constant 0 : index
    %163 = vector.load %arg8[%c0_59, %c0_60] : memref<1x32xf32, #tpu.memory_space<vmem>>, vector<1x32xf32>
    %164 = vector.broadcast %163 : vector<1x32xf32> to vector<32x32xf32>
    %165 = arith.addf %162, %164 : vector<32x32xf32>
    %cst_61 = arith.constant 0.000000e+00 : f32
    %166 = vector.broadcast %cst_61 : f32 to vector<32x32xf32>
    %167 = arith.maximumf %165, %166 : vector<32x32xf32>
    %c0_62 = arith.constant 0 : index
    %c0_63 = arith.constant 0 : index
    %168 = vector.load %arg9[%c0_62, %c0_63] : memref<32x1xf32, #tpu.memory_space<vmem>>, vector<32x1xf32>
    %cst_64 = arith.constant dense<0.000000e+00> : vector<32x1xf32>
    %169 = tpu.matmul %167, %168, %cst_64 {dimension_numbers = #tpu.dot_dimension_numbers<[1], [0], [0], [1], [0, 0, 1, 1], [], []>} : vector<32x32xf32>, vector<32x1xf32>, vector<32x1xf32> -> vector<32x1xf32>
    %cst_65 = arith.constant dense<0.000000e+00> : vector<32x1xf32>
    %170 = tpu.matmul %103, %169, %cst_65 {dimension_numbers = #tpu.dot_dimension_numbers<[1], [0], [0], [1], [0, 0, 1, 1], [], []>} : vector<32x32xf32>, vector<32x1xf32>, vector<32x1xf32> -> vector<32x1xf32>
    %c0_66 = arith.constant 0 : index
    %c0_67 = arith.constant 0 : index
    %171 = memref.load %arg20[%c0_66, %c0_67] : memref<1x1xf32, #tpu.memory_space<smem>>
    %172 = vector.broadcast %171 : f32 to vector<32x1xf32>
    %173 = arith.addf %170, %172 : vector<32x1xf32>
    %174 = math.tanh %173 : vector<32x1xf32>
    %175 = vector.shape_cast %174 : vector<32x1xf32> to vector<32x1xf32>
    %176 = vector.broadcast %175 : vector<32x1xf32> to vector<32x32xf32>
    %177 = vector.shape_cast %174 : vector<32x1xf32> to vector<32x1xf32>
    %178 = vector.broadcast %177 : vector<32x1xf32> to vector<32x32xf32>
    %179 = arith.mulf %4, %178 : vector<32x32xf32>
    %cst_68 = arith.constant dense<0.000000e+00> : vector<32xf32>
    %180 = vector.multi_reduction <add>, %179, %cst_68 [0] : vector<32x32xf32> to vector<32xf32>
    %181 = vector.shape_cast %180 : vector<32xf32> to vector<1x32xf32>
    %182 = vector.shape_cast %181 : vector<1x32xf32> to vector<1x32xf32>
    %183 = vector.broadcast %182 : vector<1x32xf32> to vector<32x32xf32>
    %184 = arith.cmpf ogt, %183, %176 : vector<32x32xf32>
    %cst_69 = arith.constant 1.000000e+00 : f32
    %cst_70 = arith.constant 0.000000e+00 : f32
    %185 = vector.broadcast %cst_69 : f32 to vector<32x32xf32>
    %186 = vector.broadcast %cst_70 : f32 to vector<32x32xf32>
    %187 = arith.select %184, %185, %186 : vector<32x32xi1>, vector<32x32xf32>
    %188 = arith.cmpf oeq, %183, %176 : vector<32x32xf32>
    %189 = arith.cmpi slt, %1, %0 : vector<32x32xi32>
    %190 = arith.andi %188, %189 : vector<32x32xi1>
    %cst_71 = arith.constant 1.000000e+00 : f32
    %cst_72 = arith.constant 0.000000e+00 : f32
    %191 = vector.broadcast %cst_71 : f32 to vector<32x32xf32>
    %192 = vector.broadcast %cst_72 : f32 to vector<32x32xf32>
    %193 = arith.select %190, %191, %192 : vector<32x32xi1>, vector<32x32xf32>
    %194 = arith.addf %187, %193 : vector<32x32xf32>
    %195 = arith.mulf %8, %194 : vector<32x32xf32>
    %cst_73 = arith.constant dense<0.000000e+00> : vector<32x1xf32>
    %196 = tpu.matmul %195, %60, %cst_73 {dimension_numbers = #tpu.dot_dimension_numbers<[1], [0], [0], [1], [0, 0, 1, 1], [], []>} : vector<32x32xf32>, vector<32x1xf32>, vector<32x1xf32> -> vector<32x1xf32>
    %cst_74 = arith.constant dense<0.000000e+00> : vector<32x1xf32>
    %197 = tpu.matmul %8, %60, %cst_74 {dimension_numbers = #tpu.dot_dimension_numbers<[1], [0], [0], [1], [0, 0, 1, 1], [], []>} : vector<32x32xf32>, vector<32x1xf32>, vector<32x1xf32> -> vector<32x1xf32>
    %cst_75 = arith.constant 5.000000e-01 : f32
    %198 = vector.broadcast %cst_75 : f32 to vector<32x1xf32>
    %199 = arith.mulf %198, %197 : vector<32x1xf32>
    %200 = math.floor %199 : vector<32x1xf32>
    %201 = arith.cmpf olt, %196, %200 : vector<32x1xf32>
    %cst_76 = arith.constant 1.000000e+00 : f32
    %cst_77 = arith.constant 0.000000e+00 : f32
    %202 = vector.broadcast %cst_76 : f32 to vector<32x1xf32>
    %203 = vector.broadcast %cst_77 : f32 to vector<32x1xf32>
    %204 = arith.select %201, %202, %203 : vector<32x1xi1>, vector<32x1xf32>
    %205 = arith.mulf %60, %204 : vector<32x1xf32>
    %206 = vector.broadcast %174 : vector<32x1xf32> to vector<32x32xf32>
    %207 = arith.mulf %167, %206 : vector<32x32xf32>
    %208 = vector.broadcast %205 : vector<32x1xf32> to vector<32x32xf32>
    %209 = arith.mulf %207, %208 : vector<32x32xf32>
    %210 = vector.shape_cast %205 : vector<32x1xf32> to vector<32x1xf32>
    %211 = vector.broadcast %210 : vector<32x1xf32> to vector<32x32xf32>
    %212 = vector.shape_cast %205 : vector<32x1xf32> to vector<32x1xf32>
    %213 = vector.broadcast %212 : vector<32x1xf32> to vector<32x32xf32>
    %214 = arith.mulf %4, %213 : vector<32x32xf32>
    %cst_78 = arith.constant dense<0.000000e+00> : vector<32xf32>
    %215 = vector.multi_reduction <add>, %214, %cst_78 [0] : vector<32x32xf32> to vector<32xf32>
    %216 = vector.shape_cast %215 : vector<32xf32> to vector<1x32xf32>
    %217 = vector.shape_cast %216 : vector<1x32xf32> to vector<1x32xf32>
    %218 = vector.broadcast %217 : vector<1x32xf32> to vector<32x32xf32>
    %cst_79 = arith.constant 0.000000e+00 : f32
    %219 = vector.broadcast %cst_79 : f32 to vector<32x32xf32>
    %220 = arith.cmpf one, %103, %219 : vector<32x32xf32>
    %cst_80 = arith.constant 1.000000e+00 : f32
    %cst_81 = arith.constant 0.000000e+00 : f32
    %221 = vector.broadcast %cst_80 : f32 to vector<32x32xf32>
    %222 = vector.broadcast %cst_81 : f32 to vector<32x32xf32>
    %223 = arith.select %220, %221, %222 : vector<32x32xi1>, vector<32x32xf32>
    %224 = arith.mulf %223, %6 : vector<32x32xf32>
    %225 = arith.mulf %224, %211 : vector<32x32xf32>
    %226 = arith.mulf %225, %218 : vector<32x32xf32>
    %227 = arith.mulf %4, %211 : vector<32x32xf32>
    %228 = arith.addf %226, %227 : vector<32x32xf32>
    %cst_82 = arith.constant dense<0.000000e+00> : vector<32xf32>
    %229 = vector.multi_reduction <add>, %228, %cst_82 [1] : vector<32x32xf32> to vector<32xf32>
    %230 = vector.shape_cast %229 : vector<32xf32> to vector<32x1xf32>
    %cst_83 = arith.constant 5.000000e-01 : f32
    %231 = vector.broadcast %cst_83 : f32 to vector<32x1xf32>
    %232 = arith.cmpf ogt, %230, %231 : vector<32x1xf32>
    %cst_84 = arith.constant 1.000000e+00 : f32
    %233 = vector.broadcast %cst_84 : f32 to vector<32x1xf32>
    %234 = arith.maximumf %230, %233 : vector<32x1xf32>
    %235 = math.rsqrt %234 : vector<32x1xf32>
    %cst_85 = arith.constant 0.000000e+00 : f32
    %236 = vector.broadcast %cst_85 : f32 to vector<32x1xf32>
    %237 = arith.select %232, %235, %236 : vector<32x1xi1>, vector<32x1xf32>
    %238 = vector.shape_cast %237 : vector<32x1xf32> to vector<32x1xf32>
    %239 = vector.broadcast %238 : vector<32x1xf32> to vector<32x32xf32>
    %240 = arith.mulf %228, %239 : vector<32x32xf32>
    %241 = vector.shape_cast %237 : vector<32x1xf32> to vector<32x1xf32>
    %242 = vector.broadcast %241 : vector<32x1xf32> to vector<32x32xf32>
    %243 = arith.mulf %4, %242 : vector<32x32xf32>
    %cst_86 = arith.constant dense<0.000000e+00> : vector<32xf32>
    %244 = vector.multi_reduction <add>, %243, %cst_86 [0] : vector<32x32xf32> to vector<32xf32>
    %245 = vector.shape_cast %244 : vector<32xf32> to vector<1x32xf32>
    %246 = vector.shape_cast %245 : vector<1x32xf32> to vector<1x32xf32>
    %247 = vector.broadcast %246 : vector<1x32xf32> to vector<32x32xf32>
    %248 = arith.mulf %240, %247 : vector<32x32xf32>
    %cst_87 = arith.constant dense<0.000000e+00> : vector<2x1xf32>
    %249 = tpu.matmul %9, %205, %cst_87 {dimension_numbers = #tpu.dot_dimension_numbers<[1], [0], [0], [1], [0, 0, 1, 1], [], []>} : vector<2x32xf32>, vector<32x1xf32>, vector<2x1xf32> -> vector<2x1xf32>
    %cst_88 = arith.constant dense<0.000000e+00> : vector<2x32xf32>
    %250 = tpu.matmul %9, %209, %cst_88 {dimension_numbers = #tpu.dot_dimension_numbers<[1], [0], [0], [1], [0, 0, 1, 1], [], []>} : vector<2x32xf32>, vector<32x32xf32>, vector<2x32xf32> -> vector<2x32xf32>
    %cst_89 = arith.constant 5.000000e-01 : f32
    %251 = vector.broadcast %cst_89 : f32 to vector<2x1xf32>
    %252 = arith.cmpf ogt, %249, %251 : vector<2x1xf32>
    %cst_90 = arith.constant 1.000000e+00 : f32
    %253 = vector.broadcast %cst_90 : f32 to vector<2x1xf32>
    %254 = arith.maximumf %249, %253 : vector<2x1xf32>
    %255 = tpu.reciprocal %254 : vector<2x1xf32> -> vector<2x1xf32>
    %cst_91 = arith.constant 0.000000e+00 : f32
    %256 = vector.broadcast %cst_91 : f32 to vector<2x1xf32>
    %257 = arith.select %252, %255, %256 : vector<2x1xi1>, vector<2x1xf32>
    %258 = vector.broadcast %257 : vector<2x1xf32> to vector<2x32xf32>
    %259 = arith.mulf %250, %258 : vector<2x32xf32>
    %cst_92 = arith.constant 0.000000e+00 : f32
    %260 = vector.broadcast %cst_92 : f32 to vector<2x32xf32>
    %261 = vector.extract_strided_slice %209 {offsets = [0, 0], sizes = [16, 32], strides = [1, 1]} : vector<32x32xf32> to vector<16x32xf32>
    %262 = vector.extract_strided_slice %205 {offsets = [0, 0], sizes = [16, 1], strides = [1, 1]} : vector<32x1xf32> to vector<16x1xf32>
    %cst_93 = arith.constant 5.000000e-01 : f32
    %263 = vector.broadcast %cst_93 : f32 to vector<16x1xf32>
    %264 = arith.cmpf ogt, %262, %263 : vector<16x1xf32>
    %cst_94 = arith.constant -3.000000e+38 : f32
    %265 = vector.shape_cast %264 : vector<16x1xi1> to vector<16x1xi1>
    %266 = vector.broadcast %265 : vector<16x1xi1> to vector<16x32xi1>
    %267 = vector.broadcast %cst_94 : f32 to vector<16x32xf32>
    %268 = arith.select %266, %261, %267 : vector<16x32xi1>, vector<16x32xf32>
    %cst_95 = arith.constant dense<0xFF800000> : vector<32xf32>
    %269 = vector.multi_reduction <maximumf>, %268, %cst_95 [0] : vector<16x32xf32> to vector<32xf32>
    %270 = vector.shape_cast %269 : vector<32xf32> to vector<1x32xf32>
    %c0_i32_96 = arith.constant 0 : i32
    %271 = vector.broadcast %c0_i32_96 : i32 to vector<2x1xi32>
    %272 = arith.cmpi eq, %7, %271 : vector<2x1xi32>
    %273 = arith.extui %272 : vector<2x1xi1> to vector<2x1xi32>
    %274 = arith.sitofp %273 : vector<2x1xi32> to vector<2x1xf32>
    %275 = vector.shape_cast %270 : vector<1x32xf32> to vector<1x32xf32>
    %276 = vector.broadcast %275 : vector<1x32xf32> to vector<2x32xf32>
    %277 = vector.broadcast %274 : vector<2x1xf32> to vector<2x32xf32>
    %278 = arith.mulf %277, %276 : vector<2x32xf32>
    %279 = arith.addf %260, %278 : vector<2x32xf32>
    %280 = vector.extract_strided_slice %209 {offsets = [16, 0], sizes = [16, 32], strides = [1, 1]} : vector<32x32xf32> to vector<16x32xf32>
    %281 = vector.extract_strided_slice %205 {offsets = [16, 0], sizes = [16, 1], strides = [1, 1]} : vector<32x1xf32> to vector<16x1xf32>
    %cst_97 = arith.constant 5.000000e-01 : f32
    %282 = vector.broadcast %cst_97 : f32 to vector<16x1xf32>
    %283 = arith.cmpf ogt, %281, %282 : vector<16x1xf32>
    %cst_98 = arith.constant -3.000000e+38 : f32
    %284 = vector.shape_cast %283 : vector<16x1xi1> to vector<16x1xi1>
    %285 = vector.broadcast %284 : vector<16x1xi1> to vector<16x32xi1>
    %286 = vector.broadcast %cst_98 : f32 to vector<16x32xf32>
    %287 = arith.select %285, %280, %286 : vector<16x32xi1>, vector<16x32xf32>
    %cst_99 = arith.constant dense<0xFF800000> : vector<32xf32>
    %288 = vector.multi_reduction <maximumf>, %287, %cst_99 [0] : vector<16x32xf32> to vector<32xf32>
    %289 = vector.shape_cast %288 : vector<32xf32> to vector<1x32xf32>
    %c1_i32_100 = arith.constant 1 : i32
    %290 = vector.broadcast %c1_i32_100 : i32 to vector<2x1xi32>
    %291 = arith.cmpi eq, %7, %290 : vector<2x1xi32>
    %292 = arith.extui %291 : vector<2x1xi1> to vector<2x1xi32>
    %293 = arith.sitofp %292 : vector<2x1xi32> to vector<2x1xf32>
    %294 = vector.shape_cast %289 : vector<1x32xf32> to vector<1x32xf32>
    %295 = vector.broadcast %294 : vector<1x32xf32> to vector<2x32xf32>
    %296 = vector.broadcast %293 : vector<2x1xf32> to vector<2x32xf32>
    %297 = arith.mulf %296, %295 : vector<2x32xf32>
    %298 = arith.addf %279, %297 : vector<2x32xf32>
    %cst_101 = arith.constant 0.000000e+00 : f32
    %299 = vector.shape_cast %252 : vector<2x1xi1> to vector<2x1xi1>
    %300 = vector.broadcast %299 : vector<2x1xi1> to vector<2x32xi1>
    %301 = vector.broadcast %cst_101 : f32 to vector<2x32xf32>
    %302 = arith.select %300, %298, %301 : vector<2x32xi1>, vector<2x32xf32>
    %303 = arith.addf %158, %259 : vector<2x32xf32>
    %304 = arith.addf %159, %302 : vector<2x32xf32>
    %c0_102 = arith.constant 0 : index
    %c0_103 = arith.constant 0 : index
    %305 = vector.load %arg10[%c0_102, %c0_103] : memref<32x32xf32, #tpu.memory_space<vmem>>, vector<32x32xf32>
    %cst_104 = arith.constant dense<0.000000e+00> : vector<32x32xf32>
    %306 = tpu.matmul %209, %305, %cst_104 {dimension_numbers = #tpu.dot_dimension_numbers<[1], [0], [0], [1], [0, 0, 1, 1], [], []>} : vector<32x32xf32>, vector<32x32xf32>, vector<32x32xf32> -> vector<32x32xf32>
    %cst_105 = arith.constant dense<0.000000e+00> : vector<32x32xf32>
    %307 = tpu.matmul %248, %306, %cst_105 {dimension_numbers = #tpu.dot_dimension_numbers<[1], [0], [0], [1], [0, 0, 1, 1], [], []>} : vector<32x32xf32>, vector<32x32xf32>, vector<32x32xf32> -> vector<32x32xf32>
    %c0_106 = arith.constant 0 : index
    %c0_107 = arith.constant 0 : index
    %308 = vector.load %arg11[%c0_106, %c0_107] : memref<1x32xf32, #tpu.memory_space<vmem>>, vector<1x32xf32>
    %309 = vector.broadcast %308 : vector<1x32xf32> to vector<32x32xf32>
    %310 = arith.addf %307, %309 : vector<32x32xf32>
    %cst_108 = arith.constant 0.000000e+00 : f32
    %311 = vector.broadcast %cst_108 : f32 to vector<32x32xf32>
    %312 = arith.maximumf %310, %311 : vector<32x32xf32>
    %c0_109 = arith.constant 0 : index
    %c0_110 = arith.constant 0 : index
    %313 = vector.load %arg12[%c0_109, %c0_110] : memref<32x1xf32, #tpu.memory_space<vmem>>, vector<32x1xf32>
    %cst_111 = arith.constant dense<0.000000e+00> : vector<32x1xf32>
    %314 = tpu.matmul %312, %313, %cst_111 {dimension_numbers = #tpu.dot_dimension_numbers<[1], [0], [0], [1], [0, 0, 1, 1], [], []>} : vector<32x32xf32>, vector<32x1xf32>, vector<32x1xf32> -> vector<32x1xf32>
    %cst_112 = arith.constant dense<0.000000e+00> : vector<32x1xf32>
    %315 = tpu.matmul %248, %314, %cst_112 {dimension_numbers = #tpu.dot_dimension_numbers<[1], [0], [0], [1], [0, 0, 1, 1], [], []>} : vector<32x32xf32>, vector<32x1xf32>, vector<32x1xf32> -> vector<32x1xf32>
    %c0_113 = arith.constant 0 : index
    %c0_114 = arith.constant 0 : index
    %316 = memref.load %arg21[%c0_113, %c0_114] : memref<1x1xf32, #tpu.memory_space<smem>>
    %317 = vector.broadcast %316 : f32 to vector<32x1xf32>
    %318 = arith.addf %315, %317 : vector<32x1xf32>
    %319 = math.tanh %318 : vector<32x1xf32>
    %320 = vector.shape_cast %319 : vector<32x1xf32> to vector<32x1xf32>
    %321 = vector.broadcast %320 : vector<32x1xf32> to vector<32x32xf32>
    %322 = vector.shape_cast %319 : vector<32x1xf32> to vector<32x1xf32>
    %323 = vector.broadcast %322 : vector<32x1xf32> to vector<32x32xf32>
    %324 = arith.mulf %4, %323 : vector<32x32xf32>
    %cst_115 = arith.constant dense<0.000000e+00> : vector<32xf32>
    %325 = vector.multi_reduction <add>, %324, %cst_115 [0] : vector<32x32xf32> to vector<32xf32>
    %326 = vector.shape_cast %325 : vector<32xf32> to vector<1x32xf32>
    %327 = vector.shape_cast %326 : vector<1x32xf32> to vector<1x32xf32>
    %328 = vector.broadcast %327 : vector<1x32xf32> to vector<32x32xf32>
    %329 = arith.cmpf ogt, %328, %321 : vector<32x32xf32>
    %cst_116 = arith.constant 1.000000e+00 : f32
    %cst_117 = arith.constant 0.000000e+00 : f32
    %330 = vector.broadcast %cst_116 : f32 to vector<32x32xf32>
    %331 = vector.broadcast %cst_117 : f32 to vector<32x32xf32>
    %332 = arith.select %329, %330, %331 : vector<32x32xi1>, vector<32x32xf32>
    %333 = arith.cmpf oeq, %328, %321 : vector<32x32xf32>
    %334 = arith.cmpi slt, %1, %0 : vector<32x32xi32>
    %335 = arith.andi %333, %334 : vector<32x32xi1>
    %cst_118 = arith.constant 1.000000e+00 : f32
    %cst_119 = arith.constant 0.000000e+00 : f32
    %336 = vector.broadcast %cst_118 : f32 to vector<32x32xf32>
    %337 = vector.broadcast %cst_119 : f32 to vector<32x32xf32>
    %338 = arith.select %335, %336, %337 : vector<32x32xi1>, vector<32x32xf32>
    %339 = arith.addf %332, %338 : vector<32x32xf32>
    %340 = arith.mulf %8, %339 : vector<32x32xf32>
    %cst_120 = arith.constant dense<0.000000e+00> : vector<32x1xf32>
    %341 = tpu.matmul %340, %205, %cst_120 {dimension_numbers = #tpu.dot_dimension_numbers<[1], [0], [0], [1], [0, 0, 1, 1], [], []>} : vector<32x32xf32>, vector<32x1xf32>, vector<32x1xf32> -> vector<32x1xf32>
    %cst_121 = arith.constant dense<0.000000e+00> : vector<32x1xf32>
    %342 = tpu.matmul %8, %205, %cst_121 {dimension_numbers = #tpu.dot_dimension_numbers<[1], [0], [0], [1], [0, 0, 1, 1], [], []>} : vector<32x32xf32>, vector<32x1xf32>, vector<32x1xf32> -> vector<32x1xf32>
    %cst_122 = arith.constant 5.000000e-01 : f32
    %343 = vector.broadcast %cst_122 : f32 to vector<32x1xf32>
    %344 = arith.mulf %343, %342 : vector<32x1xf32>
    %345 = math.floor %344 : vector<32x1xf32>
    %346 = arith.cmpf olt, %341, %345 : vector<32x1xf32>
    %cst_123 = arith.constant 1.000000e+00 : f32
    %cst_124 = arith.constant 0.000000e+00 : f32
    %347 = vector.broadcast %cst_123 : f32 to vector<32x1xf32>
    %348 = vector.broadcast %cst_124 : f32 to vector<32x1xf32>
    %349 = arith.select %346, %347, %348 : vector<32x1xi1>, vector<32x1xf32>
    %350 = arith.mulf %205, %349 : vector<32x1xf32>
    %351 = vector.broadcast %319 : vector<32x1xf32> to vector<32x32xf32>
    %352 = arith.mulf %312, %351 : vector<32x32xf32>
    %353 = vector.broadcast %350 : vector<32x1xf32> to vector<32x32xf32>
    %354 = arith.mulf %352, %353 : vector<32x32xf32>
    %cst_125 = arith.constant dense<0.000000e+00> : vector<2x1xf32>
    %355 = tpu.matmul %9, %350, %cst_125 {dimension_numbers = #tpu.dot_dimension_numbers<[1], [0], [0], [1], [0, 0, 1, 1], [], []>} : vector<2x32xf32>, vector<32x1xf32>, vector<2x1xf32> -> vector<2x1xf32>
    %cst_126 = arith.constant dense<0.000000e+00> : vector<2x32xf32>
    %356 = tpu.matmul %9, %354, %cst_126 {dimension_numbers = #tpu.dot_dimension_numbers<[1], [0], [0], [1], [0, 0, 1, 1], [], []>} : vector<2x32xf32>, vector<32x32xf32>, vector<2x32xf32> -> vector<2x32xf32>
    %cst_127 = arith.constant 5.000000e-01 : f32
    %357 = vector.broadcast %cst_127 : f32 to vector<2x1xf32>
    %358 = arith.cmpf ogt, %355, %357 : vector<2x1xf32>
    %cst_128 = arith.constant 1.000000e+00 : f32
    %359 = vector.broadcast %cst_128 : f32 to vector<2x1xf32>
    %360 = arith.maximumf %355, %359 : vector<2x1xf32>
    %361 = tpu.reciprocal %360 : vector<2x1xf32> -> vector<2x1xf32>
    %cst_129 = arith.constant 0.000000e+00 : f32
    %362 = vector.broadcast %cst_129 : f32 to vector<2x1xf32>
    %363 = arith.select %358, %361, %362 : vector<2x1xi1>, vector<2x1xf32>
    %364 = vector.broadcast %363 : vector<2x1xf32> to vector<2x32xf32>
    %365 = arith.mulf %356, %364 : vector<2x32xf32>
    %cst_130 = arith.constant 0.000000e+00 : f32
    %366 = vector.broadcast %cst_130 : f32 to vector<2x32xf32>
    %367 = vector.extract_strided_slice %354 {offsets = [0, 0], sizes = [16, 32], strides = [1, 1]} : vector<32x32xf32> to vector<16x32xf32>
    %368 = vector.extract_strided_slice %350 {offsets = [0, 0], sizes = [16, 1], strides = [1, 1]} : vector<32x1xf32> to vector<16x1xf32>
    %cst_131 = arith.constant 5.000000e-01 : f32
    %369 = vector.broadcast %cst_131 : f32 to vector<16x1xf32>
    %370 = arith.cmpf ogt, %368, %369 : vector<16x1xf32>
    %cst_132 = arith.constant -3.000000e+38 : f32
    %371 = vector.shape_cast %370 : vector<16x1xi1> to vector<16x1xi1>
    %372 = vector.broadcast %371 : vector<16x1xi1> to vector<16x32xi1>
    %373 = vector.broadcast %cst_132 : f32 to vector<16x32xf32>
    %374 = arith.select %372, %367, %373 : vector<16x32xi1>, vector<16x32xf32>
    %cst_133 = arith.constant dense<0xFF800000> : vector<32xf32>
    %375 = vector.multi_reduction <maximumf>, %374, %cst_133 [0] : vector<16x32xf32> to vector<32xf32>
    %376 = vector.shape_cast %375 : vector<32xf32> to vector<1x32xf32>
    %c0_i32_134 = arith.constant 0 : i32
    %377 = vector.broadcast %c0_i32_134 : i32 to vector<2x1xi32>
    %378 = arith.cmpi eq, %7, %377 : vector<2x1xi32>
    %379 = arith.extui %378 : vector<2x1xi1> to vector<2x1xi32>
    %380 = arith.sitofp %379 : vector<2x1xi32> to vector<2x1xf32>
    %381 = vector.shape_cast %376 : vector<1x32xf32> to vector<1x32xf32>
    %382 = vector.broadcast %381 : vector<1x32xf32> to vector<2x32xf32>
    %383 = vector.broadcast %380 : vector<2x1xf32> to vector<2x32xf32>
    %384 = arith.mulf %383, %382 : vector<2x32xf32>
    %385 = arith.addf %366, %384 : vector<2x32xf32>
    %386 = vector.extract_strided_slice %354 {offsets = [16, 0], sizes = [16, 32], strides = [1, 1]} : vector<32x32xf32> to vector<16x32xf32>
    %387 = vector.extract_strided_slice %350 {offsets = [16, 0], sizes = [16, 1], strides = [1, 1]} : vector<32x1xf32> to vector<16x1xf32>
    %cst_135 = arith.constant 5.000000e-01 : f32
    %388 = vector.broadcast %cst_135 : f32 to vector<16x1xf32>
    %389 = arith.cmpf ogt, %387, %388 : vector<16x1xf32>
    %cst_136 = arith.constant -3.000000e+38 : f32
    %390 = vector.shape_cast %389 : vector<16x1xi1> to vector<16x1xi1>
    %391 = vector.broadcast %390 : vector<16x1xi1> to vector<16x32xi1>
    %392 = vector.broadcast %cst_136 : f32 to vector<16x32xf32>
    %393 = arith.select %391, %386, %392 : vector<16x32xi1>, vector<16x32xf32>
    %cst_137 = arith.constant dense<0xFF800000> : vector<32xf32>
    %394 = vector.multi_reduction <maximumf>, %393, %cst_137 [0] : vector<16x32xf32> to vector<32xf32>
    %395 = vector.shape_cast %394 : vector<32xf32> to vector<1x32xf32>
    %c1_i32_138 = arith.constant 1 : i32
    %396 = vector.broadcast %c1_i32_138 : i32 to vector<2x1xi32>
    %397 = arith.cmpi eq, %7, %396 : vector<2x1xi32>
    %398 = arith.extui %397 : vector<2x1xi1> to vector<2x1xi32>
    %399 = arith.sitofp %398 : vector<2x1xi32> to vector<2x1xf32>
    %400 = vector.shape_cast %395 : vector<1x32xf32> to vector<1x32xf32>
    %401 = vector.broadcast %400 : vector<1x32xf32> to vector<2x32xf32>
    %402 = vector.broadcast %399 : vector<2x1xf32> to vector<2x32xf32>
    %403 = arith.mulf %402, %401 : vector<2x32xf32>
    %404 = arith.addf %385, %403 : vector<2x32xf32>
    %cst_139 = arith.constant 0.000000e+00 : f32
    %405 = vector.shape_cast %358 : vector<2x1xi1> to vector<2x1xi1>
    %406 = vector.broadcast %405 : vector<2x1xi1> to vector<2x32xi1>
    %407 = vector.broadcast %cst_139 : f32 to vector<2x32xf32>
    %408 = arith.select %406, %404, %407 : vector<2x32xi1>, vector<2x32xf32>
    %409 = arith.addf %303, %365 : vector<2x32xf32>
    %410 = arith.addf %304, %408 : vector<2x32xf32>
    %c0_140 = arith.constant 0 : index
    %c0_141 = arith.constant 0 : index
    %411 = vector.load %arg13[%c0_140, %c0_141] : memref<64x32xf32, #tpu.memory_space<vmem>>, vector<32x32xf32>
    %cst_142 = arith.constant dense<0.000000e+00> : vector<2x32xf32>
    %412 = tpu.matmul %409, %411, %cst_142 {dimension_numbers = #tpu.dot_dimension_numbers<[1], [0], [0], [1], [0, 0, 1, 1], [], []>} : vector<2x32xf32>, vector<32x32xf32>, vector<2x32xf32> -> vector<2x32xf32>
    %c32 = arith.constant 32 : index
    %c0_143 = arith.constant 0 : index
    %413 = vector.load %arg13[%c32, %c0_143] : memref<64x32xf32, #tpu.memory_space<vmem>>, vector<32x32xf32>
    %cst_144 = arith.constant dense<0.000000e+00> : vector<2x32xf32>
    %414 = tpu.matmul %410, %413, %cst_144 {dimension_numbers = #tpu.dot_dimension_numbers<[1], [0], [0], [1], [0, 0, 1, 1], [], []>} : vector<2x32xf32>, vector<32x32xf32>, vector<2x32xf32> -> vector<2x32xf32>
    %415 = arith.addf %412, %414 : vector<2x32xf32>
    %c0_145 = arith.constant 0 : index
    %c0_146 = arith.constant 0 : index
    %416 = vector.load %arg14[%c0_145, %c0_146] : memref<1x32xf32, #tpu.memory_space<vmem>>, vector<1x32xf32>
    %417 = vector.broadcast %416 : vector<1x32xf32> to vector<2x32xf32>
    %418 = arith.addf %415, %417 : vector<2x32xf32>
    %cst_147 = arith.constant 0.000000e+00 : f32
    %419 = vector.broadcast %cst_147 : f32 to vector<2x32xf32>
    %420 = arith.maximumf %418, %419 : vector<2x32xf32>
    %c0_148 = arith.constant 0 : index
    %c0_149 = arith.constant 0 : index
    %421 = vector.load %arg15[%c0_148, %c0_149] : memref<32x16xf32, #tpu.memory_space<vmem>>, vector<32x16xf32>
    %cst_150 = arith.constant dense<0.000000e+00> : vector<2x16xf32>
    %422 = tpu.matmul %420, %421, %cst_150 {dimension_numbers = #tpu.dot_dimension_numbers<[1], [0], [0], [1], [0, 0, 1, 1], [], []>} : vector<2x32xf32>, vector<32x16xf32>, vector<2x16xf32> -> vector<2x16xf32>
    %c0_151 = arith.constant 0 : index
    %c0_152 = arith.constant 0 : index
    %423 = vector.load %arg16[%c0_151, %c0_152] : memref<1x16xf32, #tpu.memory_space<vmem>>, vector<1x16xf32>
    %424 = vector.broadcast %423 : vector<1x16xf32> to vector<2x16xf32>
    %425 = arith.addf %422, %424 : vector<2x16xf32>
    %cst_153 = arith.constant 0.000000e+00 : f32
    %426 = vector.broadcast %cst_153 : f32 to vector<2x16xf32>
    %427 = arith.maximumf %425, %426 : vector<2x16xf32>
    %c0_154 = arith.constant 0 : index
    %c0_155 = arith.constant 0 : index
    %428 = vector.load %arg17[%c0_154, %c0_155] : memref<16x2xf32, #tpu.memory_space<vmem>>, vector<16x2xf32>
    %cst_156 = arith.constant dense<0.000000e+00> : vector<2x2xf32>
    %429 = tpu.matmul %427, %428, %cst_156 {dimension_numbers = #tpu.dot_dimension_numbers<[1], [0], [0], [1], [0, 0, 1, 1], [], []>} : vector<2x16xf32>, vector<16x2xf32>, vector<2x2xf32> -> vector<2x2xf32>
    %c0_157 = arith.constant 0 : index
    %c0_158 = arith.constant 0 : index
    %430 = vector.load %arg18[%c0_157, %c0_158] : memref<1x2xf32, #tpu.memory_space<vmem>>, vector<1x2xf32>
    %431 = vector.broadcast %430 : vector<1x2xf32> to vector<2x2xf32>
    %432 = arith.addf %429, %431 : vector<2x2xf32>
    %c0_159 = arith.constant 0 : index
    %c0_160 = arith.constant 0 : index
    %433 = vector.load %arg22[%c0_159, %c0_160] : memref<2x2xf32, #tpu.memory_space<vmem>>, vector<2x2xf32>
    tpu.vector_store %arg22[%c0_159, %c0_160], %432 {strides = array<i32>} : memref<2x2xf32, #tpu.memory_space<vmem>>, vector<2x2xf32>,
    return
  }
}

</mosaic_0001>

<llo_original>
// kernel: forward.1
$region0: #{forward.1}
  #allocation0 [shape = 'u32[]', space=smem, size = 0x4, offset = 0x4, fixed_abs, tag = 'smem constant byte address 0x4 - core index']
  #allocation1 [shape = 'u32[144,128]{1,0:T(1,128)}', space=vmem, size = 0x12000, scoped, tag = 'internal scratch']
  #allocation2 [shape = 'f32[1,1]{1,0:T(1,128)S(6)}', space=smem, size = 0x200, scoped, tag = 'scoped memory for forward.1']
  #allocation3 [shape = 'f32[1,1]{1,0:T(1,128)S(6)}', space=smem, size = 0x200, scoped, tag = 'scoped memory for forward.1']
  #allocation4 [shape = 'f32[1,1]{1,0:T(1,128)S(6)}', space=smem, size = 0x200, scoped, tag = 'scoped memory for forward.1']
  %s0 = inlined_call_operand.vmem [shape: f32[32,32], index: 0, kind: input, shape index: {}]
  %s1 = inlined_call_operand.vmem [shape: f32[32,8], index: 1, kind: input, shape index: {}]
  %s2 = inlined_call_operand.vmem [shape: f32[32,32], index: 2, kind: input, shape index: {}]
  %s3 = inlined_call_operand.vmem [shape: f32[2,32], index: 3, kind: input, shape index: {}]
  %s4 = inlined_call_operand.vmem [shape: f32[8,32], index: 4, kind: input, shape index: {}]
  %s5 = inlined_call_operand.vmem [shape: f32[1,32], index: 5, kind: input, shape index: {}]
  %s6 = inlined_call_operand.vmem [shape: f32[32,1], index: 6, kind: input, shape index: {}]
  %s7 = inlined_call_operand.vmem [shape: f32[32,32], index: 7, kind: input, shape index: {}]
  %s8 = inlined_call_operand.vmem [shape: f32[1,32], index: 8, kind: input, shape index: {}]
  %s9 = inlined_call_operand.vmem [shape: f32[32,1], index: 9, kind: input, shape index: {}]
  %s10 = inlined_call_operand.vmem [shape: f32[32,32], index: 10, kind: input, shape index: {}]
  %s11 = inlined_call_operand.vmem [shape: f32[1,32], index: 11, kind: input, shape index: {}]
  %s12 = inlined_call_operand.vmem [shape: f32[32,1], index: 12, kind: input, shape index: {}]
  %s13 = inlined_call_operand.vmem [shape: f32[64,32], index: 13, kind: input, shape index: {}]
  %s14 = inlined_call_operand.vmem [shape: f32[1,32], index: 14, kind: input, shape index: {}]
  %s15 = inlined_call_operand.vmem [shape: f32[32,16], index: 15, kind: input, shape index: {}]
  %s16 = inlined_call_operand.vmem [shape: f32[1,16], index: 16, kind: input, shape index: {}]
  %s17 = inlined_call_operand.vmem [shape: f32[16,2], index: 17, kind: input, shape index: {}]
  %s18 = inlined_call_operand.vmem [shape: f32[1,2], index: 18, kind: input, shape index: {}]
  %s19 = inlined_call_operand.<no memory space> [shape: f32[1,1], index: 19, kind: input, shape index: {}]
  %s20 = inlined_call_operand.<no memory space> [shape: f32[1,1], index: 20, kind: input, shape index: {}]
  %s21 = inlined_call_operand.<no memory space> [shape: f32[1,1], index: 21, kind: input, shape index: {}]
  %s22 = inlined_call_operand.hbm [shape: f32[2,2], index: 22, kind: output, shape index: {}]
  %s23 = sld [smem:[#allocation0]]
  $region98: #{forward.1} parent=0
    _
  %s25 = ssub.s32 1, %s23
  %s26 = scalar_select 0, %s25, %s23
  %27 = sst [smem:[#allocation2]] %s19
  %28 = sst [smem:[#allocation3]] %s20
  %29 = sst [smem:[#allocation4]] %s21
  $region1: #{forward.1} parent=0
    #allocation5 [shape = 'u8[1024]{0}', space=vmem, size = 0x400, scoped, tag = 'output window, operand 0, single buffered']
    #allocation6 [shape = 's32[1]{0}', space=sflag, size = 0x4, scoped, tag = 'scoped memory for forward.1']
    %30 = vsyncpa [#allocation6], 0
    // Predicated region
    $region2: #{forward.1} parent=1 // pred_check
      _
    $region3: #{forward.1} parent=1 // pred_check_branch
      %32 = sbr.rel (0) target = $region5
    $region4: #{forward.1} parent=1 // pred_region
      _
    $region5: #{forward.1} parent=1 // pred_fallthru
      _
    // Predicated region
    $region6: #{forward.1} parent=1 // pred_check
      _
    $region7: #{forward.1} parent=1 // pred_check_branch
      %34 = sbr.rel (0) target = $region9
    $region8: #{forward.1} parent=1 // pred_region
      _
    $region9: #{forward.1} parent=1 // pred_fallthru
      _
    // Predicated region
    $region10: #{forward.1} parent=1 // pred_check
      _
    $region11: #{forward.1} parent=1 // pred_check_branch
      %36 = sbr.rel (0) target = $region13
    $region12: #{forward.1} parent=1 // pred_region
      _
    $region13: #{forward.1} parent=1 // pred_fallthru
      _
    // Predicated region
    $region14: #{forward.1} parent=1 // pred_check
      _
    $region15: #{forward.1} parent=1 // pred_check_branch
      %38 = sbr.rel (0) target = $region17
    $region16: #{forward.1} parent=1 // pred_region
      _
    $region17: #{forward.1} parent=1 // pred_fallthru
      _
    // Predicated region
    $region18: #{forward.1} parent=1 // pred_check
      _
    $region19: #{forward.1} parent=1 // pred_check_branch
      %40 = sbr.rel (0) target = $region21
    $region20: #{forward.1} parent=1 // pred_region
      _
    $region21: #{forward.1} parent=1 // pred_fallthru
      _
    // Predicated region
    $region22: #{forward.1} parent=1 // pred_check
      _
    $region23: #{forward.1} parent=1 // pred_check_branch
      %42 = sbr.rel (0) target = $region25
    $region24: #{forward.1} parent=1 // pred_region
      _
    $region25: #{forward.1} parent=1 // pred_fallthru
      _
    // Predicated region
    $region26: #{forward.1} parent=1 // pred_check
      _
    $region27: #{forward.1} parent=1 // pred_check_branch
      %44 = sbr.rel (0) target = $region29
    $region28: #{forward.1} parent=1 // pred_region
      _
    $region29: #{forward.1} parent=1 // pred_fallthru
      _
    // Predicated region
    $region30: #{forward.1} parent=1 // pred_check
      _
    $region31: #{forward.1} parent=1 // pred_check_branch
      %46 = sbr.rel (0) target = $region33
    $region32: #{forward.1} parent=1 // pred_region
      _
    $region33: #{forward.1} parent=1 // pred_fallthru
      _
    // Predicated region
    $region34: #{forward.1} parent=1 // pred_check
      _
    $region35: #{forward.1} parent=1 // pred_check_branch
      %48 = sbr.rel (0) target = $region37
    $region36: #{forward.1} parent=1 // pred_region
      _
    $region37: #{forward.1} parent=1 // pred_fallthru
      _
    // Predicated region
    $region38: #{forward.1} parent=1 // pred_check
      _
    $region39: #{forward.1} parent=1 // pred_check_branch
      %50 = sbr.rel (0) target = $region41
    $region40: #{forward.1} parent=1 // pred_region
      _
    $region41: #{forward.1} parent=1 // pred_fallthru
      _
    // Predicated region
    $region42: #{forward.1} parent=1 // pred_check
      _
    $region43: #{forward.1} parent=1 // pred_check_branch
      %52 = sbr.rel (0) target = $region45
    $region44: #{forward.1} parent=1 // pred_region
      _
    $region45: #{forward.1} parent=1 // pred_fallthru
      _
    // Predicated region
    $region46: #{forward.1} parent=1 // pred_check
      _
    $region47: #{forward.1} parent=1 // pred_check_branch
      %54 = sbr.rel (0) target = $region49
    $region48: #{forward.1} parent=1 // pred_region
      _
    $region49: #{forward.1} parent=1 // pred_fallthru
      _
    // Predicated region
    $region50: #{forward.1} parent=1 // pred_check
      _
    $region51: #{forward.1} parent=1 // pred_check_branch
      %56 = sbr.rel (0) target = $region53
    $region52: #{forward.1} parent=1 // pred_region
      _
    $region53: #{forward.1} parent=1 // pred_fallthru
      _
    // Predicated region
    $region54: #{forward.1} parent=1 // pred_check
      _
    $region55: #{forward.1} parent=1 // pred_check_branch
      %58 = sbr.rel (0) target = $region57
    $region56: #{forward.1} parent=1 // pred_region
      _
    $region57: #{forward.1} parent=1 // pred_fallthru
      _
    // Predicated region
    $region58: #{forward.1} parent=1 // pred_check
      _
    $region59: #{forward.1} parent=1 // pred_check_branch
      %60 = sbr.rel (0) target = $region61
    $region60: #{forward.1} parent=1 // pred_region
      _
    $region61: #{forward.1} parent=1 // pred_fallthru
      _
    // Predicated region
    $region62: #{forward.1} parent=1 // pred_check
      _
    $region63: #{forward.1} parent=1 // pred_check_branch
      %62 = sbr.rel (0) target = $region65
    $region64: #{forward.1} parent=1 // pred_region
      _
    $region65: #{forward.1} parent=1 // pred_fallthru
      _
    // Predicated region
    $region66: #{forward.1} parent=1 // pred_check
      _
    $region67: #{forward.1} parent=1 // pred_check_branch
      %64 = sbr.rel (0) target = $region69
    $region68: #{forward.1} parent=1 // pred_region
      _
    $region69: #{forward.1} parent=1 // pred_fallthru
      _
    // Predicated region
    $region70: #{forward.1} parent=1 // pred_check
      _
    $region71: #{forward.1} parent=1 // pred_check_branch
      %66 = sbr.rel (0) target = $region73
    $region72: #{forward.1} parent=1 // pred_region
      _
    $region73: #{forward.1} parent=1 // pred_fallthru
      _
    // Predicated region
    $region74: #{forward.1} parent=1 // pred_check
      _
    $region75: #{forward.1} parent=1 // pred_check_branch
      %68 = sbr.rel (0) target = $region77
    $region76: #{forward.1} parent=1 // pred_region
      _
    $region77: #{forward.1} parent=1 // pred_fallthru
      _
    // Predicated region
    $region78: #{forward.1} parent=1 // pred_check
      _
    $region79: #{forward.1} parent=1 // pred_check_branch
      %70 = sbr.rel (0) target = $region81
    $region80: #{forward.1} parent=1 // pred_region
      _
    $region81: #{forward.1} parent=1 // pred_fallthru
      _
    // Predicated region
    $region82: #{forward.1} parent=1 // pred_check
      _
    $region83: #{forward.1} parent=1 // pred_check_branch
      %72 = sbr.rel (0) target = $region85
    $region84: #{forward.1} parent=1 // pred_region
      _
    $region85: #{forward.1} parent=1 // pred_fallthru
      _
    // Predicated region
    $region86: #{forward.1} parent=1 // pred_check
      _
    $region87: #{forward.1} parent=1 // pred_check_branch
      %74 = sbr.rel (0) target = $region89
    $region88: #{forward.1} parent=1 // pred_region
      _
    $region89: #{forward.1} parent=1 // pred_fallthru
      _
    %v75 = vlaneseq
    %v76 = vshrl.u32 %v75, 7
    %v77 = vadd.s32 %v76, 8
    %v78 = vadd.s32 %v76, 16
    %v79 = vadd.s32 %v76, 24
    %v80 = vlaneseq
    %v81 = vand.u32 %v80, 127
    %vm82 = vcmp.eq.s32.totalorder %v76, %v81
    %vm83 = vcmp.eq.s32.totalorder %v77, %v81
    %vm84 = vcmp.eq.s32.totalorder %v78, %v81
    %vm85 = vcmp.eq.s32.totalorder %v79, %v81
    %v86 = vsel %vm82, 1, 0
    %v87 = vsel %vm83, 1, 0
    %v88 = vsel %vm84, 1, 0
    %v89 = vsel %vm85, 1, 0
    %v90 = vcvt.s32.f32 %v86
    %v91 = vcvt.s32.f32 %v87
    %v92 = vcvt.s32.f32 %v88
    %v93 = vcvt.s32.f32 %v89
    %v94 = vsub.f32 1.0, %v90
    %v95 = vsub.f32 1.0, %v91
    %v96 = vsub.f32 1.0, %v92
    %v97 = vsub.f32 1.0, %v93
    %v98 = vld [vmem:[%s2] sm:$0xff]
    %v99 = vld [vmem:[%s2 + $0x8] sm:$0xff]
    %v100 = vld [vmem:[%s2 + $0x10] sm:$0xff]
    %v101 = vld [vmem:[%s2 + $0x18] sm:$0xff]
    %v102 = vld [vmem:[%s3] sm:$0x3]
    %v103 = vld [vmem:[%s0] sm:$0xff]
    %v104 = vld [vmem:[%s0 + $0x8] sm:$0xff]
    %v105 = vld [vmem:[%s0 + $0x10] sm:$0xff]
    %v106 = vld [vmem:[%s0 + $0x18] sm:$0xff]
    %v107 = vld [vmem:[%s1] sm:$0xff]
    %v108 = vld [vmem:[%s1 + $0x8] sm:$0xff]
    %v109 = vld [vmem:[%s1 + $0x10] sm:$0xff]
    %v110 = vld [vmem:[%s1 + $0x18] sm:$0xff]
    %v111 = vld [vmem:[%s4] sm:$0xff]
    %vm112 = vcmask 64512
    %v114 = vsel %vm112, %v107, 0
    %v117 = vsel %vm112, %v108, 0
    %v120 = vsel %vm112, %v109, 0
    %v123 = vsel %vm112, %v110, 0
    %125 = vmatprep.subr.mxu0 0.0
    %126 = vmatpush1.msra.mxu0 %v111
    %127 = vmatprep.subr.mxu0 0.0
    %128 = vmatpush1.msra.mxu0 0.0
    %129 = vmatprep.subr.mxu0 0.0
    %130 = vmatpush1.msra.mxu0 0.0
    %131 = vmatprep.subr.mxu0 0.0
    %132 = vmatpush1.msra.mxu0 0.0
    %133 = vmatprep.subr.mxu0 0.0
    %134 = vmatpush1.msra.mxu0 0.0
    %135 = vmatprep.subr.mxu0 0.0
    %136 = vmatpush1.msra.mxu0 0.0
    %137 = vmatprep.subr.mxu0 0.0
    %138 = vmatpush1.msra.mxu0 0.0
    %139 = vmatprep.subr.mxu0 0.0
    %140 = vmatpush1.msra.mxu0 0.0
    %141 = vmatprep.subr.mxu0 0.0
    %142 = vmatpush1.msra.mxu0 0.0
    %143 = vmatprep.subr.mxu0 0.0
    %144 = vmatpush1.msra.mxu0 0.0
    %145 = vmatprep.subr.mxu0 0.0
    %146 = vmatpush1.msra.mxu0 0.0
    %147 = vmatprep.subr.mxu0 0.0
    %148 = vmatpush1.msra.mxu0 0.0
    %149 = vmatprep.subr.mxu0 0.0
    %150 = vmatpush1.msra.mxu0 0.0
    %151 = vmatprep.subr.mxu0 0.0
    %152 = vmatpush1.msra.mxu0 0.0
    %153 = vmatprep.subr.mxu0 0.0
    %154 = vmatpush1.msra.mxu0 0.0
    %155 = vmatprep.subr.mxu0 0.0
    %156 = vmatpush1.msra.mxu0 0.0
    %157 = vmatprep.subr.mxu0 0.0
    %158 = vmatpush1.msra.mxu0 0.0
    %159 = vmatprep.subr.mxu0 0.0
    %160 = vmatpush1.msra.mxu0 0.0
    %161 = vmatprep.subr.mxu0 0.0
    %162 = vmatpush1.msra.mxu0 0.0
    %163 = vmatprep.subr.mxu0 0.0
    %164 = vmatpush1.msra.mxu0 0.0
    %165 = vmatprep.subr.mxu0 0.0
    %166 = vmatpush1.msra.mxu0 0.0
    %167 = vmatprep.subr.mxu0 0.0
    %168 = vmatpush1.msra.mxu0 0.0
    %169 = vmatprep.subr.mxu0 0.0
    %170 = vmatpush1.msra.mxu0 0.0
    %171 = vmatprep.subr.mxu0 0.0
    %172 = vmatpush1.msra.mxu0 0.0
    %173 = vmatprep.subr.mxu0 0.0
    %174 = vmatpush1.msra.mxu0 0.0
    %175 = vmatprep.subr.mxu0 0.0
    %176 = vmatpush1.msra.mxu0 0.0
    %177 = vmatprep.subr.mxu0 0.0
    %178 = vmatpush1.msra.mxu0 0.0
    %179 = vmatprep.subr.mxu0 0.0
    %180 = vmatpush1.msra.mxu0 0.0
    %181 = vmatprep.subr.mxu0 0.0
    %182 = vmatpush1.msra.mxu0 0.0
    %183 = vmatprep.subr.mxu0 0.0
    %184 = vmatpush1.msra.mxu0 0.0
    %185 = vmatprep.subr.mxu0 0.0
    %186 = vmatpush1.msra.mxu0 0.0
    %187 = vmatprep.subr.mxu0 0.0
    %188 = vmatpush1.msra.mxu0 0.0
    %189 = vmatprep.mubr.f32.mxu0 0.0
    %190 = vmatmul.mubr.f32.gmra.mrb[0].mxu0 %v114
    %v191 = vpop.f32.mrb[0].mxu0
    %v192 = vadd.f32 0.0, %v191
    %v193 = vpop.f32.mrb[0].mxu0
    %194 = vmatprep.mubr.f32.mxu0 0.0
    %195 = vmatmul.mubr.f32.gmra.mrb[0].mxu0 %v117
    %v196 = vpop.f32.mrb[0].mxu0
    %v197 = vadd.f32 0.0, %v196
    %v198 = vpop.f32.mrb[0].mxu0
    %199 = vmatprep.mubr.f32.mxu0 0.0
    %200 = vmatmul.mubr.f32.gmra.mrb[0].mxu0 %v120
    %v201 = vpop.f32.mrb[0].mxu0
    %v202 = vadd.f32 0.0, %v201
    %v203 = vpop.f32.mrb[0].mxu0
    %204 = vmatprep.mubr.f32.mxu0 0.0
    %205 = vmatmul.mubr.f32.gmra.mrb[0].mxu0 %v123
    %v206 = vpop.f32.mrb[0].mxu0
    %v207 = vadd.f32 0.0, %v206
    %v208 = vpop.f32.mrb[0].mxu0
    %209 = vdwg.mxu0
    %v210 = vld [vmem:[%s5] sm:$0x1]
    %v212 = vlaneseq
    %v213 = vshrl.u32 %v212, 7
    %v214 = vsub.s32 0, %v213
    %v215 = vrot.slane %v210, %v214
    %vm217 = vcmask 261120
    %v219 = vsel %vm217, %v103, 0
    %v222 = vsel %vm217, %v104, 0
    %v225 = vsel %vm217, %v105, 0
    %v228 = vsel %vm217, %v106, 0
    %230 = vmatprep.subr.mxu0 0.0
    %231 = vmatpush1.msra.mxu0 %v192
    %232 = vmatprep.subr.mxu0 0.0
    %233 = vmatpush1.msra.mxu0 %v197
    %234 = vmatprep.subr.mxu0 0.0
    %235 = vmatpush1.msra.mxu0 %v202
    %236 = vmatprep.subr.mxu0 0.0
    %237 = vmatpush1.msra.mxu0 %v207
    %238 = vmatprep.subr.mxu0 0.0
    %239 = vmatpush1.msra.mxu0 0.0
    %240 = vmatprep.subr.mxu0 0.0
    %241 = vmatpush1.msra.mxu0 0.0
    %242 = vmatprep.subr.mxu0 0.0
    %243 = vmatpush1.msra.mxu0 0.0
    %244 = vmatprep.subr.mxu0 0.0
    %245 = vmatpush1.msra.mxu0 0.0
    %246 = vmatprep.subr.mxu0 0.0
    %247 = vmatpush1.msra.mxu0 0.0
    %248 = vmatprep.subr.mxu0 0.0
    %249 = vmatpush1.msra.mxu0 0.0
    %250 = vmatprep.subr.mxu0 0.0
    %251 = vmatpush1.msra.mxu0 0.0
    %252 = vmatprep.subr.mxu0 0.0
    %253 = vmatpush1.msra.mxu0 0.0
    %254 = vmatprep.subr.mxu0 0.0
    %255 = vmatpush1.msra.mxu0 0.0
    %256 = vmatprep.subr.mxu0 0.0
    %257 = vmatpush1.msra.mxu0 0.0
    %258 = vmatprep.subr.mxu0 0.0
    %259 = vmatpush1.msra.mxu0 0.0
    %260 = vmatprep.subr.mxu0 0.0
    %261 = vmatpush1.msra.mxu0 0.0
    %262 = vmatprep.subr.mxu0 0.0
    %263 = vmatpush1.msra.mxu0 0.0
    %264 = vmatprep.subr.mxu0 0.0
    %265 = vmatpush1.msra.mxu0 0.0
    %266 = vmatprep.subr.mxu0 0.0
    %267 = vmatpush1.msra.mxu0 0.0
    %268 = vmatprep.subr.mxu0 0.0
    %269 = vmatpush1.msra.mxu0 0.0
    %270 = vmatprep.subr.mxu0 0.0
    %271 = vmatpush1.msra.mxu0 0.0
    %272 = vmatprep.subr.mxu0 0.0
    %273 = vmatpush1.msra.mxu0 0.0
    %274 = vmatprep.subr.mxu0 0.0
    %275 = vmatpush1.msra.mxu0 0.0
    %276 = vmatprep.subr.mxu0 0.0
    %277 = vmatpush1.msra.mxu0 0.0
    %278 = vmatprep.subr.mxu0 0.0
    %279 = vmatpush1.msra.mxu0 0.0
    %280 = vmatprep.subr.mxu0 0.0
    %281 = vmatpush1.msra.mxu0 0.0
    %282 = vmatprep.subr.mxu0 0.0
    %283 = vmatpush1.msra.mxu0 0.0
    %284 = vmatprep.subr.mxu0 0.0
    %285 = vmatpush1.msra.mxu0 0.0
    %286 = vmatprep.subr.mxu0 0.0
    %287 = vmatpush1.msra.mxu0 0.0
    %288 = vmatprep.subr.mxu0 0.0
    %289 = vmatpush1.msra.mxu0 0.0
    %290 = vmatprep.subr.mxu0 0.0
    %291 = vmatpush1.msra.mxu0 0.0
    %292 = vmatprep.subr.mxu0 0.0
    %293 = vmatpush1.msra.mxu0 0.0
    %294 = vmatprep.mubr.f32.mxu0 0.0
    %295 = vmatmul.mubr.f32.gmra.mrb[0].mxu0 %v219
    %v296 = vpop.f32.mrb[0].mxu0
    %v297 = vadd.f32 %v215, %v296
    %v298 = vpop.f32.mrb[0].mxu0
    %299 = vmatprep.mubr.f32.mxu0 0.0
    %300 = vmatmul.mubr.f32.gmra.mrb[0].mxu0 %v222
    %v301 = vpop.f32.mrb[0].mxu0
    %v302 = vadd.f32 %v215, %v301
    %v303 = vpop.f32.mrb[0].mxu0
    %304 = vmatprep.mubr.f32.mxu0 0.0
    %305 = vmatmul.mubr.f32.gmra.mrb[0].mxu0 %v225
    %v306 = vpop.f32.mrb[0].mxu0
    %v307 = vadd.f32 %v215, %v306
    %v308 = vpop.f32.mrb[0].mxu0
    %309 = vmatprep.mubr.f32.mxu0 0.0
    %310 = vmatmul.mubr.f32.gmra.mrb[0].mxu0 %v228
    %v311 = vpop.f32.mrb[0].mxu0
    %v312 = vadd.f32 %v215, %v311
    %v313 = vpop.f32.mrb[0].mxu0
    %314 = vdwg.mxu0
    %v315 = vmax.f32 %v297, 0.0
    %v316 = vmax.f32 %v302, 0.0
    %v317 = vmax.f32 %v307, 0.0
    %v318 = vmax.f32 %v312, 0.0
    %v319 = vld [vmem:[%s6] sm:$0xff]
    %v320 = vld [vmem:[%s6 + $0x8] sm:$0xff]
    %v321 = vld [vmem:[%s6 + $0x10] sm:$0xff]
    %v322 = vld [vmem:[%s6 + $0x18] sm:$0xff]
    %v324 = vsel %vm217, %v315, 0
    %v327 = vsel %vm217, %v316, 0
    %v330 = vsel %vm217, %v317, 0
    %v333 = vsel %vm217, %v318, 0
    %335 = vmatprep.subr.mxu0 0.0
    %336 = vmatpush1.msra.mxu0 %v319
    %337 = vmatprep.subr.mxu0 0.0
    %338 = vmatpush1.msra.mxu0 %v320
    %339 = vmatprep.subr.mxu0 0.0
    %340 = vmatpush1.msra.mxu0 %v321
    %341 = vmatprep.subr.mxu0 0.0
    %342 = vmatpush1.msra.mxu0 %v322
    %343 = vmatprep.subr.mxu0 0.0
    %344 = vmatpush1.msra.mxu0 0.0
    %345 = vmatprep.subr.mxu0 0.0
    %346 = vmatpush1.msra.mxu0 0.0
    %347 = vmatprep.subr.mxu0 0.0
    %348 = vmatpush1.msra.mxu0 0.0
    %349 = vmatprep.subr.mxu0 0.0
    %350 = vmatpush1.msra.mxu0 0.0
    %351 = vmatprep.subr.mxu0 0.0
    %352 = vmatpush1.msra.mxu0 0.0
    %353 = vmatprep.subr.mxu0 0.0
    %354 = vmatpush1.msra.mxu0 0.0
    %355 = vmatprep.subr.mxu0 0.0
    %356 = vmatpush1.msra.mxu0 0.0
    %357 = vmatprep.subr.mxu0 0.0
    %358 = vmatpush1.msra.mxu0 0.0
    %359 = vmatprep.subr.mxu0 0.0
    %360 = vmatpush1.msra.mxu0 0.0
    %361 = vmatprep.subr.mxu0 0.0
    %362 = vmatpush1.msra.mxu0 0.0
    %363 = vmatprep.subr.mxu0 0.0
    %364 = vmatpush1.msra.mxu0 0.0
    %365 = vmatprep.subr.mxu0 0.0
    %366 = vmatpush1.msra.mxu0 0.0
    %367 = vmatprep.subr.mxu0 0.0
    %368 = vmatpush1.msra.mxu0 0.0
    %369 = vmatprep.subr.mxu0 0.0
    %370 = vmatpush1.msra.mxu0 0.0
    %371 = vmatprep.subr.mxu0 0.0
    %372 = vmatpush1.msra.mxu0 0.0
    %373 = vmatprep.subr.mxu0 0.0
    %374 = vmatpush1.msra.mxu0 0.0
    %375 = vmatprep.subr.mxu0 0.0
    %376 = vmatpush1.msra.mxu0 0.0
    %377 = vmatprep.subr.mxu0 0.0
    %378 = vmatpush1.msra.mxu0 0.0
    %379 = vmatprep.subr.mxu0 0.0
    %380 = vmatpush1.msra.mxu0 0.0
    %381 = vmatprep.subr.mxu0 0.0
    %382 = vmatpush1.msra.mxu0 0.0
    %383 = vmatprep.subr.mxu0 0.0
    %384 = vmatpush1.msra.mxu0 0.0
    %385 = vmatprep.subr.mxu0 0.0
    %386 = vmatpush1.msra.mxu0 0.0
    %387 = vmatprep.subr.mxu0 0.0
    %388 = vmatpush1.msra.mxu0 0.0
    %389 = vmatprep.subr.mxu0 0.0
    %390 = vmatpush1.msra.mxu0 0.0
    %391 = vmatprep.subr.mxu0 0.0
    %392 = vmatpush1.msra.mxu0 0.0
    %393 = vmatprep.subr.mxu0 0.0
    %394 = vmatpush1.msra.mxu0 0.0
    %395 = vmatprep.subr.mxu0 0.0
    %396 = vmatpush1.msra.mxu0 0.0
    %397 = vmatprep.subr.mxu0 0.0
    %398 = vmatpush1.msra.mxu0 0.0
    %399 = vmatprep.mubr.f32.mxu0 0.0
    %400 = vmatmul.mubr.f32.gmra.mrb[0].mxu0 %v324
    %v401 = vpop.f32.mrb[0].mxu0
    %v402 = vadd.f32 0.0, %v401
    %v403 = vpop.f32.mrb[0].mxu0
    %404 = vmatprep.mubr.f32.mxu0 0.0
    %405 = vmatmul.mubr.f32.gmra.mrb[0].mxu0 %v327
    %v406 = vpop.f32.mrb[0].mxu0
    %v407 = vadd.f32 0.0, %v406
    %v408 = vpop.f32.mrb[0].mxu0
    %409 = vmatprep.mubr.f32.mxu0 0.0
    %410 = vmatmul.mubr.f32.gmra.mrb[0].mxu0 %v330
    %v411 = vpop.f32.mrb[0].mxu0
    %v412 = vadd.f32 0.0, %v411
    %v413 = vpop.f32.mrb[0].mxu0
    %414 = vmatprep.mubr.f32.mxu0 0.0
    %415 = vmatmul.mubr.f32.gmra.mrb[0].mxu0 %v333
    %v416 = vpop.f32.mrb[0].mxu0
    %v417 = vadd.f32 0.0, %v416
    %v418 = vpop.f32.mrb[0].mxu0
    %419 = vdwg.mxu0
    %s420 = sld [smem:[#allocation2]]
    %v421 = vstv %s420
    %422 = vmatprep.subr.mxu0 0.0
    %423 = vmatpush1.msra.mxu0 %v402
    %424 = vmatprep.subr.mxu0 0.0
    %425 = vmatpush1.msra.mxu0 %v407
    %426 = vmatprep.subr.mxu0 0.0
    %427 = vmatpush1.msra.mxu0 %v412
    %428 = vmatprep.subr.mxu0 0.0
    %429 = vmatpush1.msra.mxu0 %v417
    %430 = vmatprep.subr.mxu0 0.0
    %431 = vmatpush1.msra.mxu0 0.0
    %432 = vmatprep.subr.mxu0 0.0
    %433 = vmatpush1.msra.mxu0 0.0
    %434 = vmatprep.subr.mxu0 0.0
    %435 = vmatpush1.msra.mxu0 0.0
    %436 = vmatprep.subr.mxu0 0.0
    %437 = vmatpush1.msra.mxu0 0.0
    %438 = vmatprep.subr.mxu0 0.0
    %439 = vmatpush1.msra.mxu0 0.0
    %440 = vmatprep.subr.mxu0 0.0
    %441 = vmatpush1.msra.mxu0 0.0
    %442 = vmatprep.subr.mxu0 0.0
    %443 = vmatpush1.msra.mxu0 0.0
    %444 = vmatprep.subr.mxu0 0.0
    %445 = vmatpush1.msra.mxu0 0.0
    %446 = vmatprep.subr.mxu0 0.0
    %447 = vmatpush1.msra.mxu0 0.0
    %448 = vmatprep.subr.mxu0 0.0
    %449 = vmatpush1.msra.mxu0 0.0
    %450 = vmatprep.subr.mxu0 0.0
    %451 = vmatpush1.msra.mxu0 0.0
    %452 = vmatprep.subr.mxu0 0.0
    %453 = vmatpush1.msra.mxu0 0.0
    %454 = vmatprep.subr.mxu0 0.0
    %455 = vmatpush1.msra.mxu0 0.0
    %456 = vmatprep.subr.mxu0 0.0
    %457 = vmatpush1.msra.mxu0 0.0
    %458 = vmatprep.subr.mxu0 0.0
    %459 = vmatpush1.msra.mxu0 0.0
    %460 = vmatprep.subr.mxu0 0.0
    %461 = vmatpush1.msra.mxu0 0.0
    %462 = vmatprep.subr.mxu0 0.0
    %463 = vmatpush1.msra.mxu0 0.0
    %464 = vmatprep.subr.mxu0 0.0
    %465 = vmatpush1.msra.mxu0 0.0
    %466 = vmatprep.subr.mxu0 0.0
    %467 = vmatpush1.msra.mxu0 0.0
    %468 = vmatprep.subr.mxu0 0.0
    %469 = vmatpush1.msra.mxu0 0.0
    %470 = vmatprep.subr.mxu0 0.0
    %471 = vmatpush1.msra.mxu0 0.0
    %472 = vmatprep.subr.mxu0 0.0
    %473 = vmatpush1.msra.mxu0 0.0
    %474 = vmatprep.subr.mxu0 0.0
    %475 = vmatpush1.msra.mxu0 0.0
    %476 = vmatprep.subr.mxu0 0.0
    %477 = vmatpush1.msra.mxu0 0.0
    %478 = vmatprep.subr.mxu0 0.0
    %479 = vmatpush1.msra.mxu0 0.0
    %480 = vmatprep.subr.mxu0 0.0
    %481 = vmatpush1.msra.mxu0 0.0
    %482 = vmatprep.subr.mxu0 0.0
    %483 = vmatpush1.msra.mxu0 0.0
    %484 = vmatprep.subr.mxu0 0.0
    %485 = vmatpush1.msra.mxu0 0.0
    %486 = vmatprep.mubr.f32.mxu0 0.0
    %487 = vmatmul.mubr.f32.gmra.mrb[0].mxu0 %v219
    %v488 = vpop.f32.mrb[0].mxu0
    %v489 = vadd.f32 %v421, %v488
    %v490 = vpop.f32.mrb[0].mxu0
    %491 = vmatprep.mubr.f32.mxu0 0.0
    %492 = vmatmul.mubr.f32.gmra.mrb[0].mxu0 %v222
    %v493 = vpop.f32.mrb[0].mxu0
    %v494 = vadd.f32 %v421, %v493
    %v495 = vpop.f32.mrb[0].mxu0
    %496 = vmatprep.mubr.f32.mxu0 0.0
    %497 = vmatmul.mubr.f32.gmra.mrb[0].mxu0 %v225
    %v498 = vpop.f32.mrb[0].mxu0
    %v499 = vadd.f32 %v421, %v498
    %v500 = vpop.f32.mrb[0].mxu0
    %501 = vmatprep.mubr.f32.mxu0 0.0
    %502 = vmatmul.mubr.f32.gmra.mrb[0].mxu0 %v228
    %v503 = vpop.f32.mrb[0].mxu0
    %v504 = vadd.f32 %v421, %v503
    %v505 = vpop.f32.mrb[0].mxu0
    %506 = vdwg.mxu0
    %v507 = vtanh.pop %v489
    %v508 = vtanh.pop %v494
    %v509 = vtanh.pop %v499
    %v510 = vtanh.pop %v504
    %512 = vset.pattern.permute.xlu0 0
    %513 = vperm.xlu0 %512, %v507
    %v514 = vpop.permute.xlu0 %513
    %517 = vset.pattern.permute.xlu0 0
    %518 = vperm.xlu0 %517, %v508
    %v519 = vpop.permute.xlu0 %518
    %522 = vset.pattern.permute.xlu0 0
    %523 = vperm.xlu0 %522, %v509
    %v524 = vpop.permute.xlu0 %523
    %527 = vset.pattern.permute.xlu0 0
    %528 = vperm.xlu0 %527, %v510
    %v529 = vpop.permute.xlu0 %528
    %v531 = vmul.f32 %v90, %v514
    %v532 = vmul.f32 %v91, %v519
    %v533 = vmul.f32 %v92, %v524
    %v534 = vmul.f32 %v93, %v529
    %v535 = vsel %vm217, %v531, 0.0
    %v536 = vsel %vm217, %v532, 0.0
    %v537 = vadd.f32 %v535, %v536
    %v538 = vsel %vm217, %v533, 0.0
    %v539 = vadd.f32 %v537, %v538
    %v540 = vsel %vm217, %v534, 0.0
    %v541 = vadd.f32 %v539, %v540
    %v542 = vrot.slane %v541, 4
    %v543 = vadd.f32 %v541, %v542
    %v544 = vrot.slane %v543, 2
    %v545 = vadd.f32 %v543, %v544
    %v546 = vrot.slane %v545, 1
    %v547 = vadd.f32 %v545, %v546
    %vm548 = vcmp.gt.f32.partialorder %v547, %v514
    %vm549 = vcmp.gt.f32.partialorder %v547, %v519
    %vm550 = vcmp.gt.f32.partialorder %v547, %v524
    %vm551 = vcmp.gt.f32.partialorder %v547, %v529
    %v552 = vsel %vm548, 1.0, 0.0
    %v553 = vsel %vm549, 1.0, 0.0
    %v554 = vsel %vm550, 1.0, 0.0
    %v555 = vsel %vm551, 1.0, 0.0
    %vm556 = vcmp.eq.f32.partialorder %v547, %v514
    %vm557 = vcmp.eq.f32.partialorder %v547, %v519
    %vm558 = vcmp.eq.f32.partialorder %v547, %v524
    %vm559 = vcmp.eq.f32.partialorder %v547, %v529
    %vm560 = vcmp.lt.s32.totalorder %v81, %v76
    %vm561 = vcmp.lt.s32.totalorder %v81, %v77
    %vm562 = vcmp.lt.s32.totalorder %v81, %v78
    %vm563 = vcmp.lt.s32.totalorder %v81, %v79
    %vm564 = vmand %vm556, %vm560
    %vm565 = vmand %vm557, %vm561
    %vm566 = vmand %vm558, %vm562
    %vm567 = vmand %vm559, %vm563
    %v568 = vsel %vm564, 1.0, 0.0
    %v569 = vsel %vm565, 1.0, 0.0
    %v570 = vsel %vm566, 1.0, 0.0
    %v571 = vsel %vm567, 1.0, 0.0
    %v572 = vadd.f32 %v552, %v568
    %v573 = vadd.f32 %v553, %v569
    %v574 = vadd.f32 %v554, %v570
    %v575 = vadd.f32 %v555, %v571
    %v576 = vmul.f32 %v98, %v572
    %v577 = vmul.f32 %v99, %v573
    %v578 = vmul.f32 %v100, %v574
    %v579 = vmul.f32 %v101, %v575
    %v581 = vsel %vm217, %v576, 0
    %v584 = vsel %vm217, %v577, 0
    %v587 = vsel %vm217, %v578, 0
    %v590 = vsel %vm217, %v579, 0
    %592 = vmatprep.subr.mxu0 0.0
    %593 = vmatpush1.msra.mxu0 1.0
    %594 = vmatprep.subr.mxu0 0.0
    %595 = vmatpush1.msra.mxu0 1.0
    %596 = vmatprep.subr.mxu0 0.0
    %597 = vmatpush1.msra.mxu0 1.0
    %598 = vmatprep.subr.mxu0 0.0
    %599 = vmatpush1.msra.mxu0 1.0
    %600 = vmatprep.subr.mxu0 0.0
    %601 = vmatpush1.msra.mxu0 0.0
    %602 = vmatprep.subr.mxu0 0.0
    %603 = vmatpush1.msra.mxu0 0.0
    %604 = vmatprep.subr.mxu0 0.0
    %605 = vmatpush1.msra.mxu0 0.0
    %606 = vmatprep.subr.mxu0 0.0
    %607 = vmatpush1.msra.mxu0 0.0
    %608 = vmatprep.subr.mxu0 0.0
    %609 = vmatpush1.msra.mxu0 0.0
    %610 = vmatprep.subr.mxu0 0.0
    %611 = vmatpush1.msra.mxu0 0.0
    %612 = vmatprep.subr.mxu0 0.0
    %613 = vmatpush1.msra.mxu0 0.0
    %614 = vmatprep.subr.mxu0 0.0
    %615 = vmatpush1.msra.mxu0 0.0
    %616 = vmatprep.subr.mxu0 0.0
    %617 = vmatpush1.msra.mxu0 0.0
    %618 = vmatprep.subr.mxu0 0.0
    %619 = vmatpush1.msra.mxu0 0.0
    %620 = vmatprep.subr.mxu0 0.0
    %621 = vmatpush1.msra.mxu0 0.0
    %622 = vmatprep.subr.mxu0 0.0
    %623 = vmatpush1.msra.mxu0 0.0
    %624 = vmatprep.subr.mxu0 0.0
    %625 = vmatpush1.msra.mxu0 0.0
    %626 = vmatprep.subr.mxu0 0.0
    %627 = vmatpush1.msra.mxu0 0.0
    %628 = vmatprep.subr.mxu0 0.0
    %629 = vmatpush1.msra.mxu0 0.0
    %630 = vmatprep.subr.mxu0 0.0
    %631 = vmatpush1.msra.mxu0 0.0
    %632 = vmatprep.subr.mxu0 0.0
    %633 = vmatpush1.msra.mxu0 0.0
    %634 = vmatprep.subr.mxu0 0.0
    %635 = vmatpush1.msra.mxu0 0.0
    %636 = vmatprep.subr.mxu0 0.0
    %637 = vmatpush1.msra.mxu0 0.0
    %638 = vmatprep.subr.mxu0 0.0
    %639 = vmatpush1.msra.mxu0 0.0
    %640 = vmatprep.subr.mxu0 0.0
    %641 = vmatpush1.msra.mxu0 0.0
    %642 = vmatprep.subr.mxu0 0.0
    %643 = vmatpush1.msra.mxu0 0.0
    %644 = vmatprep.subr.mxu0 0.0
    %645 = vmatpush1.msra.mxu0 0.0
    %646 = vmatprep.subr.mxu0 0.0
    %647 = vmatpush1.msra.mxu0 0.0
    %648 = vmatprep.subr.mxu0 0.0
    %649 = vmatpush1.msra.mxu0 0.0
    %650 = vmatprep.subr.mxu0 0.0
    %651 = vmatpush1.msra.mxu0 0.0
    %652 = vmatprep.subr.mxu0 0.0
    %653 = vmatpush1.msra.mxu0 0.0
    %654 = vmatprep.subr.mxu0 0.0
    %655 = vmatpush1.msra.mxu0 0.0
    %656 = vmatprep.mubr.f32.mxu0 0.0
    %657 = vmatmul.mubr.f32.gmra.mrb[0].mxu0 %v581
    %v658 = vpop.f32.mrb[0].mxu0
    %v659 = vadd.f32 0.0, %v658
    %v660 = vpop.f32.mrb[0].mxu0
    %661 = vmatprep.mubr.f32.mxu0 0.0
    %662 = vmatmul.mubr.f32.gmra.mrb[0].mxu0 %v584
    %v663 = vpop.f32.mrb[0].mxu0
    %v664 = vadd.f32 0.0, %v663
    %v665 = vpop.f32.mrb[0].mxu0
    %666 = vmatprep.mubr.f32.mxu0 0.0
    %667 = vmatmul.mubr.f32.gmra.mrb[0].mxu0 %v587
    %v668 = vpop.f32.mrb[0].mxu0
    %v669 = vadd.f32 0.0, %v668
    %v670 = vpop.f32.mrb[0].mxu0
    %671 = vmatprep.mubr.f32.mxu0 0.0
    %672 = vmatmul.mubr.f32.gmra.mrb[0].mxu0 %v590
    %v673 = vpop.f32.mrb[0].mxu0
    %v674 = vadd.f32 0.0, %v673
    %v675 = vpop.f32.mrb[0].mxu0
    %676 = vdwg.mxu0
    %v678 = vsel %vm217, %v98, 0
    %v681 = vsel %vm217, %v99, 0
    %v684 = vsel %vm217, %v100, 0
    %v687 = vsel %vm217, %v101, 0
    %689 = vmatprep.subr.mxu0 0.0
    %690 = vmatpush1.msra.mxu0 1.0
    %691 = vmatprep.subr.mxu0 0.0
    %692 = vmatpush1.msra.mxu0 1.0
    %693 = vmatprep.subr.mxu0 0.0
    %694 = vmatpush1.msra.mxu0 1.0
    %695 = vmatprep.subr.mxu0 0.0
    %696 = vmatpush1.msra.mxu0 1.0
    %697 = vmatprep.subr.mxu0 0.0
    %698 = vmatpush1.msra.mxu0 0.0
    %699 = vmatprep.subr.mxu0 0.0
    %700 = vmatpush1.msra.mxu0 0.0
    %701 = vmatprep.subr.mxu0 0.0
    %702 = vmatpush1.msra.mxu0 0.0
    %703 = vmatprep.subr.mxu0 0.0
    %704 = vmatpush1.msra.mxu0 0.0
    %705 = vmatprep.subr.mxu0 0.0
    %706 = vmatpush1.msra.mxu0 0.0
    %707 = vmatprep.subr.mxu0 0.0
    %708 = vmatpush1.msra.mxu0 0.0
    %709 = vmatprep.subr.mxu0 0.0
    %710 = vmatpush1.msra.mxu0 0.0
    %711 = vmatprep.subr.mxu0 0.0
    %712 = vmatpush1.msra.mxu0 0.0
    %713 = vmatprep.subr.mxu0 0.0
    %714 = vmatpush1.msra.mxu0 0.0
    %715 = vmatprep.subr.mxu0 0.0
    %716 = vmatpush1.msra.mxu0 0.0
    %717 = vmatprep.subr.mxu0 0.0
    %718 = vmatpush1.msra.mxu0 0.0
    %719 = vmatprep.subr.mxu0 0.0
    %720 = vmatpush1.msra.mxu0 0.0
    %721 = vmatprep.subr.mxu0 0.0
    %722 = vmatpush1.msra.mxu0 0.0
    %723 = vmatprep.subr.mxu0 0.0
    %724 = vmatpush1.msra.mxu0 0.0
    %725 = vmatprep.subr.mxu0 0.0
    %726 = vmatpush1.msra.mxu0 0.0
    %727 = vmatprep.subr.mxu0 0.0
    %728 = vmatpush1.msra.mxu0 0.0
    %729 = vmatprep.subr.mxu0 0.0
    %730 = vmatpush1.msra.mxu0 0.0
    %731 = vmatprep.subr.mxu0 0.0
    %732 = vmatpush1.msra.mxu0 0.0
    %733 = vmatprep.subr.mxu0 0.0
    %734 = vmatpush1.msra.mxu0 0.0
    %735 = vmatprep.subr.mxu0 0.0
    %736 = vmatpush1.msra.mxu0 0.0
    %737 = vmatprep.subr.mxu0 0.0
    %738 = vmatpush1.msra.mxu0 0.0
    %739 = vmatprep.subr.mxu0 0.0
    %740 = vmatpush1.msra.mxu0 0.0
    %741 = vmatprep.subr.mxu0 0.0
    %742 = vmatpush1.msra.mxu0 0.0
    %743 = vmatprep.subr.mxu0 0.0
    %744 = vmatpush1.msra.mxu0 0.0
    %745 = vmatprep.subr.mxu0 0.0
    %746 = vmatpush1.msra.mxu0 0.0
    %747 = vmatprep.subr.mxu0 0.0
    %748 = vmatpush1.msra.mxu0 0.0
    %749 = vmatprep.subr.mxu0 0.0
    %750 = vmatpush1.msra.mxu0 0.0
    %751 = vmatprep.subr.mxu0 0.0
    %752 = vmatpush1.msra.mxu0 0.0
    %753 = vmatprep.mubr.f32.mxu0 0.0
    %754 = vmatmul.mubr.f32.gmra.mrb[0].mxu0 %v678
    %v755 = vpop.f32.mrb[0].mxu0
    %v756 = vadd.f32 0.0, %v755
    %v757 = vpop.f32.mrb[0].mxu0
    %758 = vmatprep.mubr.f32.mxu0 0.0
    %759 = vmatmul.mubr.f32.gmra.mrb[0].mxu0 %v681
    %v760 = vpop.f32.mrb[0].mxu0
    %v761 = vadd.f32 0.0, %v760
    %v762 = vpop.f32.mrb[0].mxu0
    %763 = vmatprep.mubr.f32.mxu0 0.0
    %764 = vmatmul.mubr.f32.gmra.mrb[0].mxu0 %v684
    %v765 = vpop.f32.mrb[0].mxu0
    %v766 = vadd.f32 0.0, %v765
    %v767 = vpop.f32.mrb[0].mxu0
    %768 = vmatprep.mubr.f32.mxu0 0.0
    %769 = vmatmul.mubr.f32.gmra.mrb[0].mxu0 %v687
    %v770 = vpop.f32.mrb[0].mxu0
    %v771 = vadd.f32 0.0, %v770
    %v772 = vpop.f32.mrb[0].mxu0
    %773 = vdwg.mxu0
    %v774 = vmul.f32 %v756, 0.5
    %v775 = vmul.f32 %v761, 0.5
    %v776 = vmul.f32 %v766, 0.5
    %v777 = vmul.f32 %v771, 0.5
    %v778 = vfloor.f32 %v774
    %v779 = vfloor.f32 %v775
    %v780 = vfloor.f32 %v776
    %v781 = vfloor.f32 %v777
    %vm782 = vcmp.lt.f32.partialorder %v659, %v778
    %vm783 = vcmp.lt.f32.partialorder %v664, %v779
    %vm784 = vcmp.lt.f32.partialorder %v669, %v780
    %vm785 = vcmp.lt.f32.partialorder %v674, %v781
    %v786 = vsel %vm782, 1.0, 0.0
    %v787 = vsel %vm783, 1.0, 0.0
    %v788 = vsel %vm784, 1.0, 0.0
    %v789 = vsel %vm785, 1.0, 0.0
    %v790 = vmul.f32 %v315, %v514
    %v791 = vmul.f32 %v316, %v519
    %v792 = vmul.f32 %v317, %v524
    %v793 = vmul.f32 %v318, %v529
    %795 = vset.pattern.permute.xlu0 0
    %796 = vperm.xlu0 %795, %v786
    %v797 = vpop.permute.xlu0 %796
    %800 = vset.pattern.permute.xlu0 0
    %801 = vperm.xlu0 %800, %v787
    %v802 = vpop.permute.xlu0 %801
    %805 = vset.pattern.permute.xlu0 0
    %806 = vperm.xlu0 %805, %v788
    %v807 = vpop.permute.xlu0 %806
    %810 = vset.pattern.permute.xlu0 0
    %811 = vperm.xlu0 %810, %v789
    %v812 = vpop.permute.xlu0 %811
    %v814 = vmul.f32 %v790, %v797
    %v815 = vmul.f32 %v791, %v802
    %v816 = vmul.f32 %v792, %v807
    %v817 = vmul.f32 %v793, %v812
    %v818 = vmul.f32 %v90, %v797
    %v819 = vmul.f32 %v91, %v802
    %v820 = vmul.f32 %v92, %v807
    %v821 = vmul.f32 %v93, %v812
    %v822 = vsel %vm217, %v818, 0.0
    %v823 = vsel %vm217, %v819, 0.0
    %v824 = vadd.f32 %v822, %v823
    %v825 = vsel %vm217, %v820, 0.0
    %v826 = vadd.f32 %v824, %v825
    %v827 = vsel %vm217, %v821, 0.0
    %v828 = vadd.f32 %v826, %v827
    %v829 = vrot.slane %v828, 4
    %v830 = vadd.f32 %v828, %v829
    %v831 = vrot.slane %v830, 2
    %v832 = vadd.f32 %v830, %v831
    %v833 = vrot.slane %v832, 1
    %v834 = vadd.f32 %v832, %v833
    %vm835 = vcmp.ne.f32.partialorder %v103, 0.0
    %vm836 = vcmp.ne.f32.partialorder %v104, 0.0
    %vm837 = vcmp.ne.f32.partialorder %v105, 0.0
    %vm838 = vcmp.ne.f32.partialorder %v106, 0.0
    %v839 = vsel %vm835, 1.0, 0.0
    %v840 = vsel %vm836, 1.0, 0.0
    %v841 = vsel %vm837, 1.0, 0.0
    %v842 = vsel %vm838, 1.0, 0.0
    %v843 = vmul.f32 %v839, %v94
    %v844 = vmul.f32 %v840, %v95
    %v845 = vmul.f32 %v841, %v96
    %v846 = vmul.f32 %v842, %v97
    %v847 = vmul.f32 %v843, %v797
    %v848 = vmul.f32 %v844, %v802
    %v849 = vmul.f32 %v845, %v807
    %v850 = vmul.f32 %v846, %v812
    %v851 = vmul.f32 %v847, %v834
    %v852 = vmul.f32 %v848, %v834
    %v853 = vmul.f32 %v849, %v834
    %v854 = vmul.f32 %v850, %v834
    %v855 = vadd.f32 %v851, %v818
    %v856 = vadd.f32 %v852, %v819
    %v857 = vadd.f32 %v853, %v820
    %v858 = vadd.f32 %v854, %v821
    %v859 = vsel %vm217, %v855, 0.0
    %860 = vadd.xlane.f32.xlu0 %v859
    %v861 = vpop.xlane.xlu0 %860
    %v862 = vsel %vm217, %v856, 0.0
    %863 = vadd.xlane.f32.xlu0 %v862
    %v864 = vpop.xlane.xlu0 %863
    %v865 = vsel %vm217, %v857, 0.0
    %866 = vadd.xlane.f32.xlu0 %v865
    %v867 = vpop.xlane.xlu0 %866
    %v868 = vsel %vm217, %v858, 0.0
    %869 = vadd.xlane.f32.xlu0 %v868
    %v870 = vpop.xlane.xlu0 %869
    %vm871 = vcmp.gt.f32.partialorder %v861, 0.5
    %vm872 = vcmp.gt.f32.partialorder %v864, 0.5
    %vm873 = vcmp.gt.f32.partialorder %v867, 0.5
    %vm874 = vcmp.gt.f32.partialorder %v870, 0.5
    %v875 = vmax.f32 %v861, 1.0
    %v876 = vmax.f32 %v864, 1.0
    %v877 = vmax.f32 %v867, 1.0
    %v878 = vmax.f32 %v870, 1.0
    %v879 = vrsqrt.pop %v875
    %v880 = vrsqrt.pop %v876
    %v881 = vrsqrt.pop %v877
    %v882 = vrsqrt.pop %v878
    %v883 = vsel %vm871, %v879, 0.0
    %v884 = vsel %vm872, %v880, 0.0
    %v885 = vsel %vm873, %v881, 0.0
    %v886 = vsel %vm874, %v882, 0.0
    %v887 = vmul.f32 %v855, %v883
    %v888 = vmul.f32 %v856, %v884
    %v889 = vmul.f32 %v857, %v885
    %v890 = vmul.f32 %v858, %v886
    %v891 = vmul.f32 %v90, %v883
    %v892 = vmul.f32 %v91, %v884
    %v893 = vmul.f32 %v92, %v885
    %v894 = vmul.f32 %v93, %v886
    %v895 = vsel %vm217, %v891, 0.0
    %v896 = vsel %vm217, %v892, 0.0
    %v897 = vadd.f32 %v895, %v896
    %v898 = vsel %vm217, %v893, 0.0
    %v899 = vadd.f32 %v897, %v898
    %v900 = vsel %vm217, %v894, 0.0
    %v901 = vadd.f32 %v899, %v900
    %v902 = vrot.slane %v901, 4
    %v903 = vadd.f32 %v901, %v902
    %v904 = vrot.slane %v903, 2
    %v905 = vadd.f32 %v903, %v904
    %v906 = vrot.slane %v905, 1
    %v907 = vadd.f32 %v905, %v906
    %v908 = vmul.f32 %v887, %v907
    %v909 = vmul.f32 %v888, %v907
    %v910 = vmul.f32 %v889, %v907
    %v911 = vmul.f32 %v890, %v907
    %v913 = vsel %vm217, %v102, 0
    %915 = vmatprep.subr.mxu0 0.0
    %916 = vmatpush1.msra.mxu0 %v786
    %917 = vmatprep.subr.mxu0 0.0
    %918 = vmatpush1.msra.mxu0 %v787
    %919 = vmatprep.subr.mxu0 0.0
    %920 = vmatpush1.msra.mxu0 %v788
    %921 = vmatprep.subr.mxu0 0.0
    %922 = vmatpush1.msra.mxu0 %v789
    %923 = vmatprep.subr.mxu0 0.0
    %924 = vmatpush1.msra.mxu0 0.0
    %925 = vmatprep.subr.mxu0 0.0
    %926 = vmatpush1.msra.mxu0 0.0
    %927 = vmatprep.subr.mxu0 0.0
    %928 = vmatpush1.msra.mxu0 0.0
    %929 = vmatprep.subr.mxu0 0.0
    %930 = vmatpush1.msra.mxu0 0.0
    %931 = vmatprep.subr.mxu0 0.0
    %932 = vmatpush1.msra.mxu0 0.0
    %933 = vmatprep.subr.mxu0 0.0
    %934 = vmatpush1.msra.mxu0 0.0
    %935 = vmatprep.subr.mxu0 0.0
    %936 = vmatpush1.msra.mxu0 0.0
    %937 = vmatprep.subr.mxu0 0.0
    %938 = vmatpush1.msra.mxu0 0.0
    %939 = vmatprep.subr.mxu0 0.0
    %940 = vmatpush1.msra.mxu0 0.0
    %941 = vmatprep.subr.mxu0 0.0
    %942 = vmatpush1.msra.mxu0 0.0
    %943 = vmatprep.subr.mxu0 0.0
    %944 = vmatpush1.msra.mxu0 0.0
    %945 = vmatprep.subr.mxu0 0.0
    %946 = vmatpush1.msra.mxu0 0.0
    %947 = vmatprep.subr.mxu0 0.0
    %948 = vmatpush1.msra.mxu0 0.0
    %949 = vmatprep.subr.mxu0 0.0
    %950 = vmatpush1.msra.mxu0 0.0
    %951 = vmatprep.subr.mxu0 0.0
    %952 = vmatpush1.msra.mxu0 0.0
    %953 = vmatprep.subr.mxu0 0.0
    %954 = vmatpush1.msra.mxu0 0.0
    %955 = vmatprep.subr.mxu0 0.0
    %956 = vmatpush1.msra.mxu0 0.0
    %957 = vmatprep.subr.mxu0 0.0
    %958 = vmatpush1.msra.mxu0 0.0
    %959 = vmatprep.subr.mxu0 0.0
    %960 = vmatpush1.msra.mxu0 0.0
    %961 = vmatprep.subr.mxu0 0.0
    %962 = vmatpush1.msra.mxu0 0.0
    %963 = vmatprep.subr.mxu0 0.0
    %964 = vmatpush1.msra.mxu0 0.0
    %965 = vmatprep.subr.mxu0 0.0
    %966 = vmatpush1.msra.mxu0 0.0
    %967 = vmatprep.subr.mxu0 0.0
    %968 = vmatpush1.msra.mxu0 0.0
    %969 = vmatprep.subr.mxu0 0.0
    %970 = vmatpush1.msra.mxu0 0.0
    %971 = vmatprep.subr.mxu0 0.0
    %972 = vmatpush1.msra.mxu0 0.0
    %973 = vmatprep.subr.mxu0 0.0
    %974 = vmatpush1.msra.mxu0 0.0
    %975 = vmatprep.subr.mxu0 0.0
    %976 = vmatpush1.msra.mxu0 0.0
    %977 = vmatprep.subr.mxu0 0.0
    %978 = vmatpush1.msra.mxu0 0.0
    %979 = vmatprep.mubr.f32.mxu0 0.0
    %980 = vmatmul.mubr.f32.gmra.mrb[0].mxu0 %v913
    %v981 = vpop.f32.mrb[0].mxu0
    %v982 = vadd.f32 0.0, %v981
    %v983 = vpop.f32.mrb[0].mxu0
    %984 = vdwg.mxu0
    %985 = vmatprep.subr.mxu0 0.0
    %986 = vmatpush1.msra.mxu0 %v814
    %987 = vmatprep.subr.mxu0 0.0
    %988 = vmatpush1.msra.mxu0 %v815
    %989 = vmatprep.subr.mxu0 0.0
    %990 = vmatpush1.msra.mxu0 %v816
    %991 = vmatprep.subr.mxu0 0.0
    %992 = vmatpush1.msra.mxu0 %v817
    %993 = vmatprep.subr.mxu0 0.0
    %994 = vmatpush1.msra.mxu0 0.0
    %995 = vmatprep.subr.mxu0 0.0
    %996 = vmatpush1.msra.mxu0 0.0
    %997 = vmatprep.subr.mxu0 0.0
    %998 = vmatpush1.msra.mxu0 0.0
    %999 = vmatprep.subr.mxu0 0.0
    %1000 = vmatpush1.msra.mxu0 0.0
    %1001 = vmatprep.subr.mxu0 0.0
    %1002 = vmatpush1.msra.mxu0 0.0
    %1003 = vmatprep.subr.mxu0 0.0
    %1004 = vmatpush1.msra.mxu0 0.0
    %1005 = vmatprep.subr.mxu0 0.0
    %1006 = vmatpush1.msra.mxu0 0.0
    %1007 = vmatprep.subr.mxu0 0.0
    %1008 = vmatpush1.msra.mxu0 0.0
    %1009 = vmatprep.subr.mxu0 0.0
    %1010 = vmatpush1.msra.mxu0 0.0
    %1011 = vmatprep.subr.mxu0 0.0
    %1012 = vmatpush1.msra.mxu0 0.0
    %1013 = vmatprep.subr.mxu0 0.0
    %1014 = vmatpush1.msra.mxu0 0.0
    %1015 = vmatprep.subr.mxu0 0.0
    %1016 = vmatpush1.msra.mxu0 0.0
    %1017 = vmatprep.subr.mxu0 0.0
    %1018 = vmatpush1.msra.mxu0 0.0
    %1019 = vmatprep.subr.mxu0 0.0
    %1020 = vmatpush1.msra.mxu0 0.0
    %1021 = vmatprep.subr.mxu0 0.0
    %1022 = vmatpush1.msra.mxu0 0.0
    %1023 = vmatprep.subr.mxu0 0.0
    %1024 = vmatpush1.msra.mxu0 0.0
    %1025 = vmatprep.subr.mxu0 0.0
    %1026 = vmatpush1.msra.mxu0 0.0
    %1027 = vmatprep.subr.mxu0 0.0
    %1028 = vmatpush1.msra.mxu0 0.0
    %1029 = vmatprep.subr.mxu0 0.0
    %1030 = vmatpush1.msra.mxu0 0.0
    %1031 = vmatprep.subr.mxu0 0.0
    %1032 = vmatpush1.msra.mxu0 0.0
    %1033 = vmatprep.subr.mxu0 0.0
    %1034 = vmatpush1.msra.mxu0 0.0
    %1035 = vmatprep.subr.mxu0 0.0
    %1036 = vmatpush1.msra.mxu0 0.0
    %1037 = vmatprep.subr.mxu0 0.0
    %1038 = vmatpush1.msra.mxu0 0.0
    %1039 = vmatprep.subr.mxu0 0.0
    %1040 = vmatpush1.msra.mxu0 0.0
    %1041 = vmatprep.subr.mxu0 0.0
    %1042 = vmatpush1.msra.mxu0 0.0
    %1043 = vmatprep.subr.mxu0 0.0
    %1044 = vmatpush1.msra.mxu0 0.0
    %1045 = vmatprep.subr.mxu0 0.0
    %1046 = vmatpush1.msra.mxu0 0.0
    %1047 = vmatprep.subr.mxu0 0.0
    %1048 = vmatpush1.msra.mxu0 0.0
    %1049 = vmatprep.mubr.f32.mxu0 0.0
    %1050 = vmatmul.mubr.f32.gmra.mrb[0].mxu0 %v913
    %v1051 = vpop.f32.mrb[0].mxu0
    %v1052 = vadd.f32 0.0, %v1051
    %v1053 = vpop.f32.mrb[0].mxu0
    %1054 = vdwg.mxu0
    %vm1055 = vcmp.gt.f32.partialorder %v982, 0.5
    %v1056 = vmax.f32 %v982, 1.0
    %v1057 = vrcp.pop %v1056
    %v1058 = vsel %vm1055, %v1057, 0.0
    %1060 = vset.pattern.permute.xlu0 0
    %1061 = vperm.xlu0 %1060, %v1058
    %v1062 = vpop.permute.xlu0 %1061
    %v1064 = vmul.f32 %v1052, %v1062
    %vm1065 = vcmp.gt.f32.partialorder %v786, 0.5
    %vm1066 = vcmp.gt.f32.partialorder %v787, 0.5
    %v1067 = vsel %vm1065, 1, 0
    %v1068 = vsel %vm1066, 1, 0
    %1069 = vset.pattern.permute.xlu0 0
    %1070 = vperm.xlu0 %1069, %v1067
    %v1071 = vpop.permute.xlu0 %1070
    %1072 = vset.pattern.permute.xlu0 0
    %1073 = vperm.xlu0 %1072, %v1068
    %v1074 = vpop.permute.xlu0 %1073
    %vm1075 = vcmp.eq.s32.totalorder %v1071, 1
    %vm1076 = vcmp.eq.s32.totalorder %v1074, 1
    %v1077 = vsel %vm1075, %v814, -3e+38
    %v1078 = vsel %vm1076, %v815, -3e+38
    %v1079 = vsel %vm217, %v1077, -inf
    %v1080 = vsel %vm217, %v1078, -inf
    %v1081 = vmax.f32 %v1079, %v1080
    %v1082 = vrot.slane %v1081, 4
    %v1083 = vmax.f32 %v1081, %v1082
    %v1084 = vrot.slane %v1083, 2
    %v1085 = vmax.f32 %v1083, %v1084
    %v1086 = vrot.slane %v1085, 1
    %v1087 = vmax.f32 %v1085, %v1086
    %vm1088 = vcmp.eq.s32.totalorder %v76, 0
    %v1089 = vsel %vm1088, 1, 0
    %v1090 = vcvt.s32.f32 %v1089
    %v1091 = vmul.f32 %v1090, %v1087
    %v1092 = vadd.f32 %v1091, 0.0
    %vm1093 = vcmp.gt.f32.partialorder %v788, 0.5
    %vm1094 = vcmp.gt.f32.partialorder %v789, 0.5
    %v1095 = vsel %vm1093, 1, 0
    %v1096 = vsel %vm1094, 1, 0
    %1097 = vset.pattern.permute.xlu0 0
    %1098 = vperm.xlu0 %1097, %v1095
    %v1099 = vpop.permute.xlu0 %1098
    %1100 = vset.pattern.permute.xlu0 0
    %1101 = vperm.xlu0 %1100, %v1096
    %v1102 = vpop.permute.xlu0 %1101
    %vm1103 = vcmp.eq.s32.totalorder %v1099, 1
    %vm1104 = vcmp.eq.s32.totalorder %v1102, 1
    %v1105 = vsel %vm1103, %v816, -3e+38
    %v1106 = vsel %vm1104, %v817, -3e+38
    %v1107 = vsel %vm217, %v1105, -inf
    %v1108 = vsel %vm217, %v1106, -inf
    %v1109 = vmax.f32 %v1107, %v1108
    %v1110 = vrot.slane %v1109, 4
    %v1111 = vmax.f32 %v1109, %v1110
    %v1112 = vrot.slane %v1111, 2
    %v1113 = vmax.f32 %v1111, %v1112
    %v1114 = vrot.slane %v1113, 1
    %v1115 = vmax.f32 %v1113, %v1114
    %vm1116 = vcmp.eq.s32.totalorder %v76, 1
    %v1117 = vsel %vm1116, 1, 0
    %v1118 = vcvt.s32.f32 %v1117
    %v1119 = vmul.f32 %v1118, %v1115
    %v1120 = vadd.f32 %v1092, %v1119
    %v1121 = vsel %vm1055, 1, 0
    %1122 = vset.pattern.permute.xlu0 0
    %1123 = vperm.xlu0 %1122, %v1121
    %v1124 = vpop.permute.xlu0 %1123
    %vm1125 = vcmp.eq.s32.totalorder %v1124, 1
    %v1126 = vsel %vm1125, %v1120, 0.0
    %v1127 = vadd.f32 %v1064, 0.0
    %v1128 = vadd.f32 %v1126, 0.0
    %v1129 = vld [vmem:[%s7] sm:$0xff]
    %v1130 = vld [vmem:[%s7 + $0x8] sm:$0xff]
    %v1131 = vld [vmem:[%s7 + $0x10] sm:$0xff]
    %v1132 = vld [vmem:[%s7 + $0x18] sm:$0xff]
    %v1134 = vsel %vm217, %v814, 0
    %v1137 = vsel %vm217, %v815, 0
    %v1140 = vsel %vm217, %v816, 0
    %v1143 = vsel %vm217, %v817, 0
    %1145 = vmatprep.subr.mxu0 0.0
    %1146 = vmatpush1.msra.mxu0 %v1129
    %1147 = vmatprep.subr.mxu0 0.0
    %1148 = vmatpush1.msra.mxu0 %v1130
    %1149 = vmatprep.subr.mxu0 0.0
    %1150 = vmatpush1.msra.mxu0 %v1131
    %1151 = vmatprep.subr.mxu0 0.0
    %1152 = vmatpush1.msra.mxu0 %v1132
    %1153 = vmatprep.subr.mxu0 0.0
    %1154 = vmatpush1.msra.mxu0 0.0
    %1155 = vmatprep.subr.mxu0 0.0
    %1156 = vmatpush1.msra.mxu0 0.0
    %1157 = vmatprep.subr.mxu0 0.0
    %1158 = vmatpush1.msra.mxu0 0.0
    %1159 = vmatprep.subr.mxu0 0.0
    %1160 = vmatpush1.msra.mxu0 0.0
    %1161 = vmatprep.subr.mxu0 0.0
    %1162 = vmatpush1.msra.mxu0 0.0
    %1163 = vmatprep.subr.mxu0 0.0
    %1164 = vmatpush1.msra.mxu0 0.0
    %1165 = vmatprep.subr.mxu0 0.0
    %1166 = vmatpush1.msra.mxu0 0.0
    %1167 = vmatprep.subr.mxu0 0.0
    %1168 = vmatpush1.msra.mxu0 0.0
    %1169 = vmatprep.subr.mxu0 0.0
    %1170 = vmatpush1.msra.mxu0 0.0
    %1171 = vmatprep.subr.mxu0 0.0
    %1172 = vmatpush1.msra.mxu0 0.0
    %1173 = vmatprep.subr.mxu0 0.0
    %1174 = vmatpush1.msra.mxu0 0.0
    %1175 = vmatprep.subr.mxu0 0.0
    %1176 = vmatpush1.msra.mxu0 0.0
    %1177 = vmatprep.subr.mxu0 0.0
    %1178 = vmatpush1.msra.mxu0 0.0
    %1179 = vmatprep.subr.mxu0 0.0
    %1180 = vmatpush1.msra.mxu0 0.0
    %1181 = vmatprep.subr.mxu0 0.0
    %1182 = vmatpush1.msra.mxu0 0.0
    %1183 = vmatprep.subr.mxu0 0.0
    %1184 = vmatpush1.msra.mxu0 0.0
    %1185 = vmatprep.subr.mxu0 0.0
    %1186 = vmatpush1.msra.mxu0 0.0
    %1187 = vmatprep.subr.mxu0 0.0
    %1188 = vmatpush1.msra.mxu0 0.0
    %1189 = vmatprep.subr.mxu0 0.0
    %1190 = vmatpush1.msra.mxu0 0.0
    %1191 = vmatprep.subr.mxu0 0.0
    %1192 = vmatpush1.msra.mxu0 0.0
    %1193 = vmatprep.subr.mxu0 0.0
    %1194 = vmatpush1.msra.mxu0 0.0
    %1195 = vmatprep.subr.mxu0 0.0
    %1196 = vmatpush1.msra.mxu0 0.0
    %1197 = vmatprep.subr.mxu0 0.0
    %1198 = vmatpush1.msra.mxu0 0.0
    %1199 = vmatprep.subr.mxu0 0.0
    %1200 = vmatpush1.msra.mxu0 0.0
    %1201 = vmatprep.subr.mxu0 0.0
    %1202 = vmatpush1.msra.mxu0 0.0
    %1203 = vmatprep.subr.mxu0 0.0
    %1204 = vmatpush1.msra.mxu0 0.0
    %1205 = vmatprep.subr.mxu0 0.0
    %1206 = vmatpush1.msra.mxu0 0.0
    %1207 = vmatprep.subr.mxu0 0.0
    %1208 = vmatpush1.msra.mxu0 0.0
    %1209 = vmatprep.mubr.f32.mxu0 0.0
    %1210 = vmatmul.mubr.f32.gmra.mrb[0].mxu0 %v1134
    %v1211 = vpop.f32.mrb[0].mxu0
    %v1212 = vadd.f32 0.0, %v1211
    %v1213 = vpop.f32.mrb[0].mxu0
    %1214 = vmatprep.mubr.f32.mxu0 0.0
    %1215 = vmatmul.mubr.f32.gmra.mrb[0].mxu0 %v1137
    %v1216 = vpop.f32.mrb[0].mxu0
    %v1217 = vadd.f32 0.0, %v1216
    %v1218 = vpop.f32.mrb[0].mxu0
    %1219 = vmatprep.mubr.f32.mxu0 0.0
    %1220 = vmatmul.mubr.f32.gmra.mrb[0].mxu0 %v1140
    %v1221 = vpop.f32.mrb[0].mxu0
    %v1222 = vadd.f32 0.0, %v1221
    %v1223 = vpop.f32.mrb[0].mxu0
    %1224 = vmatprep.mubr.f32.mxu0 0.0
    %1225 = vmatmul.mubr.f32.gmra.mrb[0].mxu0 %v1143
    %v1226 = vpop.f32.mrb[0].mxu0
    %v1227 = vadd.f32 0.0, %v1226
    %v1228 = vpop.f32.mrb[0].mxu0
    %1229 = vdwg.mxu0
    %v1230 = vld [vmem:[%s8] sm:$0x1]
    %v1232 = vlaneseq
    %v1233 = vshrl.u32 %v1232, 7
    %v1234 = vsub.s32 0, %v1233
    %v1235 = vrot.slane %v1230, %v1234
    %v1238 = vsel %vm217, %v908, 0
    %v1241 = vsel %vm217, %v909, 0
    %v1244 = vsel %vm217, %v910, 0
    %v1247 = vsel %vm217, %v911, 0
    %1249 = vmatprep.subr.mxu0 0.0
    %1250 = vmatpush1.msra.mxu0 %v1212
    %1251 = vmatprep.subr.mxu0 0.0
    %1252 = vmatpush1.msra.mxu0 %v1217
    %1253 = vmatprep.subr.mxu0 0.0
    %1254 = vmatpush1.msra.mxu0 %v1222
    %1255 = vmatprep.subr.mxu0 0.0
    %1256 = vmatpush1.msra.mxu0 %v1227
    %1257 = vmatprep.subr.mxu0 0.0
    %1258 = vmatpush1.msra.mxu0 0.0
    %1259 = vmatprep.subr.mxu0 0.0
    %1260 = vmatpush1.msra.mxu0 0.0
    %1261 = vmatprep.subr.mxu0 0.0
    %1262 = vmatpush1.msra.mxu0 0.0
    %1263 = vmatprep.subr.mxu0 0.0
    %1264 = vmatpush1.msra.mxu0 0.0
    %1265 = vmatprep.subr.mxu0 0.0
    %1266 = vmatpush1.msra.mxu0 0.0
    %1267 = vmatprep.subr.mxu0 0.0
    %1268 = vmatpush1.msra.mxu0 0.0
    %1269 = vmatprep.subr.mxu0 0.0
    %1270 = vmatpush1.msra.mxu0 0.0
    %1271 = vmatprep.subr.mxu0 0.0
    %1272 = vmatpush1.msra.mxu0 0.0
    %1273 = vmatprep.subr.mxu0 0.0
    %1274 = vmatpush1.msra.mxu0 0.0
    %1275 = vmatprep.subr.mxu0 0.0
    %1276 = vmatpush1.msra.mxu0 0.0
    %1277 = vmatprep.subr.mxu0 0.0
    %1278 = vmatpush1.msra.mxu0 0.0
    %1279 = vmatprep.subr.mxu0 0.0
    %1280 = vmatpush1.msra.mxu0 0.0
    %1281 = vmatprep.subr.mxu0 0.0
    %1282 = vmatpush1.msra.mxu0 0.0
    %1283 = vmatprep.subr.mxu0 0.0
    %1284 = vmatpush1.msra.mxu0 0.0
    %1285 = vmatprep.subr.mxu0 0.0
    %1286 = vmatpush1.msra.mxu0 0.0
    %1287 = vmatprep.subr.mxu0 0.0
    %1288 = vmatpush1.msra.mxu0 0.0
    %1289 = vmatprep.subr.mxu0 0.0
    %1290 = vmatpush1.msra.mxu0 0.0
    %1291 = vmatprep.subr.mxu0 0.0
    %1292 = vmatpush1.msra.mxu0 0.0
    %1293 = vmatprep.subr.mxu0 0.0
    %1294 = vmatpush1.msra.mxu0 0.0
    %1295 = vmatprep.subr.mxu0 0.0
    %1296 = vmatpush1.msra.mxu0 0.0
    %1297 = vmatprep.subr.mxu0 0.0
    %1298 = vmatpush1.msra.mxu0 0.0
    %1299 = vmatprep.subr.mxu0 0.0
    %1300 = vmatpush1.msra.mxu0 0.0
    %1301 = vmatprep.subr.mxu0 0.0
    %1302 = vmatpush1.msra.mxu0 0.0
    %1303 = vmatprep.subr.mxu0 0.0
    %1304 = vmatpush1.msra.mxu0 0.0
    %1305 = vmatprep.subr.mxu0 0.0
    %1306 = vmatpush1.msra.mxu0 0.0
    %1307 = vmatprep.subr.mxu0 0.0
    %1308 = vmatpush1.msra.mxu0 0.0
    %1309 = vmatprep.subr.mxu0 0.0
    %1310 = vmatpush1.msra.mxu0 0.0
    %1311 = vmatprep.subr.mxu0 0.0
    %1312 = vmatpush1.msra.mxu0 0.0
    %1313 = vmatprep.mubr.f32.mxu0 0.0
    %1314 = vmatmul.mubr.f32.gmra.mrb[0].mxu0 %v1238
    %v1315 = vpop.f32.mrb[0].mxu0
    %v1316 = vadd.f32 %v1235, %v1315
    %v1317 = vpop.f32.mrb[0].mxu0
    %1318 = vmatprep.mubr.f32.mxu0 0.0
    %1319 = vmatmul.mubr.f32.gmra.mrb[0].mxu0 %v1241
    %v1320 = vpop.f32.mrb[0].mxu0
    %v1321 = vadd.f32 %v1235, %v1320
    %v1322 = vpop.f32.mrb[0].mxu0
    %1323 = vmatprep.mubr.f32.mxu0 0.0
    %1324 = vmatmul.mubr.f32.gmra.mrb[0].mxu0 %v1244
    %v1325 = vpop.f32.mrb[0].mxu0
    %v1326 = vadd.f32 %v1235, %v1325
    %v1327 = vpop.f32.mrb[0].mxu0
    %1328 = vmatprep.mubr.f32.mxu0 0.0
    %1329 = vmatmul.mubr.f32.gmra.mrb[0].mxu0 %v1247
    %v1330 = vpop.f32.mrb[0].mxu0
    %v1331 = vadd.f32 %v1235, %v1330
    %v1332 = vpop.f32.mrb[0].mxu0
    %1333 = vdwg.mxu0
    %v1334 = vmax.f32 %v1316, 0.0
    %v1335 = vmax.f32 %v1321, 0.0
    %v1336 = vmax.f32 %v1326, 0.0
    %v1337 = vmax.f32 %v1331, 0.0
    %v1338 = vld [vmem:[%s9] sm:$0xff]
    %v1339 = vld [vmem:[%s9 + $0x8] sm:$0xff]
    %v1340 = vld [vmem:[%s9 + $0x10] sm:$0xff]
    %v1341 = vld [vmem:[%s9 + $0x18] sm:$0xff]
    %v1343 = vsel %vm217, %v1334, 0
    %v1346 = vsel %vm217, %v1335, 0
    %v1349 = vsel %vm217, %v1336, 0
    %v1352 = vsel %vm217, %v1337, 0
    %1354 = vmatprep.subr.mxu0 0.0
    %1355 = vmatpush1.msra.mxu0 %v1338
    %1356 = vmatprep.subr.mxu0 0.0
    %1357 = vmatpush1.msra.mxu0 %v1339
    %1358 = vmatprep.subr.mxu0 0.0
    %1359 = vmatpush1.msra.mxu0 %v1340
    %1360 = vmatprep.subr.mxu0 0.0
    %1361 = vmatpush1.msra.mxu0 %v1341
    %1362 = vmatprep.subr.mxu0 0.0
    %1363 = vmatpush1.msra.mxu0 0.0
    %1364 = vmatprep.subr.mxu0 0.0
    %1365 = vmatpush1.msra.mxu0 0.0
    %1366 = vmatprep.subr.mxu0 0.0
    %1367 = vmatpush1.msra.mxu0 0.0
    %1368 = vmatprep.subr.mxu0 0.0
    %1369 = vmatpush1.msra.mxu0 0.0
    %1370 = vmatprep.subr.mxu0 0.0
    %1371 = vmatpush1.msra.mxu0 0.0
    %1372 = vmatprep.subr.mxu0 0.0
    %1373 = vmatpush1.msra.mxu0 0.0
    %1374 = vmatprep.subr.mxu0 0.0
    %1375 = vmatpush1.msra.mxu0 0.0
    %1376 = vmatprep.subr.mxu0 0.0
    %1377 = vmatpush1.msra.mxu0 0.0
    %1378 = vmatprep.subr.mxu0 0.0
    %1379 = vmatpush1.msra.mxu0 0.0
    %1380 = vmatprep.subr.mxu0 0.0
    %1381 = vmatpush1.msra.mxu0 0.0
    %1382 = vmatprep.subr.mxu0 0.0
    %1383 = vmatpush1.msra.mxu0 0.0
    %1384 = vmatprep.subr.mxu0 0.0
    %1385 = vmatpush1.msra.mxu0 0.0
    %1386 = vmatprep.subr.mxu0 0.0
    %1387 = vmatpush1.msra.mxu0 0.0
    %1388 = vmatprep.subr.mxu0 0.0
    %1389 = vmatpush1.msra.mxu0 0.0
    %1390 = vmatprep.subr.mxu0 0.0
    %1391 = vmatpush1.msra.mxu0 0.0
    %1392 = vmatprep.subr.mxu0 0.0
    %1393 = vmatpush1.msra.mxu0 0.0
    %1394 = vmatprep.subr.mxu0 0.0
    %1395 = vmatpush1.msra.mxu0 0.0
    %1396 = vmatprep.subr.mxu0 0.0
    %1397 = vmatpush1.msra.mxu0 0.0
    %1398 = vmatprep.subr.mxu0 0.0
    %1399 = vmatpush1.msra.mxu0 0.0
    %1400 = vmatprep.subr.mxu0 0.0
    %1401 = vmatpush1.msra.mxu0 0.0
    %1402 = vmatprep.subr.mxu0 0.0
    %1403 = vmatpush1.msra.mxu0 0.0
    %1404 = vmatprep.subr.mxu0 0.0
    %1405 = vmatpush1.msra.mxu0 0.0
    %1406 = vmatprep.subr.mxu0 0.0
    %1407 = vmatpush1.msra.mxu0 0.0
    %1408 = vmatprep.subr.mxu0 0.0
    %1409 = vmatpush1.msra.mxu0 0.0
    %1410 = vmatprep.subr.mxu0 0.0
    %1411 = vmatpush1.msra.mxu0 0.0
    %1412 = vmatprep.subr.mxu0 0.0
    %1413 = vmatpush1.msra.mxu0 0.0
    %1414 = vmatprep.subr.mxu0 0.0
    %1415 = vmatpush1.msra.mxu0 0.0
    %1416 = vmatprep.subr.mxu0 0.0
    %1417 = vmatpush1.msra.mxu0 0.0
    %1418 = vmatprep.mubr.f32.mxu0 0.0
    %1419 = vmatmul.mubr.f32.gmra.mrb[0].mxu0 %v1343
    %v1420 = vpop.f32.mrb[0].mxu0
    %v1421 = vadd.f32 0.0, %v1420
    %v1422 = vpop.f32.mrb[0].mxu0
    %1423 = vmatprep.mubr.f32.mxu0 0.0
    %1424 = vmatmul.mubr.f32.gmra.mrb[0].mxu0 %v1346
    %v1425 = vpop.f32.mrb[0].mxu0
    %v1426 = vadd.f32 0.0, %v1425
    %v1427 = vpop.f32.mrb[0].mxu0
    %1428 = vmatprep.mubr.f32.mxu0 0.0
    %1429 = vmatmul.mubr.f32.gmra.mrb[0].mxu0 %v1349
    %v1430 = vpop.f32.mrb[0].mxu0
    %v1431 = vadd.f32 0.0, %v1430
    %v1432 = vpop.f32.mrb[0].mxu0
    %1433 = vmatprep.mubr.f32.mxu0 0.0
    %1434 = vmatmul.mubr.f32.gmra.mrb[0].mxu0 %v1352
    %v1435 = vpop.f32.mrb[0].mxu0
    %v1436 = vadd.f32 0.0, %v1435
    %v1437 = vpop.f32.mrb[0].mxu0
    %1438 = vdwg.mxu0
    %s1439 = sld [smem:[#allocation3]]
    %v1440 = vstv %s1439
    %1441 = vmatprep.subr.mxu0 0.0
    %1442 = vmatpush1.msra.mxu0 %v1421
    %1443 = vmatprep.subr.mxu0 0.0
    %1444 = vmatpush1.msra.mxu0 %v1426
    %1445 = vmatprep.subr.mxu0 0.0
    %1446 = vmatpush1.msra.mxu0 %v1431
    %1447 = vmatprep.subr.mxu0 0.0
    %1448 = vmatpush1.msra.mxu0 %v1436
    %1449 = vmatprep.subr.mxu0 0.0
    %1450 = vmatpush1.msra.mxu0 0.0
    %1451 = vmatprep.subr.mxu0 0.0
    %1452 = vmatpush1.msra.mxu0 0.0
    %1453 = vmatprep.subr.mxu0 0.0
    %1454 = vmatpush1.msra.mxu0 0.0
    %1455 = vmatprep.subr.mxu0 0.0
    %1456 = vmatpush1.msra.mxu0 0.0
    %1457 = vmatprep.subr.mxu0 0.0
    %1458 = vmatpush1.msra.mxu0 0.0
    %1459 = vmatprep.subr.mxu0 0.0
    %1460 = vmatpush1.msra.mxu0 0.0
    %1461 = vmatprep.subr.mxu0 0.0
    %1462 = vmatpush1.msra.mxu0 0.0
    %1463 = vmatprep.subr.mxu0 0.0
    %1464 = vmatpush1.msra.mxu0 0.0
    %1465 = vmatprep.subr.mxu0 0.0
    %1466 = vmatpush1.msra.mxu0 0.0
    %1467 = vmatprep.subr.mxu0 0.0
    %1468 = vmatpush1.msra.mxu0 0.0
    %1469 = vmatprep.subr.mxu0 0.0
    %1470 = vmatpush1.msra.mxu0 0.0
    %1471 = vmatprep.subr.mxu0 0.0
    %1472 = vmatpush1.msra.mxu0 0.0
    %1473 = vmatprep.subr.mxu0 0.0
    %1474 = vmatpush1.msra.mxu0 0.0
    %1475 = vmatprep.subr.mxu0 0.0
    %1476 = vmatpush1.msra.mxu0 0.0
    %1477 = vmatprep.subr.mxu0 0.0
    %1478 = vmatpush1.msra.mxu0 0.0
    %1479 = vmatprep.subr.mxu0 0.0
    %1480 = vmatpush1.msra.mxu0 0.0
    %1481 = vmatprep.subr.mxu0 0.0
    %1482 = vmatpush1.msra.mxu0 0.0
    %1483 = vmatprep.subr.mxu0 0.0
    %1484 = vmatpush1.msra.mxu0 0.0
    %1485 = vmatprep.subr.mxu0 0.0
    %1486 = vmatpush1.msra.mxu0 0.0
    %1487 = vmatprep.subr.mxu0 0.0
    %1488 = vmatpush1.msra.mxu0 0.0
    %1489 = vmatprep.subr.mxu0 0.0
    %1490 = vmatpush1.msra.mxu0 0.0
    %1491 = vmatprep.subr.mxu0 0.0
    %1492 = vmatpush1.msra.mxu0 0.0
    %1493 = vmatprep.subr.mxu0 0.0
    %1494 = vmatpush1.msra.mxu0 0.0
    %1495 = vmatprep.subr.mxu0 0.0
    %1496 = vmatpush1.msra.mxu0 0.0
    %1497 = vmatprep.subr.mxu0 0.0
    %1498 = vmatpush1.msra.mxu0 0.0
    %1499 = vmatprep.subr.mxu0 0.0
    %1500 = vmatpush1.msra.mxu0 0.0
    %1501 = vmatprep.subr.mxu0 0.0
    %1502 = vmatpush1.msra.mxu0 0.0
    %1503 = vmatprep.subr.mxu0 0.0
    %1504 = vmatpush1.msra.mxu0 0.0
    %1505 = vmatprep.mubr.f32.mxu0 0.0
    %1506 = vmatmul.mubr.f32.gmra.mrb[0].mxu0 %v1238
    %v1507 = vpop.f32.mrb[0].mxu0
    %v1508 = vadd.f32 %v1440, %v1507
    %v1509 = vpop.f32.mrb[0].mxu0
    %1510 = vmatprep.mubr.f32.mxu0 0.0
    %1511 = vmatmul.mubr.f32.gmra.mrb[0].mxu0 %v1241
    %v1512 = vpop.f32.mrb[0].mxu0
    %v1513 = vadd.f32 %v1440, %v1512
    %v1514 = vpop.f32.mrb[0].mxu0
    %1515 = vmatprep.mubr.f32.mxu0 0.0
    %1516 = vmatmul.mubr.f32.gmra.mrb[0].mxu0 %v1244
    %v1517 = vpop.f32.mrb[0].mxu0
    %v1518 = vadd.f32 %v1440, %v1517
    %v1519 = vpop.f32.mrb[0].mxu0
    %1520 = vmatprep.mubr.f32.mxu0 0.0
    %1521 = vmatmul.mubr.f32.gmra.mrb[0].mxu0 %v1247
    %v1522 = vpop.f32.mrb[0].mxu0
    %v1523 = vadd.f32 %v1440, %v1522
    %v1524 = vpop.f32.mrb[0].mxu0
    %1525 = vdwg.mxu0
    %v1526 = vtanh.pop %v1508
    %v1527 = vtanh.pop %v1513
    %v1528 = vtanh.pop %v1518
    %v1529 = vtanh.pop %v1523
    %1531 = vset.pattern.permute.xlu0 0
    %1532 = vperm.xlu0 %1531, %v1526
    %v1533 = vpop.permute.xlu0 %1532
    %1536 = vset.pattern.permute.xlu0 0
    %1537 = vperm.xlu0 %1536, %v1527
    %v1538 = vpop.permute.xlu0 %1537
    %1541 = vset.pattern.permute.xlu0 0
    %1542 = vperm.xlu0 %1541, %v1528
    %v1543 = vpop.permute.xlu0 %1542
    %1546 = vset.pattern.permute.xlu0 0
    %1547 = vperm.xlu0 %1546, %v1529
    %v1548 = vpop.permute.xlu0 %1547
    %v1550 = vmul.f32 %v90, %v1533
    %v1551 = vmul.f32 %v91, %v1538
    %v1552 = vmul.f32 %v92, %v1543
    %v1553 = vmul.f32 %v93, %v1548
    %v1554 = vsel %vm217, %v1550, 0.0
    %v1555 = vsel %vm217, %v1551, 0.0
    %v1556 = vadd.f32 %v1554, %v1555
    %v1557 = vsel %vm217, %v1552, 0.0
    %v1558 = vadd.f32 %v1556, %v1557
    %v1559 = vsel %vm217, %v1553, 0.0
    %v1560 = vadd.f32 %v1558, %v1559
    %v1561 = vrot.slane %v1560, 4
    %v1562 = vadd.f32 %v1560, %v1561
    %v1563 = vrot.slane %v1562, 2
    %v1564 = vadd.f32 %v1562, %v1563
    %v1565 = vrot.slane %v1564, 1
    %v1566 = vadd.f32 %v1564, %v1565
    %vm1567 = vcmp.gt.f32.partialorder %v1566, %v1533
    %vm1568 = vcmp.gt.f32.partialorder %v1566, %v1538
    %vm1569 = vcmp.gt.f32.partialorder %v1566, %v1543
    %vm1570 = vcmp.gt.f32.partialorder %v1566, %v1548
    %v1571 = vsel %vm1567, 1.0, 0.0
    %v1572 = vsel %vm1568, 1.0, 0.0
    %v1573 = vsel %vm1569, 1.0, 0.0
    %v1574 = vsel %vm1570, 1.0, 0.0
    %vm1575 = vcmp.eq.f32.partialorder %v1566, %v1533
    %vm1576 = vcmp.eq.f32.partialorder %v1566, %v1538
    %vm1577 = vcmp.eq.f32.partialorder %v1566, %v1543
    %vm1578 = vcmp.eq.f32.partialorder %v1566, %v1548
    %vm1579 = vmand %vm1575, %vm560
    %vm1580 = vmand %vm1576, %vm561
    %vm1581 = vmand %vm1577, %vm562
    %vm1582 = vmand %vm1578, %vm563
    %v1583 = vsel %vm1579, 1.0, 0.0
    %v1584 = vsel %vm1580, 1.0, 0.0
    %v1585 = vsel %vm1581, 1.0, 0.0
    %v1586 = vsel %vm1582, 1.0, 0.0
    %v1587 = vadd.f32 %v1571, %v1583
    %v1588 = vadd.f32 %v1572, %v1584
    %v1589 = vadd.f32 %v1573, %v1585
    %v1590 = vadd.f32 %v1574, %v1586
    %v1591 = vmul.f32 %v98, %v1587
    %v1592 = vmul.f32 %v99, %v1588
    %v1593 = vmul.f32 %v100, %v1589
    %v1594 = vmul.f32 %v101, %v1590
    %v1596 = vsel %vm217, %v1591, 0
    %v1599 = vsel %vm217, %v1592, 0
    %v1602 = vsel %vm217, %v1593, 0
    %v1605 = vsel %vm217, %v1594, 0
    %1607 = vmatprep.subr.mxu0 0.0
    %1608 = vmatpush1.msra.mxu0 %v786
    %1609 = vmatprep.subr.mxu0 0.0
    %1610 = vmatpush1.msra.mxu0 %v787
    %1611 = vmatprep.subr.mxu0 0.0
    %1612 = vmatpush1.msra.mxu0 %v788
    %1613 = vmatprep.subr.mxu0 0.0
    %1614 = vmatpush1.msra.mxu0 %v789
    %1615 = vmatprep.subr.mxu0 0.0
    %1616 = vmatpush1.msra.mxu0 0.0
    %1617 = vmatprep.subr.mxu0 0.0
    %1618 = vmatpush1.msra.mxu0 0.0
    %1619 = vmatprep.subr.mxu0 0.0
    %1620 = vmatpush1.msra.mxu0 0.0
    %1621 = vmatprep.subr.mxu0 0.0
    %1622 = vmatpush1.msra.mxu0 0.0
    %1623 = vmatprep.subr.mxu0 0.0
    %1624 = vmatpush1.msra.mxu0 0.0
    %1625 = vmatprep.subr.mxu0 0.0
    %1626 = vmatpush1.msra.mxu0 0.0
    %1627 = vmatprep.subr.mxu0 0.0
    %1628 = vmatpush1.msra.mxu0 0.0
    %1629 = vmatprep.subr.mxu0 0.0
    %1630 = vmatpush1.msra.mxu0 0.0
    %1631 = vmatprep.subr.mxu0 0.0
    %1632 = vmatpush1.msra.mxu0 0.0
    %1633 = vmatprep.subr.mxu0 0.0
    %1634 = vmatpush1.msra.mxu0 0.0
    %1635 = vmatprep.subr.mxu0 0.0
    %1636 = vmatpush1.msra.mxu0 0.0
    %1637 = vmatprep.subr.mxu0 0.0
    %1638 = vmatpush1.msra.mxu0 0.0
    %1639 = vmatprep.subr.mxu0 0.0
    %1640 = vmatpush1.msra.mxu0 0.0
    %1641 = vmatprep.subr.mxu0 0.0
    %1642 = vmatpush1.msra.mxu0 0.0
    %1643 = vmatprep.subr.mxu0 0.0
    %1644 = vmatpush1.msra.mxu0 0.0
    %1645 = vmatprep.subr.mxu0 0.0
    %1646 = vmatpush1.msra.mxu0 0.0
    %1647 = vmatprep.subr.mxu0 0.0
    %1648 = vmatpush1.msra.mxu0 0.0
    %1649 = vmatprep.subr.mxu0 0.0
    %1650 = vmatpush1.msra.mxu0 0.0
    %1651 = vmatprep.subr.mxu0 0.0
    %1652 = vmatpush1.msra.mxu0 0.0
    %1653 = vmatprep.subr.mxu0 0.0
    %1654 = vmatpush1.msra.mxu0 0.0
    %1655 = vmatprep.subr.mxu0 0.0
    %1656 = vmatpush1.msra.mxu0 0.0
    %1657 = vmatprep.subr.mxu0 0.0
    %1658 = vmatpush1.msra.mxu0 0.0
    %1659 = vmatprep.subr.mxu0 0.0
    %1660 = vmatpush1.msra.mxu0 0.0
    %1661 = vmatprep.subr.mxu0 0.0
    %1662 = vmatpush1.msra.mxu0 0.0
    %1663 = vmatprep.subr.mxu0 0.0
    %1664 = vmatpush1.msra.mxu0 0.0
    %1665 = vmatprep.subr.mxu0 0.0
    %1666 = vmatpush1.msra.mxu0 0.0
    %1667 = vmatprep.subr.mxu0 0.0
    %1668 = vmatpush1.msra.mxu0 0.0
    %1669 = vmatprep.subr.mxu0 0.0
    %1670 = vmatpush1.msra.mxu0 0.0
    %1671 = vmatprep.mubr.f32.mxu0 0.0
    %1672 = vmatmul.mubr.f32.gmra.mrb[0].mxu0 %v1596
    %v1673 = vpop.f32.mrb[0].mxu0
    %v1674 = vadd.f32 0.0, %v1673
    %v1675 = vpop.f32.mrb[0].mxu0
    %1676 = vmatprep.mubr.f32.mxu0 0.0
    %1677 = vmatmul.mubr.f32.gmra.mrb[0].mxu0 %v1599
    %v1678 = vpop.f32.mrb[0].mxu0
    %v1679 = vadd.f32 0.0, %v1678
    %v1680 = vpop.f32.mrb[0].mxu0
    %1681 = vmatprep.mubr.f32.mxu0 0.0
    %1682 = vmatmul.mubr.f32.gmra.mrb[0].mxu0 %v1602
    %v1683 = vpop.f32.mrb[0].mxu0
    %v1684 = vadd.f32 0.0, %v1683
    %v1685 = vpop.f32.mrb[0].mxu0
    %1686 = vmatprep.mubr.f32.mxu0 0.0
    %1687 = vmatmul.mubr.f32.gmra.mrb[0].mxu0 %v1605
    %v1688 = vpop.f32.mrb[0].mxu0
    %v1689 = vadd.f32 0.0, %v1688
    %v1690 = vpop.f32.mrb[0].mxu0
    %1691 = vdwg.mxu0
    %1692 = vmatprep.subr.mxu0 0.0
    %1693 = vmatpush1.msra.mxu0 %v786
    %1694 = vmatprep.subr.mxu0 0.0
    %1695 = vmatpush1.msra.mxu0 %v787
    %1696 = vmatprep.subr.mxu0 0.0
    %1697 = vmatpush1.msra.mxu0 %v788
    %1698 = vmatprep.subr.mxu0 0.0
    %1699 = vmatpush1.msra.mxu0 %v789
    %1700 = vmatprep.subr.mxu0 0.0
    %1701 = vmatpush1.msra.mxu0 0.0
    %1702 = vmatprep.subr.mxu0 0.0
    %1703 = vmatpush1.msra.mxu0 0.0
    %1704 = vmatprep.subr.mxu0 0.0
    %1705 = vmatpush1.msra.mxu0 0.0
    %1706 = vmatprep.subr.mxu0 0.0
    %1707 = vmatpush1.msra.mxu0 0.0
    %1708 = vmatprep.subr.mxu0 0.0
    %1709 = vmatpush1.msra.mxu0 0.0
    %1710 = vmatprep.subr.mxu0 0.0
    %1711 = vmatpush1.msra.mxu0 0.0
    %1712 = vmatprep.subr.mxu0 0.0
    %1713 = vmatpush1.msra.mxu0 0.0
    %1714 = vmatprep.subr.mxu0 0.0
    %1715 = vmatpush1.msra.mxu0 0.0
    %1716 = vmatprep.subr.mxu0 0.0
    %1717 = vmatpush1.msra.mxu0 0.0
    %1718 = vmatprep.subr.mxu0 0.0
    %1719 = vmatpush1.msra.mxu0 0.0
    %1720 = vmatprep.subr.mxu0 0.0
    %1721 = vmatpush1.msra.mxu0 0.0
    %1722 = vmatprep.subr.mxu0 0.0
    %1723 = vmatpush1.msra.mxu0 0.0
    %1724 = vmatprep.subr.mxu0 0.0
    %1725 = vmatpush1.msra.mxu0 0.0
    %1726 = vmatprep.subr.mxu0 0.0
    %1727 = vmatpush1.msra.mxu0 0.0
    %1728 = vmatprep.subr.mxu0 0.0
    %1729 = vmatpush1.msra.mxu0 0.0
    %1730 = vmatprep.subr.mxu0 0.0
    %1731 = vmatpush1.msra.mxu0 0.0
    %1732 = vmatprep.subr.mxu0 0.0
    %1733 = vmatpush1.msra.mxu0 0.0
    %1734 = vmatprep.subr.mxu0 0.0
    %1735 = vmatpush1.msra.mxu0 0.0
    %1736 = vmatprep.subr.mxu0 0.0
    %1737 = vmatpush1.msra.mxu0 0.0
    %1738 = vmatprep.subr.mxu0 0.0
    %1739 = vmatpush1.msra.mxu0 0.0
    %1740 = vmatprep.subr.mxu0 0.0
    %1741 = vmatpush1.msra.mxu0 0.0
    %1742 = vmatprep.subr.mxu0 0.0
    %1743 = vmatpush1.msra.mxu0 0.0
    %1744 = vmatprep.subr.mxu0 0.0
    %1745 = vmatpush1.msra.mxu0 0.0
    %1746 = vmatprep.subr.mxu0 0.0
    %1747 = vmatpush1.msra.mxu0 0.0
    %1748 = vmatprep.subr.mxu0 0.0
    %1749 = vmatpush1.msra.mxu0 0.0
    %1750 = vmatprep.subr.mxu0 0.0
    %1751 = vmatpush1.msra.mxu0 0.0
    %1752 = vmatprep.subr.mxu0 0.0
    %1753 = vmatpush1.msra.mxu0 0.0
    %1754 = vmatprep.subr.mxu0 0.0
    %1755 = vmatpush1.msra.mxu0 0.0
    %1756 = vmatprep.mubr.f32.mxu0 0.0
    %1757 = vmatmul.mubr.f32.gmra.mrb[0].mxu0 %v678
    %v1758 = vpop.f32.mrb[0].mxu0
    %v1759 = vadd.f32 0.0, %v1758
    %v1760 = vpop.f32.mrb[0].mxu0
    %1761 = vmatprep.mubr.f32.mxu0 0.0
    %1762 = vmatmul.mubr.f32.gmra.mrb[0].mxu0 %v681
    %v1763 = vpop.f32.mrb[0].mxu0
    %v1764 = vadd.f32 0.0, %v1763
    %v1765 = vpop.f32.mrb[0].mxu0
    %1766 = vmatprep.mubr.f32.mxu0 0.0
    %1767 = vmatmul.mubr.f32.gmra.mrb[0].mxu0 %v684
    %v1768 = vpop.f32.mrb[0].mxu0
    %v1769 = vadd.f32 0.0, %v1768
    %v1770 = vpop.f32.mrb[0].mxu0
    %1771 = vmatprep.mubr.f32.mxu0 0.0
    %1772 = vmatmul.mubr.f32.gmra.mrb[0].mxu0 %v687
    %v1773 = vpop.f32.mrb[0].mxu0
    %v1774 = vadd.f32 0.0, %v1773
    %v1775 = vpop.f32.mrb[0].mxu0
    %1776 = vdwg.mxu0
    %v1777 = vmul.f32 %v1759, 0.5
    %v1778 = vmul.f32 %v1764, 0.5
    %v1779 = vmul.f32 %v1769, 0.5
    %v1780 = vmul.f32 %v1774, 0.5
    %v1781 = vfloor.f32 %v1777
    %v1782 = vfloor.f32 %v1778
    %v1783 = vfloor.f32 %v1779
    %v1784 = vfloor.f32 %v1780
    %vm1785 = vcmp.lt.f32.partialorder %v1674, %v1781
    %vm1786 = vcmp.lt.f32.partialorder %v1679, %v1782
    %vm1787 = vcmp.lt.f32.partialorder %v1684, %v1783
    %vm1788 = vcmp.lt.f32.partialorder %v1689, %v1784
    %v1789 = vsel %vm1785, 1.0, 0.0
    %v1790 = vsel %vm1786, 1.0, 0.0
    %v1791 = vsel %vm1787, 1.0, 0.0
    %v1792 = vsel %vm1788, 1.0, 0.0
    %v1793 = vmul.f32 %v786, %v1789
    %v1794 = vmul.f32 %v787, %v1790
    %v1795 = vmul.f32 %v788, %v1791
    %v1796 = vmul.f32 %v789, %v1792
    %v1797 = vmul.f32 %v1334, %v1533
    %v1798 = vmul.f32 %v1335, %v1538
    %v1799 = vmul.f32 %v1336, %v1543
    %v1800 = vmul.f32 %v1337, %v1548
    %1802 = vset.pattern.permute.xlu0 0
    %1803 = vperm.xlu0 %1802, %v1793
    %v1804 = vpop.permute.xlu0 %1803
    %1807 = vset.pattern.permute.xlu0 0
    %1808 = vperm.xlu0 %1807, %v1794
    %v1809 = vpop.permute.xlu0 %1808
    %1812 = vset.pattern.permute.xlu0 0
    %1813 = vperm.xlu0 %1812, %v1795
    %v1814 = vpop.permute.xlu0 %1813
    %1817 = vset.pattern.permute.xlu0 0
    %1818 = vperm.xlu0 %1817, %v1796
    %v1819 = vpop.permute.xlu0 %1818
    %v1821 = vmul.f32 %v1797, %v1804
    %v1822 = vmul.f32 %v1798, %v1809
    %v1823 = vmul.f32 %v1799, %v1814
    %v1824 = vmul.f32 %v1800, %v1819
    %v1825 = vmul.f32 %v90, %v1804
    %v1826 = vmul.f32 %v91, %v1809
    %v1827 = vmul.f32 %v92, %v1814
    %v1828 = vmul.f32 %v93, %v1819
    %v1829 = vsel %vm217, %v1825, 0.0
    %v1830 = vsel %vm217, %v1826, 0.0
    %v1831 = vadd.f32 %v1829, %v1830
    %v1832 = vsel %vm217, %v1827, 0.0
    %v1833 = vadd.f32 %v1831, %v1832
    %v1834 = vsel %vm217, %v1828, 0.0
    %v1835 = vadd.f32 %v1833, %v1834
    %v1836 = vrot.slane %v1835, 4
    %v1837 = vadd.f32 %v1835, %v1836
    %v1838 = vrot.slane %v1837, 2
    %v1839 = vadd.f32 %v1837, %v1838
    %v1840 = vrot.slane %v1839, 1
    %v1841 = vadd.f32 %v1839, %v1840
    %vm1842 = vcmp.ne.f32.partialorder %v908, 0.0
    %vm1843 = vcmp.ne.f32.partialorder %v909, 0.0
    %vm1844 = vcmp.ne.f32.partialorder %v910, 0.0
    %vm1845 = vcmp.ne.f32.partialorder %v911, 0.0
    %v1846 = vsel %vm1842, 1.0, 0.0
    %v1847 = vsel %vm1843, 1.0, 0.0
    %v1848 = vsel %vm1844, 1.0, 0.0
    %v1849 = vsel %vm1845, 1.0, 0.0
    %v1850 = vmul.f32 %v1846, %v94
    %v1851 = vmul.f32 %v1847, %v95
    %v1852 = vmul.f32 %v1848, %v96
    %v1853 = vmul.f32 %v1849, %v97
    %v1854 = vmul.f32 %v1850, %v1804
    %v1855 = vmul.f32 %v1851, %v1809
    %v1856 = vmul.f32 %v1852, %v1814
    %v1857 = vmul.f32 %v1853, %v1819
    %v1858 = vmul.f32 %v1854, %v1841
    %v1859 = vmul.f32 %v1855, %v1841
    %v1860 = vmul.f32 %v1856, %v1841
    %v1861 = vmul.f32 %v1857, %v1841
    %v1862 = vadd.f32 %v1858, %v1825
    %v1863 = vadd.f32 %v1859, %v1826
    %v1864 = vadd.f32 %v1860, %v1827
    %v1865 = vadd.f32 %v1861, %v1828
    %v1866 = vsel %vm217, %v1862, 0.0
    %1867 = vadd.xlane.f32.xlu0 %v1866
    %v1868 = vpop.xlane.xlu0 %1867
    %v1869 = vsel %vm217, %v1863, 0.0
    %1870 = vadd.xlane.f32.xlu0 %v1869
    %v1871 = vpop.xlane.xlu0 %1870
    %v1872 = vsel %vm217, %v1864, 0.0
    %1873 = vadd.xlane.f32.xlu0 %v1872
    %v1874 = vpop.xlane.xlu0 %1873
    %v1875 = vsel %vm217, %v1865, 0.0
    %1876 = vadd.xlane.f32.xlu0 %v1875
    %v1877 = vpop.xlane.xlu0 %1876
    %vm1878 = vcmp.gt.f32.partialorder %v1868, 0.5
    %vm1879 = vcmp.gt.f32.partialorder %v1871, 0.5
    %vm1880 = vcmp.gt.f32.partialorder %v1874, 0.5
    %vm1881 = vcmp.gt.f32.partialorder %v1877, 0.5
    %v1882 = vmax.f32 %v1868, 1.0
    %v1883 = vmax.f32 %v1871, 1.0
    %v1884 = vmax.f32 %v1874, 1.0
    %v1885 = vmax.f32 %v1877, 1.0
    %v1886 = vrsqrt.pop %v1882
    %v1887 = vrsqrt.pop %v1883
    %v1888 = vrsqrt.pop %v1884
    %v1889 = vrsqrt.pop %v1885
    %v1890 = vsel %vm1878, %v1886, 0.0
    %v1891 = vsel %vm1879, %v1887, 0.0
    %v1892 = vsel %vm1880, %v1888, 0.0
    %v1893 = vsel %vm1881, %v1889, 0.0
    %v1894 = vmul.f32 %v1862, %v1890
    %v1895 = vmul.f32 %v1863, %v1891
    %v1896 = vmul.f32 %v1864, %v1892
    %v1897 = vmul.f32 %v1865, %v1893
    %v1898 = vmul.f32 %v90, %v1890
    %v1899 = vmul.f32 %v91, %v1891
    %v1900 = vmul.f32 %v92, %v1892
    %v1901 = vmul.f32 %v93, %v1893
    %v1902 = vsel %vm217, %v1898, 0.0
    %v1903 = vsel %vm217, %v1899, 0.0
    %v1904 = vadd.f32 %v1902, %v1903
    %v1905 = vsel %vm217, %v1900, 0.0
    %v1906 = vadd.f32 %v1904, %v1905
    %v1907 = vsel %vm217, %v1901, 0.0
    %v1908 = vadd.f32 %v1906, %v1907
    %v1909 = vrot.slane %v1908, 4
    %v1910 = vadd.f32 %v1908, %v1909
    %v1911 = vrot.slane %v1910, 2
    %v1912 = vadd.f32 %v1910, %v1911
    %v1913 = vrot.slane %v1912, 1
    %v1914 = vadd.f32 %v1912, %v1913
    %v1915 = vmul.f32 %v1894, %v1914
    %v1916 = vmul.f32 %v1895, %v1914
    %v1917 = vmul.f32 %v1896, %v1914
    %v1918 = vmul.f32 %v1897, %v1914
    %1919 = vmatprep.subr.mxu0 0.0
    %1920 = vmatpush1.msra.mxu0 %v1793
    %1921 = vmatprep.subr.mxu0 0.0
    %1922 = vmatpush1.msra.mxu0 %v1794
    %1923 = vmatprep.subr.mxu0 0.0
    %1924 = vmatpush1.msra.mxu0 %v1795
    %1925 = vmatprep.subr.mxu0 0.0
    %1926 = vmatpush1.msra.mxu0 %v1796
    %1927 = vmatprep.subr.mxu0 0.0
    %1928 = vmatpush1.msra.mxu0 0.0
    %1929 = vmatprep.subr.mxu0 0.0
    %1930 = vmatpush1.msra.mxu0 0.0
    %1931 = vmatprep.subr.mxu0 0.0
    %1932 = vmatpush1.msra.mxu0 0.0
    %1933 = vmatprep.subr.mxu0 0.0
    %1934 = vmatpush1.msra.mxu0 0.0
    %1935 = vmatprep.subr.mxu0 0.0
    %1936 = vmatpush1.msra.mxu0 0.0
    %1937 = vmatprep.subr.mxu0 0.0
    %1938 = vmatpush1.msra.mxu0 0.0
    %1939 = vmatprep.subr.mxu0 0.0
    %1940 = vmatpush1.msra.mxu0 0.0
    %1941 = vmatprep.subr.mxu0 0.0
    %1942 = vmatpush1.msra.mxu0 0.0
    %1943 = vmatprep.subr.mxu0 0.0
    %1944 = vmatpush1.msra.mxu0 0.0
    %1945 = vmatprep.subr.mxu0 0.0
    %1946 = vmatpush1.msra.mxu0 0.0
    %1947 = vmatprep.subr.mxu0 0.0
    %1948 = vmatpush1.msra.mxu0 0.0
    %1949 = vmatprep.subr.mxu0 0.0
    %1950 = vmatpush1.msra.mxu0 0.0
    %1951 = vmatprep.subr.mxu0 0.0
    %1952 = vmatpush1.msra.mxu0 0.0
    %1953 = vmatprep.subr.mxu0 0.0
    %1954 = vmatpush1.msra.mxu0 0.0
    %1955 = vmatprep.subr.mxu0 0.0
    %1956 = vmatpush1.msra.mxu0 0.0
    %1957 = vmatprep.subr.mxu0 0.0
    %1958 = vmatpush1.msra.mxu0 0.0
    %1959 = vmatprep.subr.mxu0 0.0
    %1960 = vmatpush1.msra.mxu0 0.0
    %1961 = vmatprep.subr.mxu0 0.0
    %1962 = vmatpush1.msra.mxu0 0.0
    %1963 = vmatprep.subr.mxu0 0.0
    %1964 = vmatpush1.msra.mxu0 0.0
    %1965 = vmatprep.subr.mxu0 0.0
    %1966 = vmatpush1.msra.mxu0 0.0
    %1967 = vmatprep.subr.mxu0 0.0
    %1968 = vmatpush1.msra.mxu0 0.0
    %1969 = vmatprep.subr.mxu0 0.0
    %1970 = vmatpush1.msra.mxu0 0.0
    %1971 = vmatprep.subr.mxu0 0.0
    %1972 = vmatpush1.msra.mxu0 0.0
    %1973 = vmatprep.subr.mxu0 0.0
    %1974 = vmatpush1.msra.mxu0 0.0
    %1975 = vmatprep.subr.mxu0 0.0
    %1976 = vmatpush1.msra.mxu0 0.0
    %1977 = vmatprep.subr.mxu0 0.0
    %1978 = vmatpush1.msra.mxu0 0.0
    %1979 = vmatprep.subr.mxu0 0.0
    %1980 = vmatpush1.msra.mxu0 0.0
    %1981 = vmatprep.subr.mxu0 0.0
    %1982 = vmatpush1.msra.mxu0 0.0
    %1983 = vmatprep.mubr.f32.mxu0 0.0
    %1984 = vmatmul.mubr.f32.gmra.mrb[0].mxu0 %v913
    %v1985 = vpop.f32.mrb[0].mxu0
    %v1986 = vadd.f32 0.0, %v1985
    %v1987 = vpop.f32.mrb[0].mxu0
    %1988 = vdwg.mxu0
    %1989 = vmatprep.subr.mxu0 0.0
    %1990 = vmatpush1.msra.mxu0 %v1821
    %1991 = vmatprep.subr.mxu0 0.0
    %1992 = vmatpush1.msra.mxu0 %v1822
    %1993 = vmatprep.subr.mxu0 0.0
    %1994 = vmatpush1.msra.mxu0 %v1823
    %1995 = vmatprep.subr.mxu0 0.0
    %1996 = vmatpush1.msra.mxu0 %v1824
    %1997 = vmatprep.subr.mxu0 0.0
    %1998 = vmatpush1.msra.mxu0 0.0
    %1999 = vmatprep.subr.mxu0 0.0
    %2000 = vmatpush1.msra.mxu0 0.0
    %2001 = vmatprep.subr.mxu0 0.0
    %2002 = vmatpush1.msra.mxu0 0.0
    %2003 = vmatprep.subr.mxu0 0.0
    %2004 = vmatpush1.msra.mxu0 0.0
    %2005 = vmatprep.subr.mxu0 0.0
    %2006 = vmatpush1.msra.mxu0 0.0
    %2007 = vmatprep.subr.mxu0 0.0
    %2008 = vmatpush1.msra.mxu0 0.0
    %2009 = vmatprep.subr.mxu0 0.0
    %2010 = vmatpush1.msra.mxu0 0.0
    %2011 = vmatprep.subr.mxu0 0.0
    %2012 = vmatpush1.msra.mxu0 0.0
    %2013 = vmatprep.subr.mxu0 0.0
    %2014 = vmatpush1.msra.mxu0 0.0
    %2015 = vmatprep.subr.mxu0 0.0
    %2016 = vmatpush1.msra.mxu0 0.0
    %2017 = vmatprep.subr.mxu0 0.0
    %2018 = vmatpush1.msra.mxu0 0.0
    %2019 = vmatprep.subr.mxu0 0.0
    %2020 = vmatpush1.msra.mxu0 0.0
    %2021 = vmatprep.subr.mxu0 0.0
    %2022 = vmatpush1.msra.mxu0 0.0
    %2023 = vmatprep.subr.mxu0 0.0
    %2024 = vmatpush1.msra.mxu0 0.0
    %2025 = vmatprep.subr.mxu0 0.0
    %2026 = vmatpush1.msra.mxu0 0.0
    %2027 = vmatprep.subr.mxu0 0.0
    %2028 = vmatpush1.msra.mxu0 0.0
    %2029 = vmatprep.subr.mxu0 0.0
    %2030 = vmatpush1.msra.mxu0 0.0
    %2031 = vmatprep.subr.mxu0 0.0
    %2032 = vmatpush1.msra.mxu0 0.0
    %2033 = vmatprep.subr.mxu0 0.0
    %2034 = vmatpush1.msra.mxu0 0.0
    %2035 = vmatprep.subr.mxu0 0.0
    %2036 = vmatpush1.msra.mxu0 0.0
    %2037 = vmatprep.subr.mxu0 0.0
    %2038 = vmatpush1.msra.mxu0 0.0
    %2039 = vmatprep.subr.mxu0 0.0
    %2040 = vmatpush1.msra.mxu0 0.0
    %2041 = vmatprep.subr.mxu0 0.0
    %2042 = vmatpush1.msra.mxu0 0.0
    %2043 = vmatprep.subr.mxu0 0.0
    %2044 = vmatpush1.msra.mxu0 0.0
    %2045 = vmatprep.subr.mxu0 0.0
    %2046 = vmatpush1.msra.mxu0 0.0
    %2047 = vmatprep.subr.mxu0 0.0
    %2048 = vmatpush1.msra.mxu0 0.0
    %2049 = vmatprep.subr.mxu0 0.0
    %2050 = vmatpush1.msra.mxu0 0.0
    %2051 = vmatprep.subr.mxu0 0.0
    %2052 = vmatpush1.msra.mxu0 0.0
    %2053 = vmatprep.mubr.f32.mxu0 0.0
    %2054 = vmatmul.mubr.f32.gmra.mrb[0].mxu0 %v913
    %v2055 = vpop.f32.mrb[0].mxu0
    %v2056 = vadd.f32 0.0, %v2055
    %v2057 = vpop.f32.mrb[0].mxu0
    %2058 = vdwg.mxu0
    %vm2059 = vcmp.gt.f32.partialorder %v1986, 0.5
    %v2060 = vmax.f32 %v1986, 1.0
    %v2061 = vrcp.pop %v2060
    %v2062 = vsel %vm2059, %v2061, 0.0
    %2064 = vset.pattern.permute.xlu0 0
    %2065 = vperm.xlu0 %2064, %v2062
    %v2066 = vpop.permute.xlu0 %2065
    %v2068 = vmul.f32 %v2056, %v2066
    %vm2069 = vcmp.gt.f32.partialorder %v1793, 0.5
    %vm2070 = vcmp.gt.f32.partialorder %v1794, 0.5
    %v2071 = vsel %vm2069, 1, 0
    %v2072 = vsel %vm2070, 1, 0
    %2073 = vset.pattern.permute.xlu0 0
    %2074 = vperm.xlu0 %2073, %v2071
    %v2075 = vpop.permute.xlu0 %2074
    %2076 = vset.pattern.permute.xlu0 0
    %2077 = vperm.xlu0 %2076, %v2072
    %v2078 = vpop.permute.xlu0 %2077
    %vm2079 = vcmp.eq.s32.totalorder %v2075, 1
    %vm2080 = vcmp.eq.s32.totalorder %v2078, 1
    %v2081 = vsel %vm2079, %v1821, -3e+38
    %v2082 = vsel %vm2080, %v1822, -3e+38
    %v2083 = vsel %vm217, %v2081, -inf
    %v2084 = vsel %vm217, %v2082, -inf
    %v2085 = vmax.f32 %v2083, %v2084
    %v2086 = vrot.slane %v2085, 4
    %v2087 = vmax.f32 %v2085, %v2086
    %v2088 = vrot.slane %v2087, 2
    %v2089 = vmax.f32 %v2087, %v2088
    %v2090 = vrot.slane %v2089, 1
    %v2091 = vmax.f32 %v2089, %v2090
    %v2092 = vmul.f32 %v1090, %v2091
    %v2093 = vadd.f32 %v2092, 0.0
    %vm2094 = vcmp.gt.f32.partialorder %v1795, 0.5
    %vm2095 = vcmp.gt.f32.partialorder %v1796, 0.5
    %v2096 = vsel %vm2094, 1, 0
    %v2097 = vsel %vm2095, 1, 0
    %2098 = vset.pattern.permute.xlu0 0
    %2099 = vperm.xlu0 %2098, %v2096
    %v2100 = vpop.permute.xlu0 %2099
    %2101 = vset.pattern.permute.xlu0 0
    %2102 = vperm.xlu0 %2101, %v2097
    %v2103 = vpop.permute.xlu0 %2102
    %vm2104 = vcmp.eq.s32.totalorder %v2100, 1
    %vm2105 = vcmp.eq.s32.totalorder %v2103, 1
    %v2106 = vsel %vm2104, %v1823, -3e+38
    %v2107 = vsel %vm2105, %v1824, -3e+38
    %v2108 = vsel %vm217, %v2106, -inf
    %v2109 = vsel %vm217, %v2107, -inf
    %v2110 = vmax.f32 %v2108, %v2109
    %v2111 = vrot.slane %v2110, 4
    %v2112 = vmax.f32 %v2110, %v2111
    %v2113 = vrot.slane %v2112, 2
    %v2114 = vmax.f32 %v2112, %v2113
    %v2115 = vrot.slane %v2114, 1
    %v2116 = vmax.f32 %v2114, %v2115
    %v2117 = vmul.f32 %v1118, %v2116
    %v2118 = vadd.f32 %v2093, %v2117
    %v2119 = vsel %vm2059, 1, 0
    %2120 = vset.pattern.permute.xlu0 0
    %2121 = vperm.xlu0 %2120, %v2119
    %v2122 = vpop.permute.xlu0 %2121
    %vm2123 = vcmp.eq.s32.totalorder %v2122, 1
    %v2124 = vsel %vm2123, %v2118, 0.0
    %v2125 = vadd.f32 %v1127, %v2068
    %v2126 = vadd.f32 %v1128, %v2124
    %v2127 = vld [vmem:[%s10] sm:$0xff]
    %v2128 = vld [vmem:[%s10 + $0x8] sm:$0xff]
    %v2129 = vld [vmem:[%s10 + $0x10] sm:$0xff]
    %v2130 = vld [vmem:[%s10 + $0x18] sm:$0xff]
    %v2132 = vsel %vm217, %v1821, 0
    %v2135 = vsel %vm217, %v1822, 0
    %v2138 = vsel %vm217, %v1823, 0
    %v2141 = vsel %vm217, %v1824, 0
    %2143 = vmatprep.subr.mxu0 0.0
    %2144 = vmatpush1.msra.mxu0 %v2127
    %2145 = vmatprep.subr.mxu0 0.0
    %2146 = vmatpush1.msra.mxu0 %v2128
    %2147 = vmatprep.subr.mxu0 0.0
    %2148 = vmatpush1.msra.mxu0 %v2129
    %2149 = vmatprep.subr.mxu0 0.0
    %2150 = vmatpush1.msra.mxu0 %v2130
    %2151 = vmatprep.subr.mxu0 0.0
    %2152 = vmatpush1.msra.mxu0 0.0
    %2153 = vmatprep.subr.mxu0 0.0
    %2154 = vmatpush1.msra.mxu0 0.0
    %2155 = vmatprep.subr.mxu0 0.0
    %2156 = vmatpush1.msra.mxu0 0.0
    %2157 = vmatprep.subr.mxu0 0.0
    %2158 = vmatpush1.msra.mxu0 0.0
    %2159 = vmatprep.subr.mxu0 0.0
    %2160 = vmatpush1.msra.mxu0 0.0
    %2161 = vmatprep.subr.mxu0 0.0
    %2162 = vmatpush1.msra.mxu0 0.0
    %2163 = vmatprep.subr.mxu0 0.0
    %2164 = vmatpush1.msra.mxu0 0.0
    %2165 = vmatprep.subr.mxu0 0.0
    %2166 = vmatpush1.msra.mxu0 0.0
    %2167 = vmatprep.subr.mxu0 0.0
    %2168 = vmatpush1.msra.mxu0 0.0
    %2169 = vmatprep.subr.mxu0 0.0
    %2170 = vmatpush1.msra.mxu0 0.0
    %2171 = vmatprep.subr.mxu0 0.0
    %2172 = vmatpush1.msra.mxu0 0.0
    %2173 = vmatprep.subr.mxu0 0.0
    %2174 = vmatpush1.msra.mxu0 0.0
    %2175 = vmatprep.subr.mxu0 0.0
    %2176 = vmatpush1.msra.mxu0 0.0
    %2177 = vmatprep.subr.mxu0 0.0
    %2178 = vmatpush1.msra.mxu0 0.0
    %2179 = vmatprep.subr.mxu0 0.0
    %2180 = vmatpush1.msra.mxu0 0.0
    %2181 = vmatprep.subr.mxu0 0.0
    %2182 = vmatpush1.msra.mxu0 0.0
    %2183 = vmatprep.subr.mxu0 0.0
    %2184 = vmatpush1.msra.mxu0 0.0
    %2185 = vmatprep.subr.mxu0 0.0
    %2186 = vmatpush1.msra.mxu0 0.0
    %2187 = vmatprep.subr.mxu0 0.0
    %2188 = vmatpush1.msra.mxu0 0.0
    %2189 = vmatprep.subr.mxu0 0.0
    %2190 = vmatpush1.msra.mxu0 0.0
    %2191 = vmatprep.subr.mxu0 0.0
    %2192 = vmatpush1.msra.mxu0 0.0
    %2193 = vmatprep.subr.mxu0 0.0
    %2194 = vmatpush1.msra.mxu0 0.0
    %2195 = vmatprep.subr.mxu0 0.0
    %2196 = vmatpush1.msra.mxu0 0.0
    %2197 = vmatprep.subr.mxu0 0.0
    %2198 = vmatpush1.msra.mxu0 0.0
    %2199 = vmatprep.subr.mxu0 0.0
    %2200 = vmatpush1.msra.mxu0 0.0
    %2201 = vmatprep.subr.mxu0 0.0
    %2202 = vmatpush1.msra.mxu0 0.0
    %2203 = vmatprep.subr.mxu0 0.0
    %2204 = vmatpush1.msra.mxu0 0.0
    %2205 = vmatprep.subr.mxu0 0.0
    %2206 = vmatpush1.msra.mxu0 0.0
    %2207 = vmatprep.mubr.f32.mxu0 0.0
    %2208 = vmatmul.mubr.f32.gmra.mrb[0].mxu0 %v2132
    %v2209 = vpop.f32.mrb[0].mxu0
    %v2210 = vadd.f32 0.0, %v2209
    %v2211 = vpop.f32.mrb[0].mxu0
    %2212 = vmatprep.mubr.f32.mxu0 0.0
    %2213 = vmatmul.mubr.f32.gmra.mrb[0].mxu0 %v2135
    %v2214 = vpop.f32.mrb[0].mxu0
    %v2215 = vadd.f32 0.0, %v2214
    %v2216 = vpop.f32.mrb[0].mxu0
    %2217 = vmatprep.mubr.f32.mxu0 0.0
    %2218 = vmatmul.mubr.f32.gmra.mrb[0].mxu0 %v2138
    %v2219 = vpop.f32.mrb[0].mxu0
    %v2220 = vadd.f32 0.0, %v2219
    %v2221 = vpop.f32.mrb[0].mxu0
    %2222 = vmatprep.mubr.f32.mxu0 0.0
    %2223 = vmatmul.mubr.f32.gmra.mrb[0].mxu0 %v2141
    %v2224 = vpop.f32.mrb[0].mxu0
    %v2225 = vadd.f32 0.0, %v2224
    %v2226 = vpop.f32.mrb[0].mxu0
    %2227 = vdwg.mxu0
    %v2228 = vld [vmem:[%s11] sm:$0x1]
    %v2230 = vlaneseq
    %v2231 = vshrl.u32 %v2230, 7
    %v2232 = vsub.s32 0, %v2231
    %v2233 = vrot.slane %v2228, %v2232
    %v2236 = vsel %vm217, %v1915, 0
    %v2239 = vsel %vm217, %v1916, 0
    %v2242 = vsel %vm217, %v1917, 0
    %v2245 = vsel %vm217, %v1918, 0
    %2247 = vmatprep.subr.mxu0 0.0
    %2248 = vmatpush1.msra.mxu0 %v2210
    %2249 = vmatprep.subr.mxu0 0.0
    %2250 = vmatpush1.msra.mxu0 %v2215
    %2251 = vmatprep.subr.mxu0 0.0
    %2252 = vmatpush1.msra.mxu0 %v2220
    %2253 = vmatprep.subr.mxu0 0.0
    %2254 = vmatpush1.msra.mxu0 %v2225
    %2255 = vmatprep.subr.mxu0 0.0
    %2256 = vmatpush1.msra.mxu0 0.0
    %2257 = vmatprep.subr.mxu0 0.0
    %2258 = vmatpush1.msra.mxu0 0.0
    %2259 = vmatprep.subr.mxu0 0.0
    %2260 = vmatpush1.msra.mxu0 0.0
    %2261 = vmatprep.subr.mxu0 0.0
    %2262 = vmatpush1.msra.mxu0 0.0
    %2263 = vmatprep.subr.mxu0 0.0
    %2264 = vmatpush1.msra.mxu0 0.0
    %2265 = vmatprep.subr.mxu0 0.0
    %2266 = vmatpush1.msra.mxu0 0.0
    %2267 = vmatprep.subr.mxu0 0.0
    %2268 = vmatpush1.msra.mxu0 0.0
    %2269 = vmatprep.subr.mxu0 0.0
    %2270 = vmatpush1.msra.mxu0 0.0
    %2271 = vmatprep.subr.mxu0 0.0
    %2272 = vmatpush1.msra.mxu0 0.0
    %2273 = vmatprep.subr.mxu0 0.0
    %2274 = vmatpush1.msra.mxu0 0.0
    %2275 = vmatprep.subr.mxu0 0.0
    %2276 = vmatpush1.msra.mxu0 0.0
    %2277 = vmatprep.subr.mxu0 0.0
    %2278 = vmatpush1.msra.mxu0 0.0
    %2279 = vmatprep.subr.mxu0 0.0
    %2280 = vmatpush1.msra.mxu0 0.0
    %2281 = vmatprep.subr.mxu0 0.0
    %2282 = vmatpush1.msra.mxu0 0.0
    %2283 = vmatprep.subr.mxu0 0.0
    %2284 = vmatpush1.msra.mxu0 0.0
    %2285 = vmatprep.subr.mxu0 0.0
    %2286 = vmatpush1.msra.mxu0 0.0
    %2287 = vmatprep.subr.mxu0 0.0
    %2288 = vmatpush1.msra.mxu0 0.0
    %2289 = vmatprep.subr.mxu0 0.0
    %2290 = vmatpush1.msra.mxu0 0.0
    %2291 = vmatprep.subr.mxu0 0.0
    %2292 = vmatpush1.msra.mxu0 0.0
    %2293 = vmatprep.subr.mxu0 0.0
    %2294 = vmatpush1.msra.mxu0 0.0
    %2295 = vmatprep.subr.mxu0 0.0
    %2296 = vmatpush1.msra.mxu0 0.0
    %2297 = vmatprep.subr.mxu0 0.0
    %2298 = vmatpush1.msra.mxu0 0.0
    %2299 = vmatprep.subr.mxu0 0.0
    %2300 = vmatpush1.msra.mxu0 0.0
    %2301 = vmatprep.subr.mxu0 0.0
    %2302 = vmatpush1.msra.mxu0 0.0
    %2303 = vmatprep.subr.mxu0 0.0
    %2304 = vmatpush1.msra.mxu0 0.0
    %2305 = vmatprep.subr.mxu0 0.0
    %2306 = vmatpush1.msra.mxu0 0.0
    %2307 = vmatprep.subr.mxu0 0.0
    %2308 = vmatpush1.msra.mxu0 0.0
    %2309 = vmatprep.subr.mxu0 0.0
    %2310 = vmatpush1.msra.mxu0 0.0
    %2311 = vmatprep.mubr.f32.mxu0 0.0
    %2312 = vmatmul.mubr.f32.gmra.mrb[0].mxu0 %v2236
    %v2313 = vpop.f32.mrb[0].mxu0
    %v2314 = vadd.f32 %v2233, %v2313
    %v2315 = vpop.f32.mrb[0].mxu0
    %2316 = vmatprep.mubr.f32.mxu0 0.0
    %2317 = vmatmul.mubr.f32.gmra.mrb[0].mxu0 %v2239
    %v2318 = vpop.f32.mrb[0].mxu0
    %v2319 = vadd.f32 %v2233, %v2318
    %v2320 = vpop.f32.mrb[0].mxu0
    %2321 = vmatprep.mubr.f32.mxu0 0.0
    %2322 = vmatmul.mubr.f32.gmra.mrb[0].mxu0 %v2242
    %v2323 = vpop.f32.mrb[0].mxu0
    %v2324 = vadd.f32 %v2233, %v2323
    %v2325 = vpop.f32.mrb[0].mxu0
    %2326 = vmatprep.mubr.f32.mxu0 0.0
    %2327 = vmatmul.mubr.f32.gmra.mrb[0].mxu0 %v2245
    %v2328 = vpop.f32.mrb[0].mxu0
    %v2329 = vadd.f32 %v2233, %v2328
    %v2330 = vpop.f32.mrb[0].mxu0
    %2331 = vdwg.mxu0
    %v2332 = vmax.f32 %v2314, 0.0
    %v2333 = vmax.f32 %v2319, 0.0
    %v2334 = vmax.f32 %v2324, 0.0
    %v2335 = vmax.f32 %v2329, 0.0
    %v2336 = vld [vmem:[%s12] sm:$0xff]
    %v2337 = vld [vmem:[%s12 + $0x8] sm:$0xff]
    %v2338 = vld [vmem:[%s12 + $0x10] sm:$0xff]
    %v2339 = vld [vmem:[%s12 + $0x18] sm:$0xff]
    %v2341 = vsel %vm217, %v2332, 0
    %v2344 = vsel %vm217, %v2333, 0
    %v2347 = vsel %vm217, %v2334, 0
    %v2350 = vsel %vm217, %v2335, 0
    %2352 = vmatprep.subr.mxu0 0.0
    %2353 = vmatpush1.msra.mxu0 %v2336
    %2354 = vmatprep.subr.mxu0 0.0
    %2355 = vmatpush1.msra.mxu0 %v2337
    %2356 = vmatprep.subr.mxu0 0.0
    %2357 = vmatpush1.msra.mxu0 %v2338
    %2358 = vmatprep.subr.mxu0 0.0
    %2359 = vmatpush1.msra.mxu0 %v2339
    %2360 = vmatprep.subr.mxu0 0.0
    %2361 = vmatpush1.msra.mxu0 0.0
    %2362 = vmatprep.subr.mxu0 0.0
    %2363 = vmatpush1.msra.mxu0 0.0
    %2364 = vmatprep.subr.mxu0 0.0
    %2365 = vmatpush1.msra.mxu0 0.0
    %2366 = vmatprep.subr.mxu0 0.0
    %2367 = vmatpush1.msra.mxu0 0.0
    %2368 = vmatprep.subr.mxu0 0.0
    %2369 = vmatpush1.msra.mxu0 0.0
    %2370 = vmatprep.subr.mxu0 0.0
    %2371 = vmatpush1.msra.mxu0 0.0
    %2372 = vmatprep.subr.mxu0 0.0
    %2373 = vmatpush1.msra.mxu0 0.0
    %2374 = vmatprep.subr.mxu0 0.0
    %2375 = vmatpush1.msra.mxu0 0.0
    %2376 = vmatprep.subr.mxu0 0.0
    %2377 = vmatpush1.msra.mxu0 0.0
    %2378 = vmatprep.subr.mxu0 0.0
    %2379 = vmatpush1.msra.mxu0 0.0
    %2380 = vmatprep.subr.mxu0 0.0
    %2381 = vmatpush1.msra.mxu0 0.0
    %2382 = vmatprep.subr.mxu0 0.0
    %2383 = vmatpush1.msra.mxu0 0.0
    %2384 = vmatprep.subr.mxu0 0.0
    %2385 = vmatpush1.msra.mxu0 0.0
    %2386 = vmatprep.subr.mxu0 0.0
    %2387 = vmatpush1.msra.mxu0 0.0
    %2388 = vmatprep.subr.mxu0 0.0
    %2389 = vmatpush1.msra.mxu0 0.0
    %2390 = vmatprep.subr.mxu0 0.0
    %2391 = vmatpush1.msra.mxu0 0.0
    %2392 = vmatprep.subr.mxu0 0.0
    %2393 = vmatpush1.msra.mxu0 0.0
    %2394 = vmatprep.subr.mxu0 0.0
    %2395 = vmatpush1.msra.mxu0 0.0
    %2396 = vmatprep.subr.mxu0 0.0
    %2397 = vmatpush1.msra.mxu0 0.0
    %2398 = vmatprep.subr.mxu0 0.0
    %2399 = vmatpush1.msra.mxu0 0.0
    %2400 = vmatprep.subr.mxu0 0.0
    %2401 = vmatpush1.msra.mxu0 0.0
    %2402 = vmatprep.subr.mxu0 0.0
    %2403 = vmatpush1.msra.mxu0 0.0
    %2404 = vmatprep.subr.mxu0 0.0
    %2405 = vmatpush1.msra.mxu0 0.0
    %2406 = vmatprep.subr.mxu0 0.0
    %2407 = vmatpush1.msra.mxu0 0.0
    %2408 = vmatprep.subr.mxu0 0.0
    %2409 = vmatpush1.msra.mxu0 0.0
    %2410 = vmatprep.subr.mxu0 0.0
    %2411 = vmatpush1.msra.mxu0 0.0
    %2412 = vmatprep.subr.mxu0 0.0
    %2413 = vmatpush1.msra.mxu0 0.0
    %2414 = vmatprep.subr.mxu0 0.0
    %2415 = vmatpush1.msra.mxu0 0.0
    %2416 = vmatprep.mubr.f32.mxu0 0.0
    %2417 = vmatmul.mubr.f32.gmra.mrb[0].mxu0 %v2341
    %v2418 = vpop.f32.mrb[0].mxu0
    %v2419 = vadd.f32 0.0, %v2418
    %v2420 = vpop.f32.mrb[0].mxu0
    %2421 = vmatprep.mubr.f32.mxu0 0.0
    %2422 = vmatmul.mubr.f32.gmra.mrb[0].mxu0 %v2344
    %v2423 = vpop.f32.mrb[0].mxu0
    %v2424 = vadd.f32 0.0, %v2423
    %v2425 = vpop.f32.mrb[0].mxu0
    %2426 = vmatprep.mubr.f32.mxu0 0.0
    %2427 = vmatmul.mubr.f32.gmra.mrb[0].mxu0 %v2347
    %v2428 = vpop.f32.mrb[0].mxu0
    %v2429 = vadd.f32 0.0, %v2428
    %v2430 = vpop.f32.mrb[0].mxu0
    %2431 = vmatprep.mubr.f32.mxu0 0.0
    %2432 = vmatmul.mubr.f32.gmra.mrb[0].mxu0 %v2350
    %v2433 = vpop.f32.mrb[0].mxu0
    %v2434 = vadd.f32 0.0, %v2433
    %v2435 = vpop.f32.mrb[0].mxu0
    %2436 = vdwg.mxu0
    %s2437 = sld [smem:[#allocation4]]
    %v2438 = vstv %s2437
    %2439 = vmatprep.subr.mxu0 0.0
    %2440 = vmatpush1.msra.mxu0 %v2419
    %2441 = vmatprep.subr.mxu0 0.0
    %2442 = vmatpush1.msra.mxu0 %v2424
    %2443 = vmatprep.subr.mxu0 0.0
    %2444 = vmatpush1.msra.mxu0 %v2429
    %2445 = vmatprep.subr.mxu0 0.0
    %2446 = vmatpush1.msra.mxu0 %v2434
    %2447 = vmatprep.subr.mxu0 0.0
    %2448 = vmatpush1.msra.mxu0 0.0
    %2449 = vmatprep.subr.mxu0 0.0
    %2450 = vmatpush1.msra.mxu0 0.0
    %2451 = vmatprep.subr.mxu0 0.0
    %2452 = vmatpush1.msra.mxu0 0.0
    %2453 = vmatprep.subr.mxu0 0.0
    %2454 = vmatpush1.msra.mxu0 0.0
    %2455 = vmatprep.subr.mxu0 0.0
    %2456 = vmatpush1.msra.mxu0 0.0
    %2457 = vmatprep.subr.mxu0 0.0
    %2458 = vmatpush1.msra.mxu0 0.0
    %2459 = vmatprep.subr.mxu0 0.0
    %2460 = vmatpush1.msra.mxu0 0.0
    %2461 = vmatprep.subr.mxu0 0.0
    %2462 = vmatpush1.msra.mxu0 0.0
    %2463 = vmatprep.subr.mxu0 0.0
    %2464 = vmatpush1.msra.mxu0 0.0
    %2465 = vmatprep.subr.mxu0 0.0
    %2466 = vmatpush1.msra.mxu0 0.0
    %2467 = vmatprep.subr.mxu0 0.0
    %2468 = vmatpush1.msra.mxu0 0.0
    %2469 = vmatprep.subr.mxu0 0.0
    %2470 = vmatpush1.msra.mxu0 0.0
    %2471 = vmatprep.subr.mxu0 0.0
    %2472 = vmatpush1.msra.mxu0 0.0
    %2473 = vmatprep.subr.mxu0 0.0
    %2474 = vmatpush1.msra.mxu0 0.0
    %2475 = vmatprep.subr.mxu0 0.0
    %2476 = vmatpush1.msra.mxu0 0.0
    %2477 = vmatprep.subr.mxu0 0.0
    %2478 = vmatpush1.msra.mxu0 0.0
    %2479 = vmatprep.subr.mxu0 0.0
    %2480 = vmatpush1.msra.mxu0 0.0
    %2481 = vmatprep.subr.mxu0 0.0
    %2482 = vmatpush1.msra.mxu0 0.0
    %2483 = vmatprep.subr.mxu0 0.0
    %2484 = vmatpush1.msra.mxu0 0.0
    %2485 = vmatprep.subr.mxu0 0.0
    %2486 = vmatpush1.msra.mxu0 0.0
    %2487 = vmatprep.subr.mxu0 0.0
    %2488 = vmatpush1.msra.mxu0 0.0
    %2489 = vmatprep.subr.mxu0 0.0
    %2490 = vmatpush1.msra.mxu0 0.0
    %2491 = vmatprep.subr.mxu0 0.0
    %2492 = vmatpush1.msra.mxu0 0.0
    %2493 = vmatprep.subr.mxu0 0.0
    %2494 = vmatpush1.msra.mxu0 0.0
    %2495 = vmatprep.subr.mxu0 0.0
    %2496 = vmatpush1.msra.mxu0 0.0
    %2497 = vmatprep.subr.mxu0 0.0
    %2498 = vmatpush1.msra.mxu0 0.0
    %2499 = vmatprep.subr.mxu0 0.0
    %2500 = vmatpush1.msra.mxu0 0.0
    %2501 = vmatprep.subr.mxu0 0.0
    %2502 = vmatpush1.msra.mxu0 0.0
    %2503 = vmatprep.mubr.f32.mxu0 0.0
    %2504 = vmatmul.mubr.f32.gmra.mrb[0].mxu0 %v2236
    %v2505 = vpop.f32.mrb[0].mxu0
    %v2506 = vadd.f32 %v2438, %v2505
    %v2507 = vpop.f32.mrb[0].mxu0
    %2508 = vmatprep.mubr.f32.mxu0 0.0
    %2509 = vmatmul.mubr.f32.gmra.mrb[0].mxu0 %v2239
    %v2510 = vpop.f32.mrb[0].mxu0
    %v2511 = vadd.f32 %v2438, %v2510
    %v2512 = vpop.f32.mrb[0].mxu0
    %2513 = vmatprep.mubr.f32.mxu0 0.0
    %2514 = vmatmul.mubr.f32.gmra.mrb[0].mxu0 %v2242
    %v2515 = vpop.f32.mrb[0].mxu0
    %v2516 = vadd.f32 %v2438, %v2515
    %v2517 = vpop.f32.mrb[0].mxu0
    %2518 = vmatprep.mubr.f32.mxu0 0.0
    %2519 = vmatmul.mubr.f32.gmra.mrb[0].mxu0 %v2245
    %v2520 = vpop.f32.mrb[0].mxu0
    %v2521 = vadd.f32 %v2438, %v2520
    %v2522 = vpop.f32.mrb[0].mxu0
    %2523 = vdwg.mxu0
    %v2524 = vtanh.pop %v2506
    %v2525 = vtanh.pop %v2511
    %v2526 = vtanh.pop %v2516
    %v2527 = vtanh.pop %v2521
    %2529 = vset.pattern.permute.xlu0 0
    %2530 = vperm.xlu0 %2529, %v2524
    %v2531 = vpop.permute.xlu0 %2530
    %2534 = vset.pattern.permute.xlu0 0
    %2535 = vperm.xlu0 %2534, %v2525
    %v2536 = vpop.permute.xlu0 %2535
    %2539 = vset.pattern.permute.xlu0 0
    %2540 = vperm.xlu0 %2539, %v2526
    %v2541 = vpop.permute.xlu0 %2540
    %2544 = vset.pattern.permute.xlu0 0
    %2545 = vperm.xlu0 %2544, %v2527
    %v2546 = vpop.permute.xlu0 %2545
    %v2548 = vmul.f32 %v90, %v2531
    %v2549 = vmul.f32 %v91, %v2536
    %v2550 = vmul.f32 %v92, %v2541
    %v2551 = vmul.f32 %v93, %v2546
    %v2552 = vsel %vm217, %v2548, 0.0
    %v2553 = vsel %vm217, %v2549, 0.0
    %v2554 = vadd.f32 %v2552, %v2553
    %v2555 = vsel %vm217, %v2550, 0.0
    %v2556 = vadd.f32 %v2554, %v2555
    %v2557 = vsel %vm217, %v2551, 0.0
    %v2558 = vadd.f32 %v2556, %v2557
    %v2559 = vrot.slane %v2558, 4
    %v2560 = vadd.f32 %v2558, %v2559
    %v2561 = vrot.slane %v2560, 2
    %v2562 = vadd.f32 %v2560, %v2561
    %v2563 = vrot.slane %v2562, 1
    %v2564 = vadd.f32 %v2562, %v2563
    %vm2565 = vcmp.gt.f32.partialorder %v2564, %v2531
    %vm2566 = vcmp.gt.f32.partialorder %v2564, %v2536
    %vm2567 = vcmp.gt.f32.partialorder %v2564, %v2541
    %vm2568 = vcmp.gt.f32.partialorder %v2564, %v2546
    %v2569 = vsel %vm2565, 1.0, 0.0
    %v2570 = vsel %vm2566, 1.0, 0.0
    %v2571 = vsel %vm2567, 1.0, 0.0
    %v2572 = vsel %vm2568, 1.0, 0.0
    %vm2573 = vcmp.eq.f32.partialorder %v2564, %v2531
    %vm2574 = vcmp.eq.f32.partialorder %v2564, %v2536
    %vm2575 = vcmp.eq.f32.partialorder %v2564, %v2541
    %vm2576 = vcmp.eq.f32.partialorder %v2564, %v2546
    %vm2577 = vmand %vm2573, %vm560
    %vm2578 = vmand %vm2574, %vm561
    %vm2579 = vmand %vm2575, %vm562
    %vm2580 = vmand %vm2576, %vm563
    %v2581 = vsel %vm2577, 1.0, 0.0
    %v2582 = vsel %vm2578, 1.0, 0.0
    %v2583 = vsel %vm2579, 1.0, 0.0
    %v2584 = vsel %vm2580, 1.0, 0.0
    %v2585 = vadd.f32 %v2569, %v2581
    %v2586 = vadd.f32 %v2570, %v2582
    %v2587 = vadd.f32 %v2571, %v2583
    %v2588 = vadd.f32 %v2572, %v2584
    %v2589 = vmul.f32 %v98, %v2585
    %v2590 = vmul.f32 %v99, %v2586
    %v2591 = vmul.f32 %v100, %v2587
    %v2592 = vmul.f32 %v101, %v2588
    %v2594 = vsel %vm217, %v2589, 0
    %v2597 = vsel %vm217, %v2590, 0
    %v2600 = vsel %vm217, %v2591, 0
    %v2603 = vsel %vm217, %v2592, 0
    %2605 = vmatprep.subr.mxu0 0.0
    %2606 = vmatpush1.msra.mxu0 %v1793
    %2607 = vmatprep.subr.mxu0 0.0
    %2608 = vmatpush1.msra.mxu0 %v1794
    %2609 = vmatprep.subr.mxu0 0.0
    %2610 = vmatpush1.msra.mxu0 %v1795
    %2611 = vmatprep.subr.mxu0 0.0
    %2612 = vmatpush1.msra.mxu0 %v1796
    %2613 = vmatprep.subr.mxu0 0.0
    %2614 = vmatpush1.msra.mxu0 0.0
    %2615 = vmatprep.subr.mxu0 0.0
    %2616 = vmatpush1.msra.mxu0 0.0
    %2617 = vmatprep.subr.mxu0 0.0
    %2618 = vmatpush1.msra.mxu0 0.0
    %2619 = vmatprep.subr.mxu0 0.0
    %2620 = vmatpush1.msra.mxu0 0.0
    %2621 = vmatprep.subr.mxu0 0.0
    %2622 = vmatpush1.msra.mxu0 0.0
    %2623 = vmatprep.subr.mxu0 0.0
    %2624 = vmatpush1.msra.mxu0 0.0
    %2625 = vmatprep.subr.mxu0 0.0
    %2626 = vmatpush1.msra.mxu0 0.0
    %2627 = vmatprep.subr.mxu0 0.0
    %2628 = vmatpush1.msra.mxu0 0.0
    %2629 = vmatprep.subr.mxu0 0.0
    %2630 = vmatpush1.msra.mxu0 0.0
    %2631 = vmatprep.subr.mxu0 0.0
    %2632 = vmatpush1.msra.mxu0 0.0
    %2633 = vmatprep.subr.mxu0 0.0
    %2634 = vmatpush1.msra.mxu0 0.0
    %2635 = vmatprep.subr.mxu0 0.0
    %2636 = vmatpush1.msra.mxu0 0.0
    %2637 = vmatprep.subr.mxu0 0.0
    %2638 = vmatpush1.msra.mxu0 0.0
    %2639 = vmatprep.subr.mxu0 0.0
    %2640 = vmatpush1.msra.mxu0 0.0
    %2641 = vmatprep.subr.mxu0 0.0
    %2642 = vmatpush1.msra.mxu0 0.0
    %2643 = vmatprep.subr.mxu0 0.0
    %2644 = vmatpush1.msra.mxu0 0.0
    %2645 = vmatprep.subr.mxu0 0.0
    %2646 = vmatpush1.msra.mxu0 0.0
    %2647 = vmatprep.subr.mxu0 0.0
    %2648 = vmatpush1.msra.mxu0 0.0
    %2649 = vmatprep.subr.mxu0 0.0
    %2650 = vmatpush1.msra.mxu0 0.0
    %2651 = vmatprep.subr.mxu0 0.0
    %2652 = vmatpush1.msra.mxu0 0.0
    %2653 = vmatprep.subr.mxu0 0.0
    %2654 = vmatpush1.msra.mxu0 0.0
    %2655 = vmatprep.subr.mxu0 0.0
    %2656 = vmatpush1.msra.mxu0 0.0
    %2657 = vmatprep.subr.mxu0 0.0
    %2658 = vmatpush1.msra.mxu0 0.0
    %2659 = vmatprep.subr.mxu0 0.0
    %2660 = vmatpush1.msra.mxu0 0.0
    %2661 = vmatprep.subr.mxu0 0.0
    %2662 = vmatpush1.msra.mxu0 0.0
    %2663 = vmatprep.subr.mxu0 0.0
    %2664 = vmatpush1.msra.mxu0 0.0
    %2665 = vmatprep.subr.mxu0 0.0
    %2666 = vmatpush1.msra.mxu0 0.0
    %2667 = vmatprep.subr.mxu0 0.0
    %2668 = vmatpush1.msra.mxu0 0.0
    %2669 = vmatprep.mubr.f32.mxu0 0.0
    %2670 = vmatmul.mubr.f32.gmra.mrb[0].mxu0 %v2594
    %v2671 = vpop.f32.mrb[0].mxu0
    %v2672 = vadd.f32 0.0, %v2671
    %v2673 = vpop.f32.mrb[0].mxu0
    %2674 = vmatprep.mubr.f32.mxu0 0.0
    %2675 = vmatmul.mubr.f32.gmra.mrb[0].mxu0 %v2597
    %v2676 = vpop.f32.mrb[0].mxu0
    %v2677 = vadd.f32 0.0, %v2676
    %v2678 = vpop.f32.mrb[0].mxu0
    %2679 = vmatprep.mubr.f32.mxu0 0.0
    %2680 = vmatmul.mubr.f32.gmra.mrb[0].mxu0 %v2600
    %v2681 = vpop.f32.mrb[0].mxu0
    %v2682 = vadd.f32 0.0, %v2681
    %v2683 = vpop.f32.mrb[0].mxu0
    %2684 = vmatprep.mubr.f32.mxu0 0.0
    %2685 = vmatmul.mubr.f32.gmra.mrb[0].mxu0 %v2603
    %v2686 = vpop.f32.mrb[0].mxu0
    %v2687 = vadd.f32 0.0, %v2686
    %v2688 = vpop.f32.mrb[0].mxu0
    %2689 = vdwg.mxu0
    %2690 = vmatprep.subr.mxu0 0.0
    %2691 = vmatpush1.msra.mxu0 %v1793
    %2692 = vmatprep.subr.mxu0 0.0
    %2693 = vmatpush1.msra.mxu0 %v1794
    %2694 = vmatprep.subr.mxu0 0.0
    %2695 = vmatpush1.msra.mxu0 %v1795
    %2696 = vmatprep.subr.mxu0 0.0
    %2697 = vmatpush1.msra.mxu0 %v1796
    %2698 = vmatprep.subr.mxu0 0.0
    %2699 = vmatpush1.msra.mxu0 0.0
    %2700 = vmatprep.subr.mxu0 0.0
    %2701 = vmatpush1.msra.mxu0 0.0
    %2702 = vmatprep.subr.mxu0 0.0
    %2703 = vmatpush1.msra.mxu0 0.0
    %2704 = vmatprep.subr.mxu0 0.0
    %2705 = vmatpush1.msra.mxu0 0.0
    %2706 = vmatprep.subr.mxu0 0.0
    %2707 = vmatpush1.msra.mxu0 0.0
    %2708 = vmatprep.subr.mxu0 0.0
    %2709 = vmatpush1.msra.mxu0 0.0
    %2710 = vmatprep.subr.mxu0 0.0
    %2711 = vmatpush1.msra.mxu0 0.0
    %2712 = vmatprep.subr.mxu0 0.0
    %2713 = vmatpush1.msra.mxu0 0.0
    %2714 = vmatprep.subr.mxu0 0.0
    %2715 = vmatpush1.msra.mxu0 0.0
    %2716 = vmatprep.subr.mxu0 0.0
    %2717 = vmatpush1.msra.mxu0 0.0
    %2718 = vmatprep.subr.mxu0 0.0
    %2719 = vmatpush1.msra.mxu0 0.0
    %2720 = vmatprep.subr.mxu0 0.0
    %2721 = vmatpush1.msra.mxu0 0.0
    %2722 = vmatprep.subr.mxu0 0.0
    %2723 = vmatpush1.msra.mxu0 0.0
    %2724 = vmatprep.subr.mxu0 0.0
    %2725 = vmatpush1.msra.mxu0 0.0
    %2726 = vmatprep.subr.mxu0 0.0
    %2727 = vmatpush1.msra.mxu0 0.0
    %2728 = vmatprep.subr.mxu0 0.0
    %2729 = vmatpush1.msra.mxu0 0.0
    %2730 = vmatprep.subr.mxu0 0.0
    %2731 = vmatpush1.msra.mxu0 0.0
    %2732 = vmatprep.subr.mxu0 0.0
    %2733 = vmatpush1.msra.mxu0 0.0
    %2734 = vmatprep.subr.mxu0 0.0
    %2735 = vmatpush1.msra.mxu0 0.0
    %2736 = vmatprep.subr.mxu0 0.0
    %2737 = vmatpush1.msra.mxu0 0.0
    %2738 = vmatprep.subr.mxu0 0.0
    %2739 = vmatpush1.msra.mxu0 0.0
    %2740 = vmatprep.subr.mxu0 0.0
    %2741 = vmatpush1.msra.mxu0 0.0
    %2742 = vmatprep.subr.mxu0 0.0
    %2743 = vmatpush1.msra.mxu0 0.0
    %2744 = vmatprep.subr.mxu0 0.0
    %2745 = vmatpush1.msra.mxu0 0.0
    %2746 = vmatprep.subr.mxu0 0.0
    %2747 = vmatpush1.msra.mxu0 0.0
    %2748 = vmatprep.subr.mxu0 0.0
    %2749 = vmatpush1.msra.mxu0 0.0
    %2750 = vmatprep.subr.mxu0 0.0
    %2751 = vmatpush1.msra.mxu0 0.0
    %2752 = vmatprep.subr.mxu0 0.0
    %2753 = vmatpush1.msra.mxu0 0.0
    %2754 = vmatprep.mubr.f32.mxu0 0.0
    %2755 = vmatmul.mubr.f32.gmra.mrb[0].mxu0 %v678
    %v2756 = vpop.f32.mrb[0].mxu0
    %v2757 = vadd.f32 0.0, %v2756
    %v2758 = vpop.f32.mrb[0].mxu0
    %2759 = vmatprep.mubr.f32.mxu0 0.0
    %2760 = vmatmul.mubr.f32.gmra.mrb[0].mxu0 %v681
    %v2761 = vpop.f32.mrb[0].mxu0
    %v2762 = vadd.f32 0.0, %v2761
    %v2763 = vpop.f32.mrb[0].mxu0
    %2764 = vmatprep.mubr.f32.mxu0 0.0
    %2765 = vmatmul.mubr.f32.gmra.mrb[0].mxu0 %v684
    %v2766 = vpop.f32.mrb[0].mxu0
    %v2767 = vadd.f32 0.0, %v2766
    %v2768 = vpop.f32.mrb[0].mxu0
    %2769 = vmatprep.mubr.f32.mxu0 0.0
    %2770 = vmatmul.mubr.f32.gmra.mrb[0].mxu0 %v687
    %v2771 = vpop.f32.mrb[0].mxu0
    %v2772 = vadd.f32 0.0, %v2771
    %v2773 = vpop.f32.mrb[0].mxu0
    %2774 = vdwg.mxu0
    %v2775 = vmul.f32 %v2757, 0.5
    %v2776 = vmul.f32 %v2762, 0.5
    %v2777 = vmul.f32 %v2767, 0.5
    %v2778 = vmul.f32 %v2772, 0.5
    %v2779 = vfloor.f32 %v2775
    %v2780 = vfloor.f32 %v2776
    %v2781 = vfloor.f32 %v2777
    %v2782 = vfloor.f32 %v2778
    %vm2783 = vcmp.lt.f32.partialorder %v2672, %v2779
    %vm2784 = vcmp.lt.f32.partialorder %v2677, %v2780
    %vm2785 = vcmp.lt.f32.partialorder %v2682, %v2781
    %vm2786 = vcmp.lt.f32.partialorder %v2687, %v2782
    %v2787 = vsel %vm2783, 1.0, 0.0
    %v2788 = vsel %vm2784, 1.0, 0.0
    %v2789 = vsel %vm2785, 1.0, 0.0
    %v2790 = vsel %vm2786, 1.0, 0.0
    %v2791 = vmul.f32 %v1793, %v2787
    %v2792 = vmul.f32 %v1794, %v2788
    %v2793 = vmul.f32 %v1795, %v2789
    %v2794 = vmul.f32 %v1796, %v2790
    %v2795 = vmul.f32 %v2332, %v2531
    %v2796 = vmul.f32 %v2333, %v2536
    %v2797 = vmul.f32 %v2334, %v2541
    %v2798 = vmul.f32 %v2335, %v2546
    %2800 = vset.pattern.permute.xlu0 0
    %2801 = vperm.xlu0 %2800, %v2791
    %v2802 = vpop.permute.xlu0 %2801
    %2805 = vset.pattern.permute.xlu0 0
    %2806 = vperm.xlu0 %2805, %v2792
    %v2807 = vpop.permute.xlu0 %2806
    %2810 = vset.pattern.permute.xlu0 0
    %2811 = vperm.xlu0 %2810, %v2793
    %v2812 = vpop.permute.xlu0 %2811
    %2815 = vset.pattern.permute.xlu0 0
    %2816 = vperm.xlu0 %2815, %v2794
    %v2817 = vpop.permute.xlu0 %2816
    %v2819 = vmul.f32 %v2795, %v2802
    %v2820 = vmul.f32 %v2796, %v2807
    %v2821 = vmul.f32 %v2797, %v2812
    %v2822 = vmul.f32 %v2798, %v2817
    %2823 = vmatprep.subr.mxu0 0.0
    %2824 = vmatpush1.msra.mxu0 %v2791
    %2825 = vmatprep.subr.mxu0 0.0
    %2826 = vmatpush1.msra.mxu0 %v2792
    %2827 = vmatprep.subr.mxu0 0.0
    %2828 = vmatpush1.msra.mxu0 %v2793
    %2829 = vmatprep.subr.mxu0 0.0
    %2830 = vmatpush1.msra.mxu0 %v2794
    %2831 = vmatprep.subr.mxu0 0.0
    %2832 = vmatpush1.msra.mxu0 0.0
    %2833 = vmatprep.subr.mxu0 0.0
    %2834 = vmatpush1.msra.mxu0 0.0
    %2835 = vmatprep.subr.mxu0 0.0
    %2836 = vmatpush1.msra.mxu0 0.0
    %2837 = vmatprep.subr.mxu0 0.0
    %2838 = vmatpush1.msra.mxu0 0.0
    %2839 = vmatprep.subr.mxu0 0.0
    %2840 = vmatpush1.msra.mxu0 0.0
    %2841 = vmatprep.subr.mxu0 0.0
    %2842 = vmatpush1.msra.mxu0 0.0
    %2843 = vmatprep.subr.mxu0 0.0
    %2844 = vmatpush1.msra.mxu0 0.0
    %2845 = vmatprep.subr.mxu0 0.0
    %2846 = vmatpush1.msra.mxu0 0.0
    %2847 = vmatprep.subr.mxu0 0.0
    %2848 = vmatpush1.msra.mxu0 0.0
    %2849 = vmatprep.subr.mxu0 0.0
    %2850 = vmatpush1.msra.mxu0 0.0
    %2851 = vmatprep.subr.mxu0 0.0
    %2852 = vmatpush1.msra.mxu0 0.0
    %2853 = vmatprep.subr.mxu0 0.0
    %2854 = vmatpush1.msra.mxu0 0.0
    %2855 = vmatprep.subr.mxu0 0.0
    %2856 = vmatpush1.msra.mxu0 0.0
    %2857 = vmatprep.subr.mxu0 0.0
    %2858 = vmatpush1.msra.mxu0 0.0
    %2859 = vmatprep.subr.mxu0 0.0
    %2860 = vmatpush1.msra.mxu0 0.0
    %2861 = vmatprep.subr.mxu0 0.0
    %2862 = vmatpush1.msra.mxu0 0.0
    %2863 = vmatprep.subr.mxu0 0.0
    %2864 = vmatpush1.msra.mxu0 0.0
    %2865 = vmatprep.subr.mxu0 0.0
    %2866 = vmatpush1.msra.mxu0 0.0
    %2867 = vmatprep.subr.mxu0 0.0
    %2868 = vmatpush1.msra.mxu0 0.0
    %2869 = vmatprep.subr.mxu0 0.0
    %2870 = vmatpush1.msra.mxu0 0.0
    %2871 = vmatprep.subr.mxu0 0.0
    %2872 = vmatpush1.msra.mxu0 0.0
    %2873 = vmatprep.subr.mxu0 0.0
    %2874 = vmatpush1.msra.mxu0 0.0
    %2875 = vmatprep.subr.mxu0 0.0
    %2876 = vmatpush1.msra.mxu0 0.0
    %2877 = vmatprep.subr.mxu0 0.0
    %2878 = vmatpush1.msra.mxu0 0.0
    %2879 = vmatprep.subr.mxu0 0.0
    %2880 = vmatpush1.msra.mxu0 0.0
    %2881 = vmatprep.subr.mxu0 0.0
    %2882 = vmatpush1.msra.mxu0 0.0
    %2883 = vmatprep.subr.mxu0 0.0
    %2884 = vmatpush1.msra.mxu0 0.0
    %2885 = vmatprep.subr.mxu0 0.0
    %2886 = vmatpush1.msra.mxu0 0.0
    %2887 = vmatprep.mubr.f32.mxu0 0.0
    %2888 = vmatmul.mubr.f32.gmra.mrb[0].mxu0 %v913
    %v2889 = vpop.f32.mrb[0].mxu0
    %v2890 = vadd.f32 0.0, %v2889
    %v2891 = vpop.f32.mrb[0].mxu0
    %2892 = vdwg.mxu0
    %2893 = vmatprep.subr.mxu0 0.0
    %2894 = vmatpush1.msra.mxu0 %v2819
    %2895 = vmatprep.subr.mxu0 0.0
    %2896 = vmatpush1.msra.mxu0 %v2820
    %2897 = vmatprep.subr.mxu0 0.0
    %2898 = vmatpush1.msra.mxu0 %v2821
    %2899 = vmatprep.subr.mxu0 0.0
    %2900 = vmatpush1.msra.mxu0 %v2822
    %2901 = vmatprep.subr.mxu0 0.0
    %2902 = vmatpush1.msra.mxu0 0.0
    %2903 = vmatprep.subr.mxu0 0.0
    %2904 = vmatpush1.msra.mxu0 0.0
    %2905 = vmatprep.subr.mxu0 0.0
    %2906 = vmatpush1.msra.mxu0 0.0
    %2907 = vmatprep.subr.mxu0 0.0
    %2908 = vmatpush1.msra.mxu0 0.0
    %2909 = vmatprep.subr.mxu0 0.0
    %2910 = vmatpush1.msra.mxu0 0.0
    %2911 = vmatprep.subr.mxu0 0.0
    %2912 = vmatpush1.msra.mxu0 0.0
    %2913 = vmatprep.subr.mxu0 0.0
    %2914 = vmatpush1.msra.mxu0 0.0
    %2915 = vmatprep.subr.mxu0 0.0
    %2916 = vmatpush1.msra.mxu0 0.0
    %2917 = vmatprep.subr.mxu0 0.0
    %2918 = vmatpush1.msra.mxu0 0.0
    %2919 = vmatprep.subr.mxu0 0.0
    %2920 = vmatpush1.msra.mxu0 0.0
    %2921 = vmatprep.subr.mxu0 0.0
    %2922 = vmatpush1.msra.mxu0 0.0
    %2923 = vmatprep.subr.mxu0 0.0
    %2924 = vmatpush1.msra.mxu0 0.0
    %2925 = vmatprep.subr.mxu0 0.0
    %2926 = vmatpush1.msra.mxu0 0.0
    %2927 = vmatprep.subr.mxu0 0.0
    %2928 = vmatpush1.msra.mxu0 0.0
    %2929 = vmatprep.subr.mxu0 0.0
    %2930 = vmatpush1.msra.mxu0 0.0
    %2931 = vmatprep.subr.mxu0 0.0
    %2932 = vmatpush1.msra.mxu0 0.0
    %2933 = vmatprep.subr.mxu0 0.0
    %2934 = vmatpush1.msra.mxu0 0.0
    %2935 = vmatprep.subr.mxu0 0.0
    %2936 = vmatpush1.msra.mxu0 0.0
    %2937 = vmatprep.subr.mxu0 0.0
    %2938 = vmatpush1.msra.mxu0 0.0
    %2939 = vmatprep.subr.mxu0 0.0
    %2940 = vmatpush1.msra.mxu0 0.0
    %2941 = vmatprep.subr.mxu0 0.0
    %2942 = vmatpush1.msra.mxu0 0.0
    %2943 = vmatprep.subr.mxu0 0.0
    %2944 = vmatpush1.msra.mxu0 0.0
    %2945 = vmatprep.subr.mxu0 0.0
    %2946 = vmatpush1.msra.mxu0 0.0
    %2947 = vmatprep.subr.mxu0 0.0
    %2948 = vmatpush1.msra.mxu0 0.0
    %2949 = vmatprep.subr.mxu0 0.0
    %2950 = vmatpush1.msra.mxu0 0.0
    %2951 = vmatprep.subr.mxu0 0.0
    %2952 = vmatpush1.msra.mxu0 0.0
    %2953 = vmatprep.subr.mxu0 0.0
    %2954 = vmatpush1.msra.mxu0 0.0
    %2955 = vmatprep.subr.mxu0 0.0
    %2956 = vmatpush1.msra.mxu0 0.0
    %2957 = vmatprep.mubr.f32.mxu0 0.0
    %2958 = vmatmul.mubr.f32.gmra.mrb[0].mxu0 %v913
    %v2959 = vpop.f32.mrb[0].mxu0
    %v2960 = vadd.f32 0.0, %v2959
    %v2961 = vpop.f32.mrb[0].mxu0
    %2962 = vdwg.mxu0
    %vm2963 = vcmp.gt.f32.partialorder %v2890, 0.5
    %v2964 = vmax.f32 %v2890, 1.0
    %v2965 = vrcp.pop %v2964
    %v2966 = vsel %vm2963, %v2965, 0.0
    %2968 = vset.pattern.permute.xlu0 0
    %2969 = vperm.xlu0 %2968, %v2966
    %v2970 = vpop.permute.xlu0 %2969
    %v2972 = vmul.f32 %v2960, %v2970
    %vm2973 = vcmp.gt.f32.partialorder %v2791, 0.5
    %vm2974 = vcmp.gt.f32.partialorder %v2792, 0.5
    %v2975 = vsel %vm2973, 1, 0
    %v2976 = vsel %vm2974, 1, 0
    %2977 = vset.pattern.permute.xlu0 0
    %2978 = vperm.xlu0 %2977, %v2975
    %v2979 = vpop.permute.xlu0 %2978
    %2980 = vset.pattern.permute.xlu0 0
    %2981 = vperm.xlu0 %2980, %v2976
    %v2982 = vpop.permute.xlu0 %2981
    %vm2983 = vcmp.eq.s32.totalorder %v2979, 1
    %vm2984 = vcmp.eq.s32.totalorder %v2982, 1
    %v2985 = vsel %vm2983, %v2819, -3e+38
    %v2986 = vsel %vm2984, %v2820, -3e+38
    %v2987 = vsel %vm217, %v2985, -inf
    %v2988 = vsel %vm217, %v2986, -inf
    %v2989 = vmax.f32 %v2987, %v2988
    %v2990 = vrot.slane %v2989, 4
    %v2991 = vmax.f32 %v2989, %v2990
    %v2992 = vrot.slane %v2991, 2
    %v2993 = vmax.f32 %v2991, %v2992
    %v2994 = vrot.slane %v2993, 1
    %v2995 = vmax.f32 %v2993, %v2994
    %v2996 = vmul.f32 %v1090, %v2995
    %v2997 = vadd.f32 %v2996, 0.0
    %vm2998 = vcmp.gt.f32.partialorder %v2793, 0.5
    %vm2999 = vcmp.gt.f32.partialorder %v2794, 0.5
    %v3000 = vsel %vm2998, 1, 0
    %v3001 = vsel %vm2999, 1, 0
    %3002 = vset.pattern.permute.xlu0 0
    %3003 = vperm.xlu0 %3002, %v3000
    %v3004 = vpop.permute.xlu0 %3003
    %3005 = vset.pattern.permute.xlu0 0
    %3006 = vperm.xlu0 %3005, %v3001
    %v3007 = vpop.permute.xlu0 %3006
    %vm3008 = vcmp.eq.s32.totalorder %v3004, 1
    %vm3009 = vcmp.eq.s32.totalorder %v3007, 1
    %v3010 = vsel %vm3008, %v2821, -3e+38
    %v3011 = vsel %vm3009, %v2822, -3e+38
    %v3012 = vsel %vm217, %v3010, -inf
    %v3013 = vsel %vm217, %v3011, -inf
    %v3014 = vmax.f32 %v3012, %v3013
    %v3015 = vrot.slane %v3014, 4
    %v3016 = vmax.f32 %v3014, %v3015
    %v3017 = vrot.slane %v3016, 2
    %v3018 = vmax.f32 %v3016, %v3017
    %v3019 = vrot.slane %v3018, 1
    %v3020 = vmax.f32 %v3018, %v3019
    %v3021 = vmul.f32 %v1118, %v3020
    %v3022 = vadd.f32 %v2997, %v3021
    %v3023 = vsel %vm2963, 1, 0
    %3024 = vset.pattern.permute.xlu0 0
    %3025 = vperm.xlu0 %3024, %v3023
    %v3026 = vpop.permute.xlu0 %3025
    %vm3027 = vcmp.eq.s32.totalorder %v3026, 1
    %v3028 = vsel %vm3027, %v3022, 0.0
    %v3029 = vadd.f32 %v2125, %v2972
    %v3030 = vadd.f32 %v2126, %v3028
    %v3031 = vld [vmem:[%s13] sm:$0xff]
    %v3032 = vld [vmem:[%s13 + $0x8] sm:$0xff]
    %v3033 = vld [vmem:[%s13 + $0x10] sm:$0xff]
    %v3034 = vld [vmem:[%s13 + $0x18] sm:$0xff]
    %v3035 = vld [vmem:[%s13 + $0x20] sm:$0xff]
    %v3036 = vld [vmem:[%s13 + $0x28] sm:$0xff]
    %v3037 = vld [vmem:[%s13 + $0x30] sm:$0xff]
    %v3038 = vld [vmem:[%s13 + $0x38] sm:$0xff]
    %v3040 = vsel %vm217, %v3030, 0
    %3042 = vmatprep.subr.mxu0 0.0
    %3043 = vmatpush1.msra.mxu0 %v3035
    %3044 = vmatprep.subr.mxu0 0.0
    %3045 = vmatpush1.msra.mxu0 %v3036
    %3046 = vmatprep.subr.mxu0 0.0
    %3047 = vmatpush1.msra.mxu0 %v3037
    %3048 = vmatprep.subr.mxu0 0.0
    %3049 = vmatpush1.msra.mxu0 %v3038
    %3050 = vmatprep.subr.mxu0 0.0
    %3051 = vmatpush1.msra.mxu0 0.0
    %3052 = vmatprep.subr.mxu0 0.0
    %3053 = vmatpush1.msra.mxu0 0.0
    %3054 = vmatprep.subr.mxu0 0.0
    %3055 = vmatpush1.msra.mxu0 0.0
    %3056 = vmatprep.subr.mxu0 0.0
    %3057 = vmatpush1.msra.mxu0 0.0
    %3058 = vmatprep.subr.mxu0 0.0
    %3059 = vmatpush1.msra.mxu0 0.0
    %3060 = vmatprep.subr.mxu0 0.0
    %3061 = vmatpush1.msra.mxu0 0.0
    %3062 = vmatprep.subr.mxu0 0.0
    %3063 = vmatpush1.msra.mxu0 0.0
    %3064 = vmatprep.subr.mxu0 0.0
    %3065 = vmatpush1.msra.mxu0 0.0
    %3066 = vmatprep.subr.mxu0 0.0
    %3067 = vmatpush1.msra.mxu0 0.0
    %3068 = vmatprep.subr.mxu0 0.0
    %3069 = vmatpush1.msra.mxu0 0.0
    %3070 = vmatprep.subr.mxu0 0.0
    %3071 = vmatpush1.msra.mxu0 0.0
    %3072 = vmatprep.subr.mxu0 0.0
    %3073 = vmatpush1.msra.mxu0 0.0
    %3074 = vmatprep.subr.mxu0 0.0
    %3075 = vmatpush1.msra.mxu0 0.0
    %3076 = vmatprep.subr.mxu0 0.0
    %3077 = vmatpush1.msra.mxu0 0.0
    %3078 = vmatprep.subr.mxu0 0.0
    %3079 = vmatpush1.msra.mxu0 0.0
    %3080 = vmatprep.subr.mxu0 0.0
    %3081 = vmatpush1.msra.mxu0 0.0
    %3082 = vmatprep.subr.mxu0 0.0
    %3083 = vmatpush1.msra.mxu0 0.0
    %3084 = vmatprep.subr.mxu0 0.0
    %3085 = vmatpush1.msra.mxu0 0.0
    %3086 = vmatprep.subr.mxu0 0.0
    %3087 = vmatpush1.msra.mxu0 0.0
    %3088 = vmatprep.subr.mxu0 0.0
    %3089 = vmatpush1.msra.mxu0 0.0
    %3090 = vmatprep.subr.mxu0 0.0
    %3091 = vmatpush1.msra.mxu0 0.0
    %3092 = vmatprep.subr.mxu0 0.0
    %3093 = vmatpush1.msra.mxu0 0.0
    %3094 = vmatprep.subr.mxu0 0.0
    %3095 = vmatpush1.msra.mxu0 0.0
    %3096 = vmatprep.subr.mxu0 0.0
    %3097 = vmatpush1.msra.mxu0 0.0
    %3098 = vmatprep.subr.mxu0 0.0
    %3099 = vmatpush1.msra.mxu0 0.0
    %3100 = vmatprep.subr.mxu0 0.0
    %3101 = vmatpush1.msra.mxu0 0.0
    %3102 = vmatprep.subr.mxu0 0.0
    %3103 = vmatpush1.msra.mxu0 0.0
    %3104 = vmatprep.subr.mxu0 0.0
    %3105 = vmatpush1.msra.mxu0 0.0
    %3106 = vmatprep.mubr.f32.mxu0 0.0
    %3107 = vmatmul.mubr.f32.gmra.mrb[0].mxu0 %v3040
    %v3108 = vpop.f32.mrb[0].mxu0
    %v3109 = vadd.f32 0.0, %v3108
    %v3110 = vpop.f32.mrb[0].mxu0
    %3111 = vdwg.mxu0
    %v3113 = vsel %vm217, %v3029, 0
    %3115 = vmatprep.subr.mxu0 0.0
    %3116 = vmatpush1.msra.mxu0 %v3031
    %3117 = vmatprep.subr.mxu0 0.0
    %3118 = vmatpush1.msra.mxu0 %v3032
    %3119 = vmatprep.subr.mxu0 0.0
    %3120 = vmatpush1.msra.mxu0 %v3033
    %3121 = vmatprep.subr.mxu0 0.0
    %3122 = vmatpush1.msra.mxu0 %v3034
    %3123 = vmatprep.subr.mxu0 0.0
    %3124 = vmatpush1.msra.mxu0 0.0
    %3125 = vmatprep.subr.mxu0 0.0
    %3126 = vmatpush1.msra.mxu0 0.0
    %3127 = vmatprep.subr.mxu0 0.0
    %3128 = vmatpush1.msra.mxu0 0.0
    %3129 = vmatprep.subr.mxu0 0.0
    %3130 = vmatpush1.msra.mxu0 0.0
    %3131 = vmatprep.subr.mxu0 0.0
    %3132 = vmatpush1.msra.mxu0 0.0
    %3133 = vmatprep.subr.mxu0 0.0
    %3134 = vmatpush1.msra.mxu0 0.0
    %3135 = vmatprep.subr.mxu0 0.0
    %3136 = vmatpush1.msra.mxu0 0.0
    %3137 = vmatprep.subr.mxu0 0.0
    %3138 = vmatpush1.msra.mxu0 0.0
    %3139 = vmatprep.subr.mxu0 0.0
    %3140 = vmatpush1.msra.mxu0 0.0
    %3141 = vmatprep.subr.mxu0 0.0
    %3142 = vmatpush1.msra.mxu0 0.0
    %3143 = vmatprep.subr.mxu0 0.0
    %3144 = vmatpush1.msra.mxu0 0.0
    %3145 = vmatprep.subr.mxu0 0.0
    %3146 = vmatpush1.msra.mxu0 0.0
    %3147 = vmatprep.subr.mxu0 0.0
    %3148 = vmatpush1.msra.mxu0 0.0
    %3149 = vmatprep.subr.mxu0 0.0
    %3150 = vmatpush1.msra.mxu0 0.0
    %3151 = vmatprep.subr.mxu0 0.0
    %3152 = vmatpush1.msra.mxu0 0.0
    %3153 = vmatprep.subr.mxu0 0.0
    %3154 = vmatpush1.msra.mxu0 0.0
    %3155 = vmatprep.subr.mxu0 0.0
    %3156 = vmatpush1.msra.mxu0 0.0
    %3157 = vmatprep.subr.mxu0 0.0
    %3158 = vmatpush1.msra.mxu0 0.0
    %3159 = vmatprep.subr.mxu0 0.0
    %3160 = vmatpush1.msra.mxu0 0.0
    %3161 = vmatprep.subr.mxu0 0.0
    %3162 = vmatpush1.msra.mxu0 0.0
    %3163 = vmatprep.subr.mxu0 0.0
    %3164 = vmatpush1.msra.mxu0 0.0
    %3165 = vmatprep.subr.mxu0 0.0
    %3166 = vmatpush1.msra.mxu0 0.0
    %3167 = vmatprep.subr.mxu0 0.0
    %3168 = vmatpush1.msra.mxu0 0.0
    %3169 = vmatprep.subr.mxu0 0.0
    %3170 = vmatpush1.msra.mxu0 0.0
    %3171 = vmatprep.subr.mxu0 0.0
    %3172 = vmatpush1.msra.mxu0 0.0
    %3173 = vmatprep.subr.mxu0 0.0
    %3174 = vmatpush1.msra.mxu0 0.0
    %3175 = vmatprep.subr.mxu0 0.0
    %3176 = vmatpush1.msra.mxu0 0.0
    %3177 = vmatprep.subr.mxu0 0.0
    %3178 = vmatpush1.msra.mxu0 0.0
    %3179 = vmatprep.mubr.f32.mxu0 0.0
    %3180 = vmatmul.mubr.f32.gmra.mrb[0].mxu0 %v3113
    %v3181 = vpop.f32.mrb[0].mxu0
    %v3182 = vadd.f32 %v3109, %v3181
    %v3183 = vpop.f32.mrb[0].mxu0
    %3184 = vdwg.mxu0
    %v3185 = vld [vmem:[%s14] sm:$0x1]
    %v3187 = vlaneseq
    %v3188 = vshrl.u32 %v3187, 7
    %v3189 = vsub.s32 0, %v3188
    %v3190 = vrot.slane %v3185, %v3189
    %v3192 = vadd.f32 %v3182, %v3190
    %v3193 = vmax.f32 %v3192, 0.0
    %v3194 = vld [vmem:[%s15] sm:$0xff]
    %v3195 = vld [vmem:[%s15 + $0x8] sm:$0xff]
    %v3196 = vld [vmem:[%s15 + $0x10] sm:$0xff]
    %v3197 = vld [vmem:[%s15 + $0x18] sm:$0xff]
    %v3198 = vld [vmem:[%s16] sm:$0x1]
    %v3200 = vlaneseq
    %v3201 = vshrl.u32 %v3200, 7
    %v3202 = vsub.s32 0, %v3201
    %v3203 = vrot.slane %v3198, %v3202
    %v3206 = vsel %vm217, %v3193, 0
    %3208 = vmatprep.subr.mxu0 0.0
    %3209 = vmatpush1.msra.mxu0 %v3194
    %3210 = vmatprep.subr.mxu0 0.0
    %3211 = vmatpush1.msra.mxu0 %v3195
    %3212 = vmatprep.subr.mxu0 0.0
    %3213 = vmatpush1.msra.mxu0 %v3196
    %3214 = vmatprep.subr.mxu0 0.0
    %3215 = vmatpush1.msra.mxu0 %v3197
    %3216 = vmatprep.subr.mxu0 0.0
    %3217 = vmatpush1.msra.mxu0 0.0
    %3218 = vmatprep.subr.mxu0 0.0
    %3219 = vmatpush1.msra.mxu0 0.0
    %3220 = vmatprep.subr.mxu0 0.0
    %3221 = vmatpush1.msra.mxu0 0.0
    %3222 = vmatprep.subr.mxu0 0.0
    %3223 = vmatpush1.msra.mxu0 0.0
    %3224 = vmatprep.subr.mxu0 0.0
    %3225 = vmatpush1.msra.mxu0 0.0
    %3226 = vmatprep.subr.mxu0 0.0
    %3227 = vmatpush1.msra.mxu0 0.0
    %3228 = vmatprep.subr.mxu0 0.0
    %3229 = vmatpush1.msra.mxu0 0.0
    %3230 = vmatprep.subr.mxu0 0.0
    %3231 = vmatpush1.msra.mxu0 0.0
    %3232 = vmatprep.subr.mxu0 0.0
    %3233 = vmatpush1.msra.mxu0 0.0
    %3234 = vmatprep.subr.mxu0 0.0
    %3235 = vmatpush1.msra.mxu0 0.0
    %3236 = vmatprep.subr.mxu0 0.0
    %3237 = vmatpush1.msra.mxu0 0.0
    %3238 = vmatprep.subr.mxu0 0.0
    %3239 = vmatpush1.msra.mxu0 0.0
    %3240 = vmatprep.subr.mxu0 0.0
    %3241 = vmatpush1.msra.mxu0 0.0
    %3242 = vmatprep.subr.mxu0 0.0
    %3243 = vmatpush1.msra.mxu0 0.0
    %3244 = vmatprep.subr.mxu0 0.0
    %3245 = vmatpush1.msra.mxu0 0.0
    %3246 = vmatprep.subr.mxu0 0.0
    %3247 = vmatpush1.msra.mxu0 0.0
    %3248 = vmatprep.subr.mxu0 0.0
    %3249 = vmatpush1.msra.mxu0 0.0
    %3250 = vmatprep.subr.mxu0 0.0
    %3251 = vmatpush1.msra.mxu0 0.0
    %3252 = vmatprep.subr.mxu0 0.0
    %3253 = vmatpush1.msra.mxu0 0.0
    %3254 = vmatprep.subr.mxu0 0.0
    %3255 = vmatpush1.msra.mxu0 0.0
    %3256 = vmatprep.subr.mxu0 0.0
    %3257 = vmatpush1.msra.mxu0 0.0
    %3258 = vmatprep.subr.mxu0 0.0
    %3259 = vmatpush1.msra.mxu0 0.0
    %3260 = vmatprep.subr.mxu0 0.0
    %3261 = vmatpush1.msra.mxu0 0.0
    %3262 = vmatprep.subr.mxu0 0.0
    %3263 = vmatpush1.msra.mxu0 0.0
    %3264 = vmatprep.subr.mxu0 0.0
    %3265 = vmatpush1.msra.mxu0 0.0
    %3266 = vmatprep.subr.mxu0 0.0
    %3267 = vmatpush1.msra.mxu0 0.0
    %3268 = vmatprep.subr.mxu0 0.0
    %3269 = vmatpush1.msra.mxu0 0.0
    %3270 = vmatprep.subr.mxu0 0.0
    %3271 = vmatpush1.msra.mxu0 0.0
    %3272 = vmatprep.mubr.f32.mxu0 0.0
    %3273 = vmatmul.mubr.f32.gmra.mrb[0].mxu0 %v3206
    %v3274 = vpop.f32.mrb[0].mxu0
    %v3275 = vadd.f32 %v3203, %v3274
    %v3276 = vpop.f32.mrb[0].mxu0
    %3277 = vdwg.mxu0
    %v3278 = vmax.f32 %v3275, 0.0
    %v3279 = vld [vmem:[%s17] sm:$0xff]
    %v3280 = vld [vmem:[%s17 + $0x8] sm:$0xff]
    %v3281 = vld [vmem:[%s18] sm:$0x1]
    %v3283 = vlaneseq
    %v3284 = vshrl.u32 %v3283, 7
    %v3285 = vsub.s32 0, %v3284
    %v3286 = vrot.slane %v3281, %v3285
    %vm3288 = vcmask 130048
    %v3290 = vsel %vm3288, %v3278, 0
    %3292 = vmatprep.subr.mxu0 0.0
    %3293 = vmatpush1.msra.mxu0 %v3279
    %3294 = vmatprep.subr.mxu0 0.0
    %3295 = vmatpush1.msra.mxu0 %v3280
    %3296 = vmatprep.subr.mxu0 0.0
    %3297 = vmatpush1.msra.mxu0 0.0
    %3298 = vmatprep.subr.mxu0 0.0
    %3299 = vmatpush1.msra.mxu0 0.0
    %3300 = vmatprep.subr.mxu0 0.0
    %3301 = vmatpush1.msra.mxu0 0.0
    %3302 = vmatprep.subr.mxu0 0.0
    %3303 = vmatpush1.msra.mxu0 0.0
    %3304 = vmatprep.subr.mxu0 0.0
    %3305 = vmatpush1.msra.mxu0 0.0
    %3306 = vmatprep.subr.mxu0 0.0
    %3307 = vmatpush1.msra.mxu0 0.0
    %3308 = vmatprep.subr.mxu0 0.0
    %3309 = vmatpush1.msra.mxu0 0.0
    %3310 = vmatprep.subr.mxu0 0.0
    %3311 = vmatpush1.msra.mxu0 0.0
    %3312 = vmatprep.subr.mxu0 0.0
    %3313 = vmatpush1.msra.mxu0 0.0
    %3314 = vmatprep.subr.mxu0 0.0
    %3315 = vmatpush1.msra.mxu0 0.0
    %3316 = vmatprep.subr.mxu0 0.0
    %3317 = vmatpush1.msra.mxu0 0.0
    %3318 = vmatprep.subr.mxu0 0.0
    %3319 = vmatpush1.msra.mxu0 0.0
    %3320 = vmatprep.subr.mxu0 0.0
    %3321 = vmatpush1.msra.mxu0 0.0
    %3322 = vmatprep.subr.mxu0 0.0
    %3323 = vmatpush1.msra.mxu0 0.0
    %3324 = vmatprep.subr.mxu0 0.0
    %3325 = vmatpush1.msra.mxu0 0.0
    %3326 = vmatprep.subr.mxu0 0.0
    %3327 = vmatpush1.msra.mxu0 0.0
    %3328 = vmatprep.subr.mxu0 0.0
    %3329 = vmatpush1.msra.mxu0 0.0
    %3330 = vmatprep.subr.mxu0 0.0
    %3331 = vmatpush1.msra.mxu0 0.0
    %3332 = vmatprep.subr.mxu0 0.0
    %3333 = vmatpush1.msra.mxu0 0.0
    %3334 = vmatprep.subr.mxu0 0.0
    %3335 = vmatpush1.msra.mxu0 0.0
    %3336 = vmatprep.subr.mxu0 0.0
    %3337 = vmatpush1.msra.mxu0 0.0
    %3338 = vmatprep.subr.mxu0 0.0
    %3339 = vmatpush1.msra.mxu0 0.0
    %3340 = vmatprep.subr.mxu0 0.0
    %3341 = vmatpush1.msra.mxu0 0.0
    %3342 = vmatprep.subr.mxu0 0.0
    %3343 = vmatpush1.msra.mxu0 0.0
    %3344 = vmatprep.subr.mxu0 0.0
    %3345 = vmatpush1.msra.mxu0 0.0
    %3346 = vmatprep.subr.mxu0 0.0
    %3347 = vmatpush1.msra.mxu0 0.0
    %3348 = vmatprep.subr.mxu0 0.0
    %3349 = vmatpush1.msra.mxu0 0.0
    %3350 = vmatprep.subr.mxu0 0.0
    %3351 = vmatpush1.msra.mxu0 0.0
    %3352 = vmatprep.subr.mxu0 0.0
    %3353 = vmatpush1.msra.mxu0 0.0
    %3354 = vmatprep.subr.mxu0 0.0
    %3355 = vmatpush1.msra.mxu0 0.0
    %3356 = vmatprep.mubr.f32.mxu0 0.0
    %3357 = vmatmul.mubr.f32.gmra.mrb[0].mxu0 %v3290
    %v3358 = vpop.f32.mrb[0].mxu0
    %v3359 = vadd.f32 %v3286, %v3358
    %v3360 = vpop.f32.mrb[0].mxu0
    %3361 = vdwg.mxu0
    %vm3362 = vcmask 9216
    %3363 = vst.msk [vmem:[#allocation5] sm:$0x3] %vm3362, %v3359
    // Predicated region
    $region90: #{forward.1} parent=1 // pred_check
      _
    $region91: #{forward.1} parent=1 // pred_check_branch
      %3365 = sbr.rel (0) target = $region93
    $region92: #{forward.1} parent=1 // pred_region
      %s3367 = ssub.s32 32, 32
      %3368 = vsyncadd [#allocation6], %s3367
      %s3370 = sshll.u32 [#allocation5], 4
      %s3371 = int_to_ptr.vmem [resolvable:$true] %s3370
      %3373 = dma.vmem_to_hbm [thread:$0]  %s3371, 32, %s22, [#allocation6]
    $region93: #{forward.1} parent=1 // pred_fallthru
      _
    // Predicated region
    $region94: #{forward.1} parent=1 // pred_check
      _
    $region95: #{forward.1} parent=1 // pred_check_branch
      %3375 = sbr.rel (0) target = $region97
    $region96: #{forward.1} parent=1 // pred_region
      %3376 = dma.done [#allocation6], 32
    $region97: #{forward.1} parent=1 // pred_fallthru
      _
    %3377 = vsyncpa [#allocation6], 1

</llo_original>
